<compile_context>
chip_gen: v7x
topology: tpu7x:2x2x1
jax: 0.10.0
libtpu: 0.0.40
codegen_flags: <defaults>
</compile_context>

<pallas_src>
import numpy as np
import jax
import jax.numpy as jnp
from jax import lax
from jax.experimental import pallas as pl
from jax.experimental.pallas import tpu as pltpu

K = 5  # conv kernel size (both conv layers)


# --------------------------------------------------------------------------
# Fused LeNet forward kernel (one grid step == one sample)
# --------------------------------------------------------------------------
def _lenet_kernel(x_ref, w1_ref, b1_ref, w2_ref, b2_ref,
                  wf1_ref, bf1_ref, wf2_ref, bf2_ref, wf3_ref, bf3_ref,
                  o_ref):
    f32 = jnp.float32

    # Input block: (1, 4, 8, 96); phase p holds original rows {4q + p},
    # lane index = w*3 + c (channels fastest).
    xv = x_ref[...]
    phases = [xv[0, p] for p in range(4)]                  # each (8, 96)

    # ---- stage 1: conv1(5x5) + bias + ReLU + 2x2/2 max-pool (MXU) ----------
    # Accumulators indexed by [pooled-row parity P][conv-row parity rp];
    # w1 chunk (96, 168) maps input lanes -> output lanes (cp*84 + pw*6 + co),
    # so column pooling is a max of the two 84-lane halves.
    b1 = b1_ref[...]                                       # (1, 84)
    acc1 = [[None, None], [None, None]]
    for kh in range(K):
        w = w1_ref[kh * 96:(kh + 1) * 96, :]               # (96, 168)
        for P in range(2):
            for rp in range(2):
                t = 2 * P + rp + kh                        # input row = 4q + t
                a = phases[t % 4][t // 4:t // 4 + 7, :]    # (7, 96)
                prod = jnp.dot(a, w, preferred_element_type=f32)   # (7, 168)
                acc1[P][rp] = prod if acc1[P][rp] is None else acc1[P][rp] + prod
    s1 = []                                                # two (7, 84) blocks
    for P in range(2):
        m = None
        for rp in range(2):
            cand = jnp.maximum(acc1[P][rp][:, 0:84], acc1[P][rp][:, 84:168])
            m = cand if m is None else jnp.maximum(m, cand)
        s1.append(jnp.maximum(m + b1, 0.0))                # lane = pw*6 + c

    # ---- stage 2: conv2(5x5) + bias + ReLU + 2x2/2 max-pool (same scheme) --
    b2 = b2_ref[...]                                       # (1, 80)
    acc2 = [None, None]
    for kh in range(K):
        w = w2_ref[kh * 84:(kh + 1) * 84, :]               # (84, 160)
        for rp in range(2):
            t = rp + kh                                    # s1 row = 2*pr + t
            a = s1[t % 2][t // 2:t // 2 + 5, :]            # (5, 84)
            prod = jnp.dot(a, w, preferred_element_type=f32)       # (5, 160)
            acc2[rp] = prod if acc2[rp] is None else acc2[rp] + prod
    m2 = None
    for rp in range(2):
        cand = jnp.maximum(acc2[rp][:, 0:80], acc2[rp][:, 80:160])
        m2 = cand if m2 is None else jnp.maximum(m2, cand)
    s2 = jnp.maximum(m2 + b2, 0.0)                         # (5, 80), lane = pw*16 + c

    # ---- stage 3: fc1 -> ReLU -> fc2 -> ReLU -> fc3 (MXU) ------------------
    # The PyTorch NCHW flatten is folded into wf1's row layout (h*80 + w*16 + c).
    h = bf1_ref[...]                                       # (1, 120)
    for r in range(5):
        h = h + jnp.dot(s2[r:r + 1, :], wf1_ref[r * 80:(r + 1) * 80, :],
                        preferred_element_type=f32)
    h = jnp.maximum(h, 0.0)
    h = jnp.maximum(
        jnp.dot(h, wf2_ref[...], preferred_element_type=f32) + bf2_ref[...], 0.0)
    out = (jnp.dot(h, wf3_ref[...], preferred_element_type=f32)
           + bf3_ref[...])                                 # (1, 10)
    o_ref[...] = out.reshape(o_ref.shape)


# --------------------------------------------------------------------------
# One-time parameter re-layout (outside the hot path)
# --------------------------------------------------------------------------
def _conv_pool_matrix(w_oihw, b, win):
    """Banded block-Toeplitz matrix for a VALID KxK conv on activations laid
    out as (H, W*Cin).  Output lane = cp*(PW*Cout) + pw*Cout + co, where cp is
    the output-column parity (the 2x2 pool's column reduction becomes a max of
    the two lane halves).  Row index = kh*(W*Cin) + iw*Cin + ci."""
    w = np.asarray(w_oihw, np.float32)                     # (Cout, Cin, K, K)
    cout, cin, khs, kws = w.shape
    ow = win - kws + 1
    pw = ow // 2
    mat = np.zeros((khs, win * cin, 2 * pw * cout), np.float32)
    for kh in range(khs):
        for cp in range(2):                                # output col = 2*j + cp
            for j in range(pw):
                for kw in range(kws):
                    iw = 2 * j + cp + kw
                    col0 = cp * pw * cout + j * cout
                    mat[kh, iw * cin:(iw + 1) * cin, col0:col0 + cout] = w[:, :, kh, kw].T
    brow = np.tile(np.asarray(b, np.float32), pw).reshape(1, pw * cout)
    return (jnp.asarray(mat.reshape(khs * win * cin, 2 * pw * cout)),
            jnp.asarray(brow))


def prepare_params(p):
    w1, b1 = _conv_pool_matrix(p["conv1_w"], p["conv1_b"], win=32)   # (480,168),(1,84)
    w2, b2 = _conv_pool_matrix(p["conv2_w"], p["conv2_b"], win=14)   # (420,160),(1,80)
    # Fold the PyTorch NCHW flatten (index c*25 + h*5 + w) into fc1:
    # kernel layout is s2[h, w*16 + c] -> wf1 row index = h*80 + w*16 + c.
    f1 = np.asarray(p["fc1_w"], np.float32).reshape(120, 16, 5, 5)   # [j, c, h, w]
    wf1 = jnp.asarray(np.transpose(f1, (2, 3, 1, 0)).reshape(400, 120))
    return {
        "w1": w1, "b1": b1, "w2": w2, "b2": b2,
        "wf1": wf1,
        "bf1": jnp.asarray(np.asarray(p["fc1_b"], np.float32).reshape(1, 120)),
        "wf2": jnp.asarray(np.asarray(p["fc2_w"], np.float32).T),
        "bf2": jnp.asarray(np.asarray(p["fc2_b"], np.float32).reshape(1, 84)),
        "wf3": jnp.asarray(np.asarray(p["fc3_w"], np.float32).T),
        "bf3": jnp.asarray(np.asarray(p["fc3_b"], np.float32).reshape(1, 10)),
    }


# --------------------------------------------------------------------------
# Forward pass: one fused pallas_call, grid over the batch
# --------------------------------------------------------------------------
def _full_spec(a):
    zeros = (0,) * a.ndim
    return pl.BlockSpec(a.shape, lambda i: zeros)


@jax.jit
def net_forward(x_nchw, kp):
    n, cin, h, w = x_nchw.shape
    # NCHW -> (N, H, W*Cin) with channels fastest, then split rows into 4
    # phases so the kernel only ever needs contiguous row slices:
    # xp[:, p, q, :] = row 4q + p.
    x = jnp.transpose(x_nchw, (0, 2, 3, 1)).reshape(n, h, w * cin)
    xp = jnp.transpose(x.reshape(n, h // 4, 4, w * cin), (0, 2, 1, 3))

    n_out = kp["wf3"].shape[-1]                            # 10
    out = pl.pallas_call(
        _lenet_kernel,
        out_shape=jax.ShapeDtypeStruct((n, 1, n_out), jnp.float32),
        grid=(n,),
        in_specs=[
            pl.BlockSpec((1, 4, h // 4, w * cin), lambda i: (i, 0, 0, 0)),
            _full_spec(kp["w1"]), _full_spec(kp["b1"]),
            _full_spec(kp["w2"]), _full_spec(kp["b2"]),
            _full_spec(kp["wf1"]), _full_spec(kp["bf1"]),
            _full_spec(kp["wf2"]), _full_spec(kp["bf2"]),
            _full_spec(kp["wf3"]), _full_spec(kp["bf3"]),
        ],
        out_specs=pl.BlockSpec((1, 1, n_out), lambda i: (i, 0, 0)),
        compiler_params=pltpu.CompilerParams(
            dimension_semantics=("parallel",)),
    )(xp, kp["w1"], kp["b1"], kp["w2"], kp["b2"],
      kp["wf1"], kp["bf1"], kp["wf2"], kp["bf2"], kp["wf3"], kp["bf3"])
    return out[:, 0, :]


# --------------------------------------------------------------------------
# Deterministic parameter init (PyTorch default-style uniform bounds)
# --------------------------------------------------------------------------
def init_params(key):
    ks = jax.random.split(key, 10)

    def u(k, shape, fan_in):
        bound = 1.0 / jnp.sqrt(fan_in)
        return jax.random.uniform(k, shape, jnp.float32, -bound, bound)

    return {
        "conv1_w": u(ks[0], (6, 3, 5, 5), 3 * 5 * 5),
        "conv1_b": u(ks[1], (6,), 3 * 5 * 5),
        "conv2_w": u(ks[2], (16, 6, 5, 5), 6 * 5 * 5),
        "conv2_b": u(ks[3], (16,), 6 * 5 * 5),
        "fc1_w": u(ks[4], (120, 400), 400),
        "fc1_b": u(ks[5], (120,), 400),
        "fc2_w": u(ks[6], (84, 120), 120),
        "fc2_b": u(ks[7], (84,), 120),
        "fc3_w": u(ks[8], (10, 84), 84),
        "fc3_b": u(ks[9], (10,), 84),
    }


# --------------------------------------------------------------------------
# Pure-JAX reference (same math as the PyTorch module) for validation
# --------------------------------------------------------------------------
def reference_forward(x, p):
    dn = ("NCHW", "OIHW", "NCHW")
    y = lax.conv_general_dilated(x, p["conv1_w"], (1, 1), "VALID",
                                 dimension_numbers=dn)
    y = jnp.maximum(y + p["conv1_b"][None, :, None, None], 0.0)
    y = lax.reduce_window(y, -jnp.inf, lax.max, (1, 1, 2, 2), (1, 1, 2, 2), "VALID")
    y = lax.conv_general_dilated(y, p["conv2_w"], (1, 1), "VALID",
                                 dimension_numbers=dn)
    y = jnp.maximum(y + p["conv2_b"][None, :, None, None], 0.0)
    y = lax.reduce_window(y, -jnp.inf, lax.max, (1, 1, 2, 2), (1, 1, 2, 2), "VALID")
    y = y.reshape(y.shape[0], -1)
    y = jnp.maximum(y @ p["fc1_w"].T + p["fc1_b"], 0.0)
    y = jnp.maximum(y @ p["fc2_w"].T + p["fc2_b"], 0.0)
    return y @ p["fc3_w"].T + p["fc3_b"]


if __name__ == "__main__":
    key = jax.random.PRNGKey(0)
    kx, kparam = jax.random.split(key)

    # Net requires 32x32 spatial input (16*5*5 flatten before fc1); batch=2.
    x = jax.random.normal(kx, (2, 3, 32, 32), jnp.float32)
    params = init_params(kparam)
    kernel_params = prepare_params(params)     # one-time layout prep

    out = net_forward(x, kernel_params)
    out = jax.block_until_ready(out)

    ref = reference_forward(x, params)
    assert out.shape == (2, 10)
    assert jnp.allclose(out, ref, rtol=1e-4, atol=1e-3), (
        "mismatch vs JAX reference: max abs err "
        f"{float(jnp.max(jnp.abs(out - ref)))}"
    )

    print("KERNEL_OK")
</pallas_src>

<mosaic_0001>
module attributes {stable_mosaic.version = 11 : i64} {
  func.func @_lenet_kernel(%arg0: i32, %arg1: memref<1x4x8x96xf32, #tpu.memory_space<vmem>>, %arg2: memref<480x168xf32, #tpu.memory_space<vmem>>, %arg3: memref<1x84xf32, #tpu.memory_space<vmem>>, %arg4: memref<420x160xf32, #tpu.memory_space<vmem>>, %arg5: memref<1x80xf32, #tpu.memory_space<vmem>>, %arg6: memref<400x120xf32, #tpu.memory_space<vmem>>, %arg7: memref<1x120xf32, #tpu.memory_space<vmem>>, %arg8: memref<120x84xf32, #tpu.memory_space<vmem>>, %arg9: memref<1x84xf32, #tpu.memory_space<vmem>>, %arg10: memref<84x10xf32, #tpu.memory_space<vmem>>, %arg11: memref<1x10xf32, #tpu.memory_space<vmem>>, %arg12: memref<1x1x10xf32, #tpu.memory_space<vmem>>) attributes {dimension_semantics = [#tpu.dimension_semantics<parallel>], iteration_bounds = array<i64: 2>, scalar_prefetch = 0 : i64, scratch_operands = 0 : i64, tpu.core_type = #tpu.core_type<tc>, window_params = [{transform_indices = @transform_0, window_bounds = array<i64: 1, 4, 8, 96>}, {pipeline_mode = #tpu.pipeline_mode<synchronous>, transform_indices = @transform_1, window_bounds = array<i64: 480, 168>}, {pipeline_mode = #tpu.pipeline_mode<synchronous>, transform_indices = @transform_2, window_bounds = array<i64: 1, 84>}, {pipeline_mode = #tpu.pipeline_mode<synchronous>, transform_indices = @transform_3, window_bounds = array<i64: 420, 160>}, {pipeline_mode = #tpu.pipeline_mode<synchronous>, transform_indices = @transform_4, window_bounds = array<i64: 1, 80>}, {pipeline_mode = #tpu.pipeline_mode<synchronous>, transform_indices = @transform_5, window_bounds = array<i64: 400, 120>}, {pipeline_mode = #tpu.pipeline_mode<synchronous>, transform_indices = @transform_6, window_bounds = array<i64: 1, 120>}, {pipeline_mode = #tpu.pipeline_mode<synchronous>, transform_indices = @transform_7, window_bounds = array<i64: 120, 84>}, {pipeline_mode = #tpu.pipeline_mode<synchronous>, transform_indices = @transform_8, window_bounds = array<i64: 1, 84>}, {pipeline_mode = #tpu.pipeline_mode<synchronous>, transform_indices = @transform_9, window_bounds = array<i64: 84, 10>}, {pipeline_mode = #tpu.pipeline_mode<synchronous>, transform_indices = @transform_10, window_bounds = array<i64: 1, 10>}, {transform_indices = @transform_11, window_bounds = array<i64: 1, 1, 10>}]} {
    %c0 = arith.constant 0 : index
    %c0_0 = arith.constant 0 : index
    %c0_1 = arith.constant 0 : index
    %c0_2 = arith.constant 0 : index
    %0 = vector.load %arg1[%c0, %c0_0, %c0_1, %c0_2] : memref<1x4x8x96xf32, #tpu.memory_space<vmem>>, vector<1x4x8x96xf32>
    %1 = vector.extract_strided_slice %0 {offsets = [0, 0, 0, 0], sizes = [1, 1, 8, 96], strides = [1, 1, 1, 1]} : vector<1x4x8x96xf32> to vector<1x1x8x96xf32>
    %2 = vector.shape_cast %1 : vector<1x1x8x96xf32> to vector<8x96xf32>
    %3 = vector.extract_strided_slice %0 {offsets = [0, 1, 0, 0], sizes = [1, 1, 8, 96], strides = [1, 1, 1, 1]} : vector<1x4x8x96xf32> to vector<1x1x8x96xf32>
    %4 = vector.shape_cast %3 : vector<1x1x8x96xf32> to vector<8x96xf32>
    %5 = vector.extract_strided_slice %0 {offsets = [0, 2, 0, 0], sizes = [1, 1, 8, 96], strides = [1, 1, 1, 1]} : vector<1x4x8x96xf32> to vector<1x1x8x96xf32>
    %6 = vector.shape_cast %5 : vector<1x1x8x96xf32> to vector<8x96xf32>
    %7 = vector.extract_strided_slice %0 {offsets = [0, 3, 0, 0], sizes = [1, 1, 8, 96], strides = [1, 1, 1, 1]} : vector<1x4x8x96xf32> to vector<1x1x8x96xf32>
    %8 = vector.shape_cast %7 : vector<1x1x8x96xf32> to vector<8x96xf32>
    %c0_3 = arith.constant 0 : index
    %c0_4 = arith.constant 0 : index
    %9 = vector.load %arg3[%c0_3, %c0_4] : memref<1x84xf32, #tpu.memory_space<vmem>>, vector<1x84xf32>
    %c0_5 = arith.constant 0 : index
    %c0_6 = arith.constant 0 : index
    %10 = vector.load %arg2[%c0_5, %c0_6] : memref<480x168xf32, #tpu.memory_space<vmem>>, vector<96x168xf32>
    %11 = vector.extract_strided_slice %2 {offsets = [0, 0], sizes = [7, 96], strides = [1, 1]} : vector<8x96xf32> to vector<7x96xf32>
    %cst = arith.constant dense<0.000000e+00> : vector<7x168xf32>
    %12 = tpu.matmul %11, %10, %cst {dimension_numbers = #tpu.dot_dimension_numbers<[1], [0], [0], [1], [0, 0, 1, 1], [], []>} : vector<7x96xf32>, vector<96x168xf32>, vector<7x168xf32> -> vector<7x168xf32>
    %13 = vector.extract_strided_slice %4 {offsets = [0, 0], sizes = [7, 96], strides = [1, 1]} : vector<8x96xf32> to vector<7x96xf32>
    %cst_7 = arith.constant dense<0.000000e+00> : vector<7x168xf32>
    %14 = tpu.matmul %13, %10, %cst_7 {dimension_numbers = #tpu.dot_dimension_numbers<[1], [0], [0], [1], [0, 0, 1, 1], [], []>} : vector<7x96xf32>, vector<96x168xf32>, vector<7x168xf32> -> vector<7x168xf32>
    %15 = vector.extract_strided_slice %6 {offsets = [0, 0], sizes = [7, 96], strides = [1, 1]} : vector<8x96xf32> to vector<7x96xf32>
    %cst_8 = arith.constant dense<0.000000e+00> : vector<7x168xf32>
    %16 = tpu.matmul %15, %10, %cst_8 {dimension_numbers = #tpu.dot_dimension_numbers<[1], [0], [0], [1], [0, 0, 1, 1], [], []>} : vector<7x96xf32>, vector<96x168xf32>, vector<7x168xf32> -> vector<7x168xf32>
    %17 = vector.extract_strided_slice %8 {offsets = [0, 0], sizes = [7, 96], strides = [1, 1]} : vector<8x96xf32> to vector<7x96xf32>
    %cst_9 = arith.constant dense<0.000000e+00> : vector<7x168xf32>
    %18 = tpu.matmul %17, %10, %cst_9 {dimension_numbers = #tpu.dot_dimension_numbers<[1], [0], [0], [1], [0, 0, 1, 1], [], []>} : vector<7x96xf32>, vector<96x168xf32>, vector<7x168xf32> -> vector<7x168xf32>
    %c96 = arith.constant 96 : index
    %c0_10 = arith.constant 0 : index
    %19 = vector.load %arg2[%c96, %c0_10] : memref<480x168xf32, #tpu.memory_space<vmem>>, vector<96x168xf32>
    %20 = vector.extract_strided_slice %4 {offsets = [0, 0], sizes = [7, 96], strides = [1, 1]} : vector<8x96xf32> to vector<7x96xf32>
    %cst_11 = arith.constant dense<0.000000e+00> : vector<7x168xf32>
    %21 = tpu.matmul %20, %19, %cst_11 {dimension_numbers = #tpu.dot_dimension_numbers<[1], [0], [0], [1], [0, 0, 1, 1], [], []>} : vector<7x96xf32>, vector<96x168xf32>, vector<7x168xf32> -> vector<7x168xf32>
    %22 = arith.addf %12, %21 : vector<7x168xf32>
    %23 = vector.extract_strided_slice %6 {offsets = [0, 0], sizes = [7, 96], strides = [1, 1]} : vector<8x96xf32> to vector<7x96xf32>
    %cst_12 = arith.constant dense<0.000000e+00> : vector<7x168xf32>
    %24 = tpu.matmul %23, %19, %cst_12 {dimension_numbers = #tpu.dot_dimension_numbers<[1], [0], [0], [1], [0, 0, 1, 1], [], []>} : vector<7x96xf32>, vector<96x168xf32>, vector<7x168xf32> -> vector<7x168xf32>
    %25 = arith.addf %14, %24 : vector<7x168xf32>
    %26 = vector.extract_strided_slice %8 {offsets = [0, 0], sizes = [7, 96], strides = [1, 1]} : vector<8x96xf32> to vector<7x96xf32>
    %cst_13 = arith.constant dense<0.000000e+00> : vector<7x168xf32>
    %27 = tpu.matmul %26, %19, %cst_13 {dimension_numbers = #tpu.dot_dimension_numbers<[1], [0], [0], [1], [0, 0, 1, 1], [], []>} : vector<7x96xf32>, vector<96x168xf32>, vector<7x168xf32> -> vector<7x168xf32>
    %28 = arith.addf %16, %27 : vector<7x168xf32>
    %29 = vector.extract_strided_slice %2 {offsets = [1, 0], sizes = [7, 96], strides = [1, 1]} : vector<8x96xf32> to vector<7x96xf32>
    %cst_14 = arith.constant dense<0.000000e+00> : vector<7x168xf32>
    %30 = tpu.matmul %29, %19, %cst_14 {dimension_numbers = #tpu.dot_dimension_numbers<[1], [0], [0], [1], [0, 0, 1, 1], [], []>} : vector<7x96xf32>, vector<96x168xf32>, vector<7x168xf32> -> vector<7x168xf32>
    %31 = arith.addf %18, %30 : vector<7x168xf32>
    %c192 = arith.constant 192 : index
    %c0_15 = arith.constant 0 : index
    %32 = vector.load %arg2[%c192, %c0_15] : memref<480x168xf32, #tpu.memory_space<vmem>>, vector<96x168xf32>
    %33 = vector.extract_strided_slice %6 {offsets = [0, 0], sizes = [7, 96], strides = [1, 1]} : vector<8x96xf32> to vector<7x96xf32>
    %cst_16 = arith.constant dense<0.000000e+00> : vector<7x168xf32>
    %34 = tpu.matmul %33, %32, %cst_16 {dimension_numbers = #tpu.dot_dimension_numbers<[1], [0], [0], [1], [0, 0, 1, 1], [], []>} : vector<7x96xf32>, vector<96x168xf32>, vector<7x168xf32> -> vector<7x168xf32>
    %35 = arith.addf %22, %34 : vector<7x168xf32>
    %36 = vector.extract_strided_slice %8 {offsets = [0, 0], sizes = [7, 96], strides = [1, 1]} : vector<8x96xf32> to vector<7x96xf32>
    %cst_17 = arith.constant dense<0.000000e+00> : vector<7x168xf32>
    %37 = tpu.matmul %36, %32, %cst_17 {dimension_numbers = #tpu.dot_dimension_numbers<[1], [0], [0], [1], [0, 0, 1, 1], [], []>} : vector<7x96xf32>, vector<96x168xf32>, vector<7x168xf32> -> vector<7x168xf32>
    %38 = arith.addf %25, %37 : vector<7x168xf32>
    %39 = vector.extract_strided_slice %2 {offsets = [1, 0], sizes = [7, 96], strides = [1, 1]} : vector<8x96xf32> to vector<7x96xf32>
    %cst_18 = arith.constant dense<0.000000e+00> : vector<7x168xf32>
    %40 = tpu.matmul %39, %32, %cst_18 {dimension_numbers = #tpu.dot_dimension_numbers<[1], [0], [0], [1], [0, 0, 1, 1], [], []>} : vector<7x96xf32>, vector<96x168xf32>, vector<7x168xf32> -> vector<7x168xf32>
    %41 = arith.addf %28, %40 : vector<7x168xf32>
    %42 = vector.extract_strided_slice %4 {offsets = [1, 0], sizes = [7, 96], strides = [1, 1]} : vector<8x96xf32> to vector<7x96xf32>
    %cst_19 = arith.constant dense<0.000000e+00> : vector<7x168xf32>
    %43 = tpu.matmul %42, %32, %cst_19 {dimension_numbers = #tpu.dot_dimension_numbers<[1], [0], [0], [1], [0, 0, 1, 1], [], []>} : vector<7x96xf32>, vector<96x168xf32>, vector<7x168xf32> -> vector<7x168xf32>
    %44 = arith.addf %31, %43 : vector<7x168xf32>
    %c288 = arith.constant 288 : index
    %c0_20 = arith.constant 0 : index
    %45 = vector.load %arg2[%c288, %c0_20] : memref<480x168xf32, #tpu.memory_space<vmem>>, vector<96x168xf32>
    %46 = vector.extract_strided_slice %8 {offsets = [0, 0], sizes = [7, 96], strides = [1, 1]} : vector<8x96xf32> to vector<7x96xf32>
    %cst_21 = arith.constant dense<0.000000e+00> : vector<7x168xf32>
    %47 = tpu.matmul %46, %45, %cst_21 {dimension_numbers = #tpu.dot_dimension_numbers<[1], [0], [0], [1], [0, 0, 1, 1], [], []>} : vector<7x96xf32>, vector<96x168xf32>, vector<7x168xf32> -> vector<7x168xf32>
    %48 = arith.addf %35, %47 : vector<7x168xf32>
    %49 = vector.extract_strided_slice %2 {offsets = [1, 0], sizes = [7, 96], strides = [1, 1]} : vector<8x96xf32> to vector<7x96xf32>
    %cst_22 = arith.constant dense<0.000000e+00> : vector<7x168xf32>
    %50 = tpu.matmul %49, %45, %cst_22 {dimension_numbers = #tpu.dot_dimension_numbers<[1], [0], [0], [1], [0, 0, 1, 1], [], []>} : vector<7x96xf32>, vector<96x168xf32>, vector<7x168xf32> -> vector<7x168xf32>
    %51 = arith.addf %38, %50 : vector<7x168xf32>
    %52 = vector.extract_strided_slice %4 {offsets = [1, 0], sizes = [7, 96], strides = [1, 1]} : vector<8x96xf32> to vector<7x96xf32>
    %cst_23 = arith.constant dense<0.000000e+00> : vector<7x168xf32>
    %53 = tpu.matmul %52, %45, %cst_23 {dimension_numbers = #tpu.dot_dimension_numbers<[1], [0], [0], [1], [0, 0, 1, 1], [], []>} : vector<7x96xf32>, vector<96x168xf32>, vector<7x168xf32> -> vector<7x168xf32>
    %54 = arith.addf %41, %53 : vector<7x168xf32>
    %55 = vector.extract_strided_slice %6 {offsets = [1, 0], sizes = [7, 96], strides = [1, 1]} : vector<8x96xf32> to vector<7x96xf32>
    %cst_24 = arith.constant dense<0.000000e+00> : vector<7x168xf32>
    %56 = tpu.matmul %55, %45, %cst_24 {dimension_numbers = #tpu.dot_dimension_numbers<[1], [0], [0], [1], [0, 0, 1, 1], [], []>} : vector<7x96xf32>, vector<96x168xf32>, vector<7x168xf32> -> vector<7x168xf32>
    %57 = arith.addf %44, %56 : vector<7x168xf32>
    %c384 = arith.constant 384 : index
    %c0_25 = arith.constant 0 : index
    %58 = vector.load %arg2[%c384, %c0_25] : memref<480x168xf32, #tpu.memory_space<vmem>>, vector<96x168xf32>
    %59 = vector.extract_strided_slice %2 {offsets = [1, 0], sizes = [7, 96], strides = [1, 1]} : vector<8x96xf32> to vector<7x96xf32>
    %cst_26 = arith.constant dense<0.000000e+00> : vector<7x168xf32>
    %60 = tpu.matmul %59, %58, %cst_26 {dimension_numbers = #tpu.dot_dimension_numbers<[1], [0], [0], [1], [0, 0, 1, 1], [], []>} : vector<7x96xf32>, vector<96x168xf32>, vector<7x168xf32> -> vector<7x168xf32>
    %61 = arith.addf %48, %60 : vector<7x168xf32>
    %62 = vector.extract_strided_slice %4 {offsets = [1, 0], sizes = [7, 96], strides = [1, 1]} : vector<8x96xf32> to vector<7x96xf32>
    %cst_27 = arith.constant dense<0.000000e+00> : vector<7x168xf32>
    %63 = tpu.matmul %62, %58, %cst_27 {dimension_numbers = #tpu.dot_dimension_numbers<[1], [0], [0], [1], [0, 0, 1, 1], [], []>} : vector<7x96xf32>, vector<96x168xf32>, vector<7x168xf32> -> vector<7x168xf32>
    %64 = arith.addf %51, %63 : vector<7x168xf32>
    %65 = vector.extract_strided_slice %6 {offsets = [1, 0], sizes = [7, 96], strides = [1, 1]} : vector<8x96xf32> to vector<7x96xf32>
    %cst_28 = arith.constant dense<0.000000e+00> : vector<7x168xf32>
    %66 = tpu.matmul %65, %58, %cst_28 {dimension_numbers = #tpu.dot_dimension_numbers<[1], [0], [0], [1], [0, 0, 1, 1], [], []>} : vector<7x96xf32>, vector<96x168xf32>, vector<7x168xf32> -> vector<7x168xf32>
    %67 = arith.addf %54, %66 : vector<7x168xf32>
    %68 = vector.extract_strided_slice %8 {offsets = [1, 0], sizes = [7, 96], strides = [1, 1]} : vector<8x96xf32> to vector<7x96xf32>
    %cst_29 = arith.constant dense<0.000000e+00> : vector<7x168xf32>
    %69 = tpu.matmul %68, %58, %cst_29 {dimension_numbers = #tpu.dot_dimension_numbers<[1], [0], [0], [1], [0, 0, 1, 1], [], []>} : vector<7x96xf32>, vector<96x168xf32>, vector<7x168xf32> -> vector<7x168xf32>
    %70 = arith.addf %57, %69 : vector<7x168xf32>
    %71 = vector.extract_strided_slice %61 {offsets = [0, 0], sizes = [7, 84], strides = [1, 1]} : vector<7x168xf32> to vector<7x84xf32>
    %72 = vector.extract_strided_slice %61 {offsets = [0, 84], sizes = [7, 84], strides = [1, 1]} : vector<7x168xf32> to vector<7x84xf32>
    %73 = arith.maximumf %71, %72 : vector<7x84xf32>
    %74 = vector.extract_strided_slice %64 {offsets = [0, 0], sizes = [7, 84], strides = [1, 1]} : vector<7x168xf32> to vector<7x84xf32>
    %75 = vector.extract_strided_slice %64 {offsets = [0, 84], sizes = [7, 84], strides = [1, 1]} : vector<7x168xf32> to vector<7x84xf32>
    %76 = arith.maximumf %74, %75 : vector<7x84xf32>
    %77 = arith.maximumf %73, %76 : vector<7x84xf32>
    %78 = vector.broadcast %9 : vector<1x84xf32> to vector<7x84xf32>
    %79 = arith.addf %77, %78 : vector<7x84xf32>
    %cst_30 = arith.constant 0.000000e+00 : f32
    %80 = vector.broadcast %cst_30 : f32 to vector<7x84xf32>
    %81 = arith.maximumf %79, %80 : vector<7x84xf32>
    %82 = vector.extract_strided_slice %67 {offsets = [0, 0], sizes = [7, 84], strides = [1, 1]} : vector<7x168xf32> to vector<7x84xf32>
    %83 = vector.extract_strided_slice %67 {offsets = [0, 84], sizes = [7, 84], strides = [1, 1]} : vector<7x168xf32> to vector<7x84xf32>
    %84 = arith.maximumf %82, %83 : vector<7x84xf32>
    %85 = vector.extract_strided_slice %70 {offsets = [0, 0], sizes = [7, 84], strides = [1, 1]} : vector<7x168xf32> to vector<7x84xf32>
    %86 = vector.extract_strided_slice %70 {offsets = [0, 84], sizes = [7, 84], strides = [1, 1]} : vector<7x168xf32> to vector<7x84xf32>
    %87 = arith.maximumf %85, %86 : vector<7x84xf32>
    %88 = arith.maximumf %84, %87 : vector<7x84xf32>
    %89 = vector.broadcast %9 : vector<1x84xf32> to vector<7x84xf32>
    %90 = arith.addf %88, %89 : vector<7x84xf32>
    %cst_31 = arith.constant 0.000000e+00 : f32
    %91 = vector.broadcast %cst_31 : f32 to vector<7x84xf32>
    %92 = arith.maximumf %90, %91 : vector<7x84xf32>
    %c0_32 = arith.constant 0 : index
    %c0_33 = arith.constant 0 : index
    %93 = vector.load %arg5[%c0_32, %c0_33] : memref<1x80xf32, #tpu.memory_space<vmem>>, vector<1x80xf32>
    %c0_34 = arith.constant 0 : index
    %c0_35 = arith.constant 0 : index
    %94 = vector.load %arg4[%c0_34, %c0_35] : memref<420x160xf32, #tpu.memory_space<vmem>>, vector<84x160xf32>
    %95 = vector.extract_strided_slice %81 {offsets = [0, 0], sizes = [5, 84], strides = [1, 1]} : vector<7x84xf32> to vector<5x84xf32>
    %cst_36 = arith.constant dense<0.000000e+00> : vector<5x160xf32>
    %96 = tpu.matmul %95, %94, %cst_36 {dimension_numbers = #tpu.dot_dimension_numbers<[1], [0], [0], [1], [0, 0, 1, 1], [], []>} : vector<5x84xf32>, vector<84x160xf32>, vector<5x160xf32> -> vector<5x160xf32>
    %97 = vector.extract_strided_slice %92 {offsets = [0, 0], sizes = [5, 84], strides = [1, 1]} : vector<7x84xf32> to vector<5x84xf32>
    %cst_37 = arith.constant dense<0.000000e+00> : vector<5x160xf32>
    %98 = tpu.matmul %97, %94, %cst_37 {dimension_numbers = #tpu.dot_dimension_numbers<[1], [0], [0], [1], [0, 0, 1, 1], [], []>} : vector<5x84xf32>, vector<84x160xf32>, vector<5x160xf32> -> vector<5x160xf32>
    %c84 = arith.constant 84 : index
    %c0_38 = arith.constant 0 : index
    %99 = vector.load %arg4[%c84, %c0_38] : memref<420x160xf32, #tpu.memory_space<vmem>>, vector<84x160xf32>
    %100 = vector.extract_strided_slice %92 {offsets = [0, 0], sizes = [5, 84], strides = [1, 1]} : vector<7x84xf32> to vector<5x84xf32>
    %cst_39 = arith.constant dense<0.000000e+00> : vector<5x160xf32>
    %101 = tpu.matmul %100, %99, %cst_39 {dimension_numbers = #tpu.dot_dimension_numbers<[1], [0], [0], [1], [0, 0, 1, 1], [], []>} : vector<5x84xf32>, vector<84x160xf32>, vector<5x160xf32> -> vector<5x160xf32>
    %102 = arith.addf %96, %101 : vector<5x160xf32>
    %103 = vector.extract_strided_slice %81 {offsets = [1, 0], sizes = [5, 84], strides = [1, 1]} : vector<7x84xf32> to vector<5x84xf32>
    %cst_40 = arith.constant dense<0.000000e+00> : vector<5x160xf32>
    %104 = tpu.matmul %103, %99, %cst_40 {dimension_numbers = #tpu.dot_dimension_numbers<[1], [0], [0], [1], [0, 0, 1, 1], [], []>} : vector<5x84xf32>, vector<84x160xf32>, vector<5x160xf32> -> vector<5x160xf32>
    %105 = arith.addf %98, %104 : vector<5x160xf32>
    %c168 = arith.constant 168 : index
    %c0_41 = arith.constant 0 : index
    %106 = vector.load %arg4[%c168, %c0_41] : memref<420x160xf32, #tpu.memory_space<vmem>>, vector<84x160xf32>
    %107 = vector.extract_strided_slice %81 {offsets = [1, 0], sizes = [5, 84], strides = [1, 1]} : vector<7x84xf32> to vector<5x84xf32>
    %cst_42 = arith.constant dense<0.000000e+00> : vector<5x160xf32>
    %108 = tpu.matmul %107, %106, %cst_42 {dimension_numbers = #tpu.dot_dimension_numbers<[1], [0], [0], [1], [0, 0, 1, 1], [], []>} : vector<5x84xf32>, vector<84x160xf32>, vector<5x160xf32> -> vector<5x160xf32>
    %109 = arith.addf %102, %108 : vector<5x160xf32>
    %110 = vector.extract_strided_slice %92 {offsets = [1, 0], sizes = [5, 84], strides = [1, 1]} : vector<7x84xf32> to vector<5x84xf32>
    %cst_43 = arith.constant dense<0.000000e+00> : vector<5x160xf32>
    %111 = tpu.matmul %110, %106, %cst_43 {dimension_numbers = #tpu.dot_dimension_numbers<[1], [0], [0], [1], [0, 0, 1, 1], [], []>} : vector<5x84xf32>, vector<84x160xf32>, vector<5x160xf32> -> vector<5x160xf32>
    %112 = arith.addf %105, %111 : vector<5x160xf32>
    %c252 = arith.constant 252 : index
    %c0_44 = arith.constant 0 : index
    %113 = vector.load %arg4[%c252, %c0_44] : memref<420x160xf32, #tpu.memory_space<vmem>>, vector<84x160xf32>
    %114 = vector.extract_strided_slice %92 {offsets = [1, 0], sizes = [5, 84], strides = [1, 1]} : vector<7x84xf32> to vector<5x84xf32>
    %cst_45 = arith.constant dense<0.000000e+00> : vector<5x160xf32>
    %115 = tpu.matmul %114, %113, %cst_45 {dimension_numbers = #tpu.dot_dimension_numbers<[1], [0], [0], [1], [0, 0, 1, 1], [], []>} : vector<5x84xf32>, vector<84x160xf32>, vector<5x160xf32> -> vector<5x160xf32>
    %116 = arith.addf %109, %115 : vector<5x160xf32>
    %117 = vector.extract_strided_slice %81 {offsets = [2, 0], sizes = [5, 84], strides = [1, 1]} : vector<7x84xf32> to vector<5x84xf32>
    %cst_46 = arith.constant dense<0.000000e+00> : vector<5x160xf32>
    %118 = tpu.matmul %117, %113, %cst_46 {dimension_numbers = #tpu.dot_dimension_numbers<[1], [0], [0], [1], [0, 0, 1, 1], [], []>} : vector<5x84xf32>, vector<84x160xf32>, vector<5x160xf32> -> vector<5x160xf32>
    %119 = arith.addf %112, %118 : vector<5x160xf32>
    %c336 = arith.constant 336 : index
    %c0_47 = arith.constant 0 : index
    %120 = vector.load %arg4[%c336, %c0_47] : memref<420x160xf32, #tpu.memory_space<vmem>>, vector<84x160xf32>
    %121 = vector.extract_strided_slice %81 {offsets = [2, 0], sizes = [5, 84], strides = [1, 1]} : vector<7x84xf32> to vector<5x84xf32>
    %cst_48 = arith.constant dense<0.000000e+00> : vector<5x160xf32>
    %122 = tpu.matmul %121, %120, %cst_48 {dimension_numbers = #tpu.dot_dimension_numbers<[1], [0], [0], [1], [0, 0, 1, 1], [], []>} : vector<5x84xf32>, vector<84x160xf32>, vector<5x160xf32> -> vector<5x160xf32>
    %123 = arith.addf %116, %122 : vector<5x160xf32>
    %124 = vector.extract_strided_slice %92 {offsets = [2, 0], sizes = [5, 84], strides = [1, 1]} : vector<7x84xf32> to vector<5x84xf32>
    %cst_49 = arith.constant dense<0.000000e+00> : vector<5x160xf32>
    %125 = tpu.matmul %124, %120, %cst_49 {dimension_numbers = #tpu.dot_dimension_numbers<[1], [0], [0], [1], [0, 0, 1, 1], [], []>} : vector<5x84xf32>, vector<84x160xf32>, vector<5x160xf32> -> vector<5x160xf32>
    %126 = arith.addf %119, %125 : vector<5x160xf32>
    %127 = vector.extract_strided_slice %123 {offsets = [0, 0], sizes = [5, 80], strides = [1, 1]} : vector<5x160xf32> to vector<5x80xf32>
    %128 = vector.extract_strided_slice %123 {offsets = [0, 80], sizes = [5, 80], strides = [1, 1]} : vector<5x160xf32> to vector<5x80xf32>
    %129 = arith.maximumf %127, %128 : vector<5x80xf32>
    %130 = vector.extract_strided_slice %126 {offsets = [0, 0], sizes = [5, 80], strides = [1, 1]} : vector<5x160xf32> to vector<5x80xf32>
    %131 = vector.extract_strided_slice %126 {offsets = [0, 80], sizes = [5, 80], strides = [1, 1]} : vector<5x160xf32> to vector<5x80xf32>
    %132 = arith.maximumf %130, %131 : vector<5x80xf32>
    %133 = arith.maximumf %129, %132 : vector<5x80xf32>
    %134 = vector.broadcast %93 : vector<1x80xf32> to vector<5x80xf32>
    %135 = arith.addf %133, %134 : vector<5x80xf32>
    %cst_50 = arith.constant 0.000000e+00 : f32
    %136 = vector.broadcast %cst_50 : f32 to vector<5x80xf32>
    %137 = arith.maximumf %135, %136 : vector<5x80xf32>
    %c0_51 = arith.constant 0 : index
    %c0_52 = arith.constant 0 : index
    %138 = vector.load %arg7[%c0_51, %c0_52] : memref<1x120xf32, #tpu.memory_space<vmem>>, vector<1x120xf32>
    %139 = vector.extract_strided_slice %137 {offsets = [0, 0], sizes = [1, 80], strides = [1, 1]} : vector<5x80xf32> to vector<1x80xf32>
    %c0_53 = arith.constant 0 : index
    %c0_54 = arith.constant 0 : index
    %140 = vector.load %arg6[%c0_53, %c0_54] : memref<400x120xf32, #tpu.memory_space<vmem>>, vector<80x120xf32>
    %cst_55 = arith.constant dense<0.000000e+00> : vector<1x120xf32>
    %141 = tpu.matmul %139, %140, %cst_55 {dimension_numbers = #tpu.dot_dimension_numbers<[1], [0], [0], [1], [0, 0, 1, 1], [], []>} : vector<1x80xf32>, vector<80x120xf32>, vector<1x120xf32> -> vector<1x120xf32>
    %142 = arith.addf %138, %141 : vector<1x120xf32>
    %143 = vector.extract_strided_slice %137 {offsets = [1, 0], sizes = [1, 80], strides = [1, 1]} : vector<5x80xf32> to vector<1x80xf32>
    %c80 = arith.constant 80 : index
    %c0_56 = arith.constant 0 : index
    %144 = vector.load %arg6[%c80, %c0_56] : memref<400x120xf32, #tpu.memory_space<vmem>>, vector<80x120xf32>
    %cst_57 = arith.constant dense<0.000000e+00> : vector<1x120xf32>
    %145 = tpu.matmul %143, %144, %cst_57 {dimension_numbers = #tpu.dot_dimension_numbers<[1], [0], [0], [1], [0, 0, 1, 1], [], []>} : vector<1x80xf32>, vector<80x120xf32>, vector<1x120xf32> -> vector<1x120xf32>
    %146 = arith.addf %142, %145 : vector<1x120xf32>
    %147 = vector.extract_strided_slice %137 {offsets = [2, 0], sizes = [1, 80], strides = [1, 1]} : vector<5x80xf32> to vector<1x80xf32>
    %c160 = arith.constant 160 : index
    %c0_58 = arith.constant 0 : index
    %148 = vector.load %arg6[%c160, %c0_58] : memref<400x120xf32, #tpu.memory_space<vmem>>, vector<80x120xf32>
    %cst_59 = arith.constant dense<0.000000e+00> : vector<1x120xf32>
    %149 = tpu.matmul %147, %148, %cst_59 {dimension_numbers = #tpu.dot_dimension_numbers<[1], [0], [0], [1], [0, 0, 1, 1], [], []>} : vector<1x80xf32>, vector<80x120xf32>, vector<1x120xf32> -> vector<1x120xf32>
    %150 = arith.addf %146, %149 : vector<1x120xf32>
    %151 = vector.extract_strided_slice %137 {offsets = [3, 0], sizes = [1, 80], strides = [1, 1]} : vector<5x80xf32> to vector<1x80xf32>
    %c240 = arith.constant 240 : index
    %c0_60 = arith.constant 0 : index
    %152 = vector.load %arg6[%c240, %c0_60] : memref<400x120xf32, #tpu.memory_space<vmem>>, vector<80x120xf32>
    %cst_61 = arith.constant dense<0.000000e+00> : vector<1x120xf32>
    %153 = tpu.matmul %151, %152, %cst_61 {dimension_numbers = #tpu.dot_dimension_numbers<[1], [0], [0], [1], [0, 0, 1, 1], [], []>} : vector<1x80xf32>, vector<80x120xf32>, vector<1x120xf32> -> vector<1x120xf32>
    %154 = arith.addf %150, %153 : vector<1x120xf32>
    %155 = vector.extract_strided_slice %137 {offsets = [4, 0], sizes = [1, 80], strides = [1, 1]} : vector<5x80xf32> to vector<1x80xf32>
    %c320 = arith.constant 320 : index
    %c0_62 = arith.constant 0 : index
    %156 = vector.load %arg6[%c320, %c0_62] : memref<400x120xf32, #tpu.memory_space<vmem>>, vector<80x120xf32>
    %cst_63 = arith.constant dense<0.000000e+00> : vector<1x120xf32>
    %157 = tpu.matmul %155, %156, %cst_63 {dimension_numbers = #tpu.dot_dimension_numbers<[1], [0], [0], [1], [0, 0, 1, 1], [], []>} : vector<1x80xf32>, vector<80x120xf32>, vector<1x120xf32> -> vector<1x120xf32>
    %158 = arith.addf %154, %157 : vector<1x120xf32>
    %cst_64 = arith.constant 0.000000e+00 : f32
    %159 = vector.broadcast %cst_64 : f32 to vector<1x120xf32>
    %160 = arith.maximumf %158, %159 : vector<1x120xf32>
    %c0_65 = arith.constant 0 : index
    %c0_66 = arith.constant 0 : index
    %161 = vector.load %arg8[%c0_65, %c0_66] : memref<120x84xf32, #tpu.memory_space<vmem>>, vector<120x84xf32>
    %cst_67 = arith.constant dense<0.000000e+00> : vector<1x84xf32>
    %162 = tpu.matmul %160, %161, %cst_67 {dimension_numbers = #tpu.dot_dimension_numbers<[1], [0], [0], [1], [0, 0, 1, 1], [], []>} : vector<1x120xf32>, vector<120x84xf32>, vector<1x84xf32> -> vector<1x84xf32>
    %c0_68 = arith.constant 0 : index
    %c0_69 = arith.constant 0 : index
    %163 = vector.load %arg9[%c0_68, %c0_69] : memref<1x84xf32, #tpu.memory_space<vmem>>, vector<1x84xf32>
    %164 = arith.addf %162, %163 : vector<1x84xf32>
    %cst_70 = arith.constant 0.000000e+00 : f32
    %165 = vector.broadcast %cst_70 : f32 to vector<1x84xf32>
    %166 = arith.maximumf %164, %165 : vector<1x84xf32>
    %c0_71 = arith.constant 0 : index
    %c0_72 = arith.constant 0 : index
    %167 = vector.load %arg10[%c0_71, %c0_72] : memref<84x10xf32, #tpu.memory_space<vmem>>, vector<84x10xf32>
    %cst_73 = arith.constant dense<0.000000e+00> : vector<1x10xf32>
    %168 = tpu.matmul %166, %167, %cst_73 {dimension_numbers = #tpu.dot_dimension_numbers<[1], [0], [0], [1], [0, 0, 1, 1], [], []>} : vector<1x84xf32>, vector<84x10xf32>, vector<1x10xf32> -> vector<1x10xf32>
    %c0_74 = arith.constant 0 : index
    %c0_75 = arith.constant 0 : index
    %169 = vector.load %arg11[%c0_74, %c0_75] : memref<1x10xf32, #tpu.memory_space<vmem>>, vector<1x10xf32>
    %170 = arith.addf %168, %169 : vector<1x10xf32>
    %171 = vector.shape_cast %170 : vector<1x10xf32> to vector<1x1x10xf32>
    %c0_76 = arith.constant 0 : index
    %c0_77 = arith.constant 0 : index
    %c0_78 = arith.constant 0 : index
    %172 = vector.load %arg12[%c0_76, %c0_77, %c0_78] : memref<1x1x10xf32, #tpu.memory_space<vmem>>, vector<1x1x10xf32>
    tpu.vector_store %arg12[%c0_76, %c0_77, %c0_78], %171 {strides = array<i32>} : memref<1x1x10xf32, #tpu.memory_space<vmem>>, vector<1x1x10xf32>,
    return
  }
  func.func @transform_0(%arg0: i32) -> (i32, i32, i32, i32) {
    %c0_i32 = arith.constant 0 : i32
    %c0_i32_0 = arith.constant 0 : i32
    %c0_i32_1 = arith.constant 0 : i32
    %c0_i32_2 = arith.constant 0 : i32
    return %arg0, %c0_i32, %c0_i32_0, %c0_i32_1 : i32, i32, i32, i32
  }
  func.func @transform_1(%arg0: i32) -> (i32, i32) {
    %c0_i32 = arith.constant 0 : i32
    %c0_i32_0 = arith.constant 0 : i32
    %c0_i32_1 = arith.constant 0 : i32
    return %c0_i32, %c0_i32_0 : i32, i32
  }
  func.func @transform_2(%arg0: i32) -> (i32, i32) {
    %c0_i32 = arith.constant 0 : i32
    %c0_i32_0 = arith.constant 0 : i32
    %c0_i32_1 = arith.constant 0 : i32
    return %c0_i32, %c0_i32_0 : i32, i32
  }
  func.func @transform_3(%arg0: i32) -> (i32, i32) {
    %c0_i32 = arith.constant 0 : i32
    %c0_i32_0 = arith.constant 0 : i32
    %c0_i32_1 = arith.constant 0 : i32
    return %c0_i32, %c0_i32_0 : i32, i32
  }
  func.func @transform_4(%arg0: i32) -> (i32, i32) {
    %c0_i32 = arith.constant 0 : i32
    %c0_i32_0 = arith.constant 0 : i32
    %c0_i32_1 = arith.constant 0 : i32
    return %c0_i32, %c0_i32_0 : i32, i32
  }
  func.func @transform_5(%arg0: i32) -> (i32, i32) {
    %c0_i32 = arith.constant 0 : i32
    %c0_i32_0 = arith.constant 0 : i32
    %c0_i32_1 = arith.constant 0 : i32
    return %c0_i32, %c0_i32_0 : i32, i32
  }
  func.func @transform_6(%arg0: i32) -> (i32, i32) {
    %c0_i32 = arith.constant 0 : i32
    %c0_i32_0 = arith.constant 0 : i32
    %c0_i32_1 = arith.constant 0 : i32
    return %c0_i32, %c0_i32_0 : i32, i32
  }
  func.func @transform_7(%arg0: i32) -> (i32, i32) {
    %c0_i32 = arith.constant 0 : i32
    %c0_i32_0 = arith.constant 0 : i32
    %c0_i32_1 = arith.constant 0 : i32
    return %c0_i32, %c0_i32_0 : i32, i32
  }
  func.func @transform_8(%arg0: i32) -> (i32, i32) {
    %c0_i32 = arith.constant 0 : i32
    %c0_i32_0 = arith.constant 0 : i32
    %c0_i32_1 = arith.constant 0 : i32
    return %c0_i32, %c0_i32_0 : i32, i32
  }
  func.func @transform_9(%arg0: i32) -> (i32, i32) {
    %c0_i32 = arith.constant 0 : i32
    %c0_i32_0 = arith.constant 0 : i32
    %c0_i32_1 = arith.constant 0 : i32
    return %c0_i32, %c0_i32_0 : i32, i32
  }
  func.func @transform_10(%arg0: i32) -> (i32, i32) {
    %c0_i32 = arith.constant 0 : i32
    %c0_i32_0 = arith.constant 0 : i32
    %c0_i32_1 = arith.constant 0 : i32
    return %c0_i32, %c0_i32_0 : i32, i32
  }
  func.func @transform_11(%arg0: i32) -> (i32, i32, i32) {
    %c0_i32 = arith.constant 0 : i32
    %c0_i32_0 = arith.constant 0 : i32
    %c0_i32_1 = arith.constant 0 : i32
    return %arg0, %c0_i32, %c0_i32_0 : i32, i32, i32
  }
}

</mosaic_0001>

<llo_original>
// kernel: net_forward.1
$region0: #{net_forward.1}
  #allocation0 [shape = 'u32[]', space=smem, size = 0x4, offset = 0x4, fixed_abs, tag = 'smem constant byte address 0x4 - core index']
  #allocation1 [shape = 'u32[144,128]{1,0:T(1,128)}', space=vmem, size = 0x12000, scoped, tag = 'internal scratch']
  %s0 = inlined_call_operand.vmem [shape: f32[2,4,8,96], index: 0, kind: input, shape index: {}]
  %s1 = inlined_call_operand.vmem [shape: f32[480,168], index: 1, kind: input, shape index: {}]
  %s2 = inlined_call_operand.vmem [shape: f32[1,84], index: 2, kind: input, shape index: {}]
  %s3 = inlined_call_operand.vmem [shape: f32[420,160], index: 3, kind: input, shape index: {}]
  %s4 = inlined_call_operand.vmem [shape: f32[1,80], index: 4, kind: input, shape index: {}]
  %s5 = inlined_call_operand.vmem [shape: f32[400,120], index: 5, kind: input, shape index: {}]
  %s6 = inlined_call_operand.vmem [shape: f32[1,120], index: 6, kind: input, shape index: {}]
  %s7 = inlined_call_operand.vmem [shape: f32[120,84], index: 7, kind: input, shape index: {}]
  %s8 = inlined_call_operand.vmem [shape: f32[1,84], index: 8, kind: input, shape index: {}]
  %s9 = inlined_call_operand.vmem [shape: f32[84,10], index: 9, kind: input, shape index: {}]
  %s10 = inlined_call_operand.vmem [shape: f32[1,10], index: 10, kind: input, shape index: {}]
  %s11 = inlined_call_operand.hbm [shape: f32[2,1,10], index: 11, kind: output, shape index: {}]
  %s12 = sld [smem:[#allocation0]]
  $region77: #{net_forward.1} parent=0
    _
  %s14 = ssub.s32 1, %s12
  %s15 = scalar_select 0, %s14, %s12
  $region1: #{net_forward.1} parent=0
    #allocation2 [shape = 'u8[1024]{0}', space=vmem, size = 0x400, scoped, tag = 'output window, operand 0']
    #allocation3 [shape = 's32[2]{0}', space=sflag, size = 0x8, scoped, tag = 'scoped memory for net_forward.1']
    %16 = vsyncpa [#allocation3], 0
    %s17 = scalar_lea.sflag [#allocation3], 1
    %18 = vsyncpa %s17, 0
    loop: start=0, step=1, limit=4
    $region2: #{net_forward.1} parent=1 // loop_pre_header
      _
    $region3: #{net_forward.1} parent=1 // loop_header
      %s20 = sphi 0, %s24
      %p21 = scmp.ge.s32.totalorder %s20, 4
      %s30 = sphi 0, %s32
      %s33 = sphi 0, %s30
      %s34 = sphi 0, %s33
      %s50 = sphi 0, %s34
      %s54 = sphi 0, %s54
      %s56 = sphi 0, %s54
      %s57 = sphi 0, %s56
      %s71 = sphi 0, %s57
      %s75 = sphi 0, %s75
      %s77 = sphi 0, %s75
      %s78 = sphi 0, %s77
      %s92 = sphi 0, %s78
      %s96 = sphi 0, %s96
      %s98 = sphi 0, %s96
      %s99 = sphi 0, %s98
      %s113 = sphi 0, %s99
      %s117 = sphi 0, %s117
      %s119 = sphi 0, %s117
      %s120 = sphi 0, %s119
      %s134 = sphi 0, %s120
      %s138 = sphi 0, %s138
      %s140 = sphi 0, %s138
      %s141 = sphi 0, %s140
      %s155 = sphi 0, %s141
      %s159 = sphi 0, %s159
      %s161 = sphi 0, %s159
      %s162 = sphi 0, %s161
      %s176 = sphi 0, %s162
      %s180 = sphi 0, %s180
      %s182 = sphi 0, %s180
      %s183 = sphi 0, %s182
      %s197 = sphi 0, %s183
      %s201 = sphi 0, %s201
      %s203 = sphi 0, %s201
      %s204 = sphi 0, %s203
      %s218 = sphi 0, %s204
      %s222 = sphi 0, %s222
      %s224 = sphi 0, %s222
      %s225 = sphi 0, %s224
      %s239 = sphi 0, %s225
      %s243 = sphi 0, %s243
      %s245 = sphi 0, %s243
      %s246 = sphi 0, %s245
      %s260 = sphi 0, %s246
      %s266 = sphi 0, %s268
      %s269 = sphi 0, %s266
      %s270 = sphi 0, %s269
      %s286 = sphi 0, %s270
    $region4: #{net_forward.1} parent=1 // loop_header_branch
      %23 = sbr.rel (%p21) target = $region8
    $region5: #{net_forward.1} parent=1 // loop_body
      %s25 = ssub.s32 %s20, 1
      %s26 = ssub.s32 %s20, 2
      %s27 = sadd.s32 %s20, 1
      %s28 = ssub.s32 %s20, %s27
      %p29 = scmp.eq.s32.totalorder %s28, 0
      %s31 = sadd.s32 %s30, 1
      %s32 = scalar_select %p29, %s30, %s31
      %p35 = pneg %p29
      %p36 = scmp.eq.s32.totalorder %s20, 1
      %p37 = por %p35, %p36
      %p38 = scmp.ne.s32.totalorder %s30, %s33
      %p39 = scmp.eq.s32.totalorder %s20, 0
      %p40 = por %p38, %p39
      %p41 = scmp.ne.s32.totalorder %s30, %s33
      %p42 = scmp.eq.s32.totalorder %s25, 1
      %p43 = por %p41, %p42
      %p44 = scmp.ne.s32.totalorder %s33, %s34
      %p45 = scmp.eq.s32.totalorder %s25, 0
      %p46 = por %p44, %p45
      %p47 = scmp.ne.s32.totalorder %s33, %s34
      %p48 = scmp.eq.s32.totalorder %s26, 1
      %p49 = por %p47, %p48
      %p51 = scmp.ne.s32.totalorder %s34, %s50
      %p52 = scmp.eq.s32.totalorder %s26, 0
      %p53 = por %p51, %p52
      %s55 = sadd.s32 %s54, 1
      %p58 = scmp.eq.s32.totalorder %s20, 1
      %p59 = scmp.ne.s32.totalorder %s54, %s56
      %p60 = scmp.eq.s32.totalorder %s20, 0
      %p61 = por %p59, %p60
      %p62 = scmp.ne.s32.totalorder %s54, %s56
      %p63 = scmp.eq.s32.totalorder %s25, 1
      %p64 = por %p62, %p63
      %p65 = scmp.ne.s32.totalorder %s56, %s57
      %p66 = scmp.eq.s32.totalorder %s25, 0
      %p67 = por %p65, %p66
      %p68 = scmp.ne.s32.totalorder %s56, %s57
      %p69 = scmp.eq.s32.totalorder %s26, 1
      %p70 = por %p68, %p69
      %p72 = scmp.ne.s32.totalorder %s57, %s71
      %p73 = scmp.eq.s32.totalorder %s26, 0
      %p74 = por %p72, %p73
      %s76 = sadd.s32 %s75, 1
      %p79 = scmp.eq.s32.totalorder %s20, 1
      %p80 = scmp.ne.s32.totalorder %s75, %s77
      %p81 = scmp.eq.s32.totalorder %s20, 0
      %p82 = por %p80, %p81
      %p83 = scmp.ne.s32.totalorder %s75, %s77
      %p84 = scmp.eq.s32.totalorder %s25, 1
      %p85 = por %p83, %p84
      %p86 = scmp.ne.s32.totalorder %s77, %s78
      %p87 = scmp.eq.s32.totalorder %s25, 0
      %p88 = por %p86, %p87
      %p89 = scmp.ne.s32.totalorder %s77, %s78
      %p90 = scmp.eq.s32.totalorder %s26, 1
      %p91 = por %p89, %p90
      %p93 = scmp.ne.s32.totalorder %s78, %s92
      %p94 = scmp.eq.s32.totalorder %s26, 0
      %p95 = por %p93, %p94
      %s97 = sadd.s32 %s96, 1
      %p100 = scmp.eq.s32.totalorder %s20, 1
      %p101 = scmp.ne.s32.totalorder %s96, %s98
      %p102 = scmp.eq.s32.totalorder %s20, 0
      %p103 = por %p101, %p102
      %p104 = scmp.ne.s32.totalorder %s96, %s98
      %p105 = scmp.eq.s32.totalorder %s25, 1
      %p106 = por %p104, %p105
      %p107 = scmp.ne.s32.totalorder %s98, %s99
      %p108 = scmp.eq.s32.totalorder %s25, 0
      %p109 = por %p107, %p108
      %p110 = scmp.ne.s32.totalorder %s98, %s99
      %p111 = scmp.eq.s32.totalorder %s26, 1
      %p112 = por %p110, %p111
      %p114 = scmp.ne.s32.totalorder %s99, %s113
      %p115 = scmp.eq.s32.totalorder %s26, 0
      %p116 = por %p114, %p115
      %s118 = sadd.s32 %s117, 1
      %p121 = scmp.eq.s32.totalorder %s20, 1
      %p122 = scmp.ne.s32.totalorder %s117, %s119
      %p123 = scmp.eq.s32.totalorder %s20, 0
      %p124 = por %p122, %p123
      %p125 = scmp.ne.s32.totalorder %s117, %s119
      %p126 = scmp.eq.s32.totalorder %s25, 1
      %p127 = por %p125, %p126
      %p128 = scmp.ne.s32.totalorder %s119, %s120
      %p129 = scmp.eq.s32.totalorder %s25, 0
      %p130 = por %p128, %p129
      %p131 = scmp.ne.s32.totalorder %s119, %s120
      %p132 = scmp.eq.s32.totalorder %s26, 1
      %p133 = por %p131, %p132
      %p135 = scmp.ne.s32.totalorder %s120, %s134
      %p136 = scmp.eq.s32.totalorder %s26, 0
      %p137 = por %p135, %p136
      %s139 = sadd.s32 %s138, 1
      %p142 = scmp.eq.s32.totalorder %s20, 1
      %p143 = scmp.ne.s32.totalorder %s138, %s140
      %p144 = scmp.eq.s32.totalorder %s20, 0
      %p145 = por %p143, %p144
      %p146 = scmp.ne.s32.totalorder %s138, %s140
      %p147 = scmp.eq.s32.totalorder %s25, 1
      %p148 = por %p146, %p147
      %p149 = scmp.ne.s32.totalorder %s140, %s141
      %p150 = scmp.eq.s32.totalorder %s25, 0
      %p151 = por %p149, %p150
      %p152 = scmp.ne.s32.totalorder %s140, %s141
      %p153 = scmp.eq.s32.totalorder %s26, 1
      %p154 = por %p152, %p153
      %p156 = scmp.ne.s32.totalorder %s141, %s155
      %p157 = scmp.eq.s32.totalorder %s26, 0
      %p158 = por %p156, %p157
      %s160 = sadd.s32 %s159, 1
      %p163 = scmp.eq.s32.totalorder %s20, 1
      %p164 = scmp.ne.s32.totalorder %s159, %s161
      %p165 = scmp.eq.s32.totalorder %s20, 0
      %p166 = por %p164, %p165
      %p167 = scmp.ne.s32.totalorder %s159, %s161
      %p168 = scmp.eq.s32.totalorder %s25, 1
      %p169 = por %p167, %p168
      %p170 = scmp.ne.s32.totalorder %s161, %s162
      %p171 = scmp.eq.s32.totalorder %s25, 0
      %p172 = por %p170, %p171
      %p173 = scmp.ne.s32.totalorder %s161, %s162
      %p174 = scmp.eq.s32.totalorder %s26, 1
      %p175 = por %p173, %p174
      %p177 = scmp.ne.s32.totalorder %s162, %s176
      %p178 = scmp.eq.s32.totalorder %s26, 0
      %p179 = por %p177, %p178
      %s181 = sadd.s32 %s180, 1
      %p184 = scmp.eq.s32.totalorder %s20, 1
      %p185 = scmp.ne.s32.totalorder %s180, %s182
      %p186 = scmp.eq.s32.totalorder %s20, 0
      %p187 = por %p185, %p186
      %p188 = scmp.ne.s32.totalorder %s180, %s182
      %p189 = scmp.eq.s32.totalorder %s25, 1
      %p190 = por %p188, %p189
      %p191 = scmp.ne.s32.totalorder %s182, %s183
      %p192 = scmp.eq.s32.totalorder %s25, 0
      %p193 = por %p191, %p192
      %p194 = scmp.ne.s32.totalorder %s182, %s183
      %p195 = scmp.eq.s32.totalorder %s26, 1
      %p196 = por %p194, %p195
      %p198 = scmp.ne.s32.totalorder %s183, %s197
      %p199 = scmp.eq.s32.totalorder %s26, 0
      %p200 = por %p198, %p199
      %s202 = sadd.s32 %s201, 1
      %p205 = scmp.eq.s32.totalorder %s20, 1
      %p206 = scmp.ne.s32.totalorder %s201, %s203
      %p207 = scmp.eq.s32.totalorder %s20, 0
      %p208 = por %p206, %p207
      %p209 = scmp.ne.s32.totalorder %s201, %s203
      %p210 = scmp.eq.s32.totalorder %s25, 1
      %p211 = por %p209, %p210
      %p212 = scmp.ne.s32.totalorder %s203, %s204
      %p213 = scmp.eq.s32.totalorder %s25, 0
      %p214 = por %p212, %p213
      %p215 = scmp.ne.s32.totalorder %s203, %s204
      %p216 = scmp.eq.s32.totalorder %s26, 1
      %p217 = por %p215, %p216
      %p219 = scmp.ne.s32.totalorder %s204, %s218
      %p220 = scmp.eq.s32.totalorder %s26, 0
      %p221 = por %p219, %p220
      %s223 = sadd.s32 %s222, 1
      %p226 = scmp.eq.s32.totalorder %s20, 1
      %p227 = scmp.ne.s32.totalorder %s222, %s224
      %p228 = scmp.eq.s32.totalorder %s20, 0
      %p229 = por %p227, %p228
      %p230 = scmp.ne.s32.totalorder %s222, %s224
      %p231 = scmp.eq.s32.totalorder %s25, 1
      %p232 = por %p230, %p231
      %p233 = scmp.ne.s32.totalorder %s224, %s225
      %p234 = scmp.eq.s32.totalorder %s25, 0
      %p235 = por %p233, %p234
      %p236 = scmp.ne.s32.totalorder %s224, %s225
      %p237 = scmp.eq.s32.totalorder %s26, 1
      %p238 = por %p236, %p237
      %p240 = scmp.ne.s32.totalorder %s225, %s239
      %p241 = scmp.eq.s32.totalorder %s26, 0
      %p242 = por %p240, %p241
      %s244 = sadd.s32 %s243, 1
      %p247 = scmp.eq.s32.totalorder %s20, 1
      %p248 = scmp.ne.s32.totalorder %s243, %s245
      %p249 = scmp.eq.s32.totalorder %s20, 0
      %p250 = por %p248, %p249
      %p251 = scmp.ne.s32.totalorder %s243, %s245
      %p252 = scmp.eq.s32.totalorder %s25, 1
      %p253 = por %p251, %p252
      %p254 = scmp.ne.s32.totalorder %s245, %s246
      %p255 = scmp.eq.s32.totalorder %s25, 0
      %p256 = por %p254, %p255
      %p257 = scmp.ne.s32.totalorder %s245, %s246
      %p258 = scmp.eq.s32.totalorder %s26, 1
      %p259 = por %p257, %p258
      %p261 = scmp.ne.s32.totalorder %s246, %s260
      %p262 = scmp.eq.s32.totalorder %s26, 0
      %p263 = por %p261, %p262
      %s264 = ssub.s32 %s20, %s27
      %p265 = scmp.eq.s32.totalorder %s264, 0
      %s267 = sadd.s32 %s266, 1
      %s268 = scalar_select %p265, %s266, %s267
      %p271 = pneg %p265
      %p272 = scmp.eq.s32.totalorder %s20, 1
      %p273 = por %p271, %p272
      %p274 = scmp.ne.s32.totalorder %s266, %s269
      %p275 = scmp.eq.s32.totalorder %s20, 0
      %p276 = por %p274, %p275
      %p277 = scmp.ne.s32.totalorder %s266, %s269
      %p278 = scmp.eq.s32.totalorder %s25, 1
      %p279 = por %p277, %p278
      %p280 = scmp.ne.s32.totalorder %s269, %s270
      %p281 = scmp.eq.s32.totalorder %s25, 0
      %p282 = por %p280, %p281
      %p283 = scmp.ne.s32.totalorder %s269, %s270
      %p284 = scmp.eq.s32.totalorder %s26, 1
      %p285 = por %p283, %p284
      %p287 = scmp.ne.s32.totalorder %s270, %s286
      %p288 = scmp.eq.s32.totalorder %s26, 0
      %p289 = por %p287, %p288
      %p290 = scmp.le.s32.totalorder 1, %s20
      %p291 = scmp.lt.s32.totalorder %s20, 3
      %p292 = pnand %p290, %p291
      %p293 = pneg %p292
      // Predicated region
      $region9: #{net_forward.1} parent=5 // pred_check
        _
      $region10: #{net_forward.1} parent=5 // pred_check_branch
        %295 = sbr.rel (%p292) target = $region12
      $region11: #{net_forward.1} parent=5 // pred_region
        %s296 = ssub.s32 %s20, 1
        // Predicated region
        $region13: #{net_forward.1} parent=11 // pred_check
          %p297 = pneg %p67
        $region14: #{net_forward.1} parent=11 // pred_check_branch
          %299 = sbr.rel (%p297) target = $region16
        $region15: #{net_forward.1} parent=11 // pred_region
          _
        $region16: #{net_forward.1} parent=11 // pred_fallthru
          _
        // Predicated region
        $region17: #{net_forward.1} parent=11 // pred_check
          %p300 = pneg %p88
        $region18: #{net_forward.1} parent=11 // pred_check_branch
          %302 = sbr.rel (%p300) target = $region20
        $region19: #{net_forward.1} parent=11 // pred_region
          _
        $region20: #{net_forward.1} parent=11 // pred_fallthru
          _
        // Predicated region
        $region21: #{net_forward.1} parent=11 // pred_check
          %p303 = pneg %p109
        $region22: #{net_forward.1} parent=11 // pred_check_branch
          %305 = sbr.rel (%p303) target = $region24
        $region23: #{net_forward.1} parent=11 // pred_region
          _
        $region24: #{net_forward.1} parent=11 // pred_fallthru
          _
        // Predicated region
        $region25: #{net_forward.1} parent=11 // pred_check
          %p306 = pneg %p130
        $region26: #{net_forward.1} parent=11 // pred_check_branch
          %308 = sbr.rel (%p306) target = $region28
        $region27: #{net_forward.1} parent=11 // pred_region
          _
        $region28: #{net_forward.1} parent=11 // pred_fallthru
          _
        // Predicated region
        $region29: #{net_forward.1} parent=11 // pred_check
          %p309 = pneg %p151
        $region30: #{net_forward.1} parent=11 // pred_check_branch
          %311 = sbr.rel (%p309) target = $region32
        $region31: #{net_forward.1} parent=11 // pred_region
          _
        $region32: #{net_forward.1} parent=11 // pred_fallthru
          _
        // Predicated region
        $region33: #{net_forward.1} parent=11 // pred_check
          %p312 = pneg %p172
        $region34: #{net_forward.1} parent=11 // pred_check_branch
          %314 = sbr.rel (%p312) target = $region36
        $region35: #{net_forward.1} parent=11 // pred_region
          _
        $region36: #{net_forward.1} parent=11 // pred_fallthru
          _
        // Predicated region
        $region37: #{net_forward.1} parent=11 // pred_check
          %p315 = pneg %p193
        $region38: #{net_forward.1} parent=11 // pred_check_branch
          %317 = sbr.rel (%p315) target = $region40
        $region39: #{net_forward.1} parent=11 // pred_region
          _
        $region40: #{net_forward.1} parent=11 // pred_fallthru
          _
        // Predicated region
        $region41: #{net_forward.1} parent=11 // pred_check
          %p318 = pneg %p214
        $region42: #{net_forward.1} parent=11 // pred_check_branch
          %320 = sbr.rel (%p318) target = $region44
        $region43: #{net_forward.1} parent=11 // pred_region
          _
        $region44: #{net_forward.1} parent=11 // pred_fallthru
          _
        // Predicated region
        $region45: #{net_forward.1} parent=11 // pred_check
          %p321 = pneg %p235
        $region46: #{net_forward.1} parent=11 // pred_check_branch
          %323 = sbr.rel (%p321) target = $region48
        $region47: #{net_forward.1} parent=11 // pred_region
          _
        $region48: #{net_forward.1} parent=11 // pred_fallthru
          _
        // Predicated region
        $region49: #{net_forward.1} parent=11 // pred_check
          %p324 = pneg %p256
        $region50: #{net_forward.1} parent=11 // pred_check_branch
          %326 = sbr.rel (%p324) target = $region52
        $region51: #{net_forward.1} parent=11 // pred_region
          _
        $region52: #{net_forward.1} parent=11 // pred_fallthru
          _
      $region12: #{net_forward.1} parent=5 // pred_fallthru
        _
      %p327 = scmp.lt.s32.totalorder %s20, 2
      // Predicated region
      $region53: #{net_forward.1} parent=5 // pred_check
        %p328 = pneg %p327
      $region54: #{net_forward.1} parent=5 // pred_check_branch
        %330 = sbr.rel (%p328) target = $region56
      $region55: #{net_forward.1} parent=5 // pred_region
        // Predicated region
        $region57: #{net_forward.1} parent=55 // pred_check
          %p331 = pneg %p40
        $region58: #{net_forward.1} parent=55 // pred_check_branch
          %333 = sbr.rel (%p331) target = $region60
        $region59: #{net_forward.1} parent=55 // pred_region
          %p334 = scmp.lt.s32.totalorder %s20, 1
          %s335 = scalar_select %p334, %s20, 1
          %s336 = smul.addr %s335, 4
          %s337 = smul.addr %s336, 8
          %s338 = scalar_lea.vmem %s0, %s337
        $region60: #{net_forward.1} parent=55 // pred_fallthru
          _
      $region56: #{net_forward.1} parent=5 // pred_fallthru
        _
      %p339 = scmp.le.s32.totalorder 1, %s20
      %p340 = scmp.lt.s32.totalorder %s20, 3
      %p341 = pnand %p339, %p340
      %p342 = pneg %p341
      // Predicated region
      $region61: #{net_forward.1} parent=5 // pred_check
        _
      $region62: #{net_forward.1} parent=5 // pred_check_branch
        %344 = sbr.rel (%p341) target = $region64
      $region63: #{net_forward.1} parent=5 // pred_region
        %s345 = ssub.s32 %s20, 1
        %p346 = scmp.lt.s32.totalorder %s25, 1
        %s347 = scalar_select %p346, %s25, 1
        %s348 = smul.addr %s347, 4
        %s349 = smul.addr %s348, 8
        %s350 = scalar_lea.vmem %s0, %s349
        %p351 = pneg %p46
        %p352 = pneg %p43
        %p353 = pneg %p67
        %p354 = pneg %p64
        %p355 = pneg %p88
        %p356 = pneg %p85
        %p357 = pneg %p109
        %p358 = pneg %p106
        %p359 = pneg %p130
        %p360 = pneg %p127
        %p361 = pneg %p151
        %p362 = pneg %p148
        %p363 = pneg %p172
        %p364 = pneg %p169
        %p365 = pneg %p193
        %p366 = pneg %p190
        %p367 = pneg %p214
        %p368 = pneg %p211
        %p369 = pneg %p235
        %p370 = pneg %p232
        %p371 = pneg %p256
        %p372 = pneg %p253
        %p373 = pneg %p282
        %p374 = pneg %p279
        %s375 = sand.u32 %s269, 1
        %s376 = scalar_lea.sflag [#allocation3], %s375
        %s377 = sand.u32 %s269, 1
        %s378 = scalar_lea.vmem [#allocation2], %s377
        %p379 = scmp.lt.s32.totalorder %s25, 1
        %s380 = scalar_select %p379, %s25, 1
        %s381 = smul.addr %s380, 4
        %s382 = smul.addr %s381, 8
        %s383 = scalar_lea.vmem %s0, %s382
        %v384 = vld [vmem:[%s383] sm:$0xff]
        %v385 = vld [vmem:[%s383 + $0x8] sm:$0xff]
        %v386 = vld [vmem:[%s383 + $0x10] sm:$0xff]
        %v387 = vld [vmem:[%s383 + $0x18] sm:$0xff]
        %v388 = vld [vmem:[%s2] sm:$0x1]
        %v389 = vld [vmem:[%s1] sm:$0xff]
        %v390 = vld [vmem:[%s1 + $0x8] sm:$0xff]
        %v391 = vld [vmem:[%s1 + $0x10] sm:$0xff]
        %v392 = vld [vmem:[%s1 + $0x18] sm:$0xff]
        %v393 = vld [vmem:[%s1 + $0x20] sm:$0xff]
        %v394 = vld [vmem:[%s1 + $0x28] sm:$0xff]
        %v395 = vld [vmem:[%s1 + $0x30] sm:$0xff]
        %v396 = vld [vmem:[%s1 + $0x38] sm:$0xff]
        %v397 = vld [vmem:[%s1 + $0x40] sm:$0xff]
        %v398 = vld [vmem:[%s1 + $0x48] sm:$0xff]
        %v399 = vld [vmem:[%s1 + $0x50] sm:$0xff]
        %v400 = vld [vmem:[%s1 + $0x58] sm:$0xff]
        %v401 = vld [vmem:[%s1 + $0x60] sm:$0xff]
        %v402 = vld [vmem:[%s1 + $0x68] sm:$0xff]
        %v403 = vld [vmem:[%s1 + $0x70] sm:$0xff]
        %v404 = vld [vmem:[%s1 + $0x78] sm:$0xff]
        %v405 = vld [vmem:[%s1 + $0x80] sm:$0xff]
        %v406 = vld [vmem:[%s1 + $0x88] sm:$0xff]
        %v407 = vld [vmem:[%s1 + $0x90] sm:$0xff]
        %v408 = vld [vmem:[%s1 + $0x98] sm:$0xff]
        %v409 = vld [vmem:[%s1 + $0xa0] sm:$0xff]
        %v410 = vld [vmem:[%s1 + $0xa8] sm:$0xff]
        %v411 = vld [vmem:[%s1 + $0xb0] sm:$0xff]
        %v412 = vld [vmem:[%s1 + $0xb8] sm:$0xff]
        %v413 = vld [vmem:[%s1 + $0xc0] sm:$0xff]
        %v414 = vld [vmem:[%s1 + $0xc8] sm:$0xff]
        %v415 = vld [vmem:[%s1 + $0xd0] sm:$0xff]
        %v416 = vld [vmem:[%s1 + $0xd8] sm:$0xff]
        %v417 = vld [vmem:[%s1 + $0xe0] sm:$0xff]
        %v418 = vld [vmem:[%s1 + $0xe8] sm:$0xff]
        %v419 = vld [vmem:[%s1 + $0xf0] sm:$0xff]
        %v420 = vld [vmem:[%s1 + $0xf8] sm:$0xff]
        %v421 = vld [vmem:[%s1 + $0x100] sm:$0xff]
        %v422 = vld [vmem:[%s1 + $0x108] sm:$0xff]
        %v423 = vld [vmem:[%s1 + $0x110] sm:$0xff]
        %v424 = vld [vmem:[%s1 + $0x118] sm:$0xff]
        %v425 = vld [vmem:[%s1 + $0x120] sm:$0xff]
        %v426 = vld [vmem:[%s1 + $0x128] sm:$0xff]
        %v427 = vld [vmem:[%s1 + $0x130] sm:$0xff]
        %v428 = vld [vmem:[%s1 + $0x138] sm:$0xff]
        %v429 = vld [vmem:[%s1 + $0x140] sm:$0xff]
        %v430 = vld [vmem:[%s1 + $0x148] sm:$0xff]
        %v431 = vld [vmem:[%s1 + $0x150] sm:$0xff]
        %v432 = vld [vmem:[%s1 + $0x158] sm:$0xff]
        %v433 = vld [vmem:[%s1 + $0x160] sm:$0xff]
        %v434 = vld [vmem:[%s1 + $0x168] sm:$0xff]
        %v435 = vld [vmem:[%s1 + $0x170] sm:$0xff]
        %v436 = vld [vmem:[%s1 + $0x178] sm:$0xff]
        %vm437 = vcmask 785408
        %v439 = vsel %vm437, %v385, 0
        %441 = vmatprep.subr.mxu0 %v414
        %442 = vmatpush1.msra.mxu0 %v413
        %443 = vmatprep.subr.mxu0 %v416
        %444 = vmatpush1.msra.mxu0 %v415
        %445 = vmatprep.subr.mxu0 %v418
        %446 = vmatpush1.msra.mxu0 %v417
        %447 = vmatprep.subr.mxu0 %v420
        %448 = vmatpush1.msra.mxu0 %v419
        %449 = vmatprep.subr.mxu0 %v422
        %450 = vmatpush1.msra.mxu0 %v421
        %451 = vmatprep.subr.mxu0 %v424
        %452 = vmatpush1.msra.mxu0 %v423
        %453 = vmatprep.subr.mxu0 %v426
        %454 = vmatpush1.msra.mxu0 %v425
        %455 = vmatprep.subr.mxu0 %v428
        %456 = vmatpush1.msra.mxu0 %v427
        %457 = vmatprep.subr.mxu0 %v430
        %458 = vmatpush1.msra.mxu0 %v429
        %459 = vmatprep.subr.mxu0 %v432
        %460 = vmatpush1.msra.mxu0 %v431
        %461 = vmatprep.subr.mxu0 %v434
        %462 = vmatpush1.msra.mxu0 %v433
        %463 = vmatprep.subr.mxu0 %v436
        %464 = vmatpush1.msra.mxu0 %v435
        %465 = vmatprep.subr.mxu0 0.0
        %466 = vmatpush1.msra.mxu0 0.0
        %467 = vmatprep.subr.mxu0 0.0
        %468 = vmatpush1.msra.mxu0 0.0
        %469 = vmatprep.subr.mxu0 0.0
        %470 = vmatpush1.msra.mxu0 0.0
        %471 = vmatprep.subr.mxu0 0.0
        %472 = vmatpush1.msra.mxu0 0.0
        %473 = vmatprep.subr.mxu0 0.0
        %474 = vmatpush1.msra.mxu0 0.0
        %475 = vmatprep.subr.mxu0 0.0
        %476 = vmatpush1.msra.mxu0 0.0
        %477 = vmatprep.subr.mxu0 0.0
        %478 = vmatpush1.msra.mxu0 0.0
        %479 = vmatprep.subr.mxu0 0.0
        %480 = vmatpush1.msra.mxu0 0.0
        %481 = vmatprep.subr.mxu0 0.0
        %482 = vmatpush1.msra.mxu0 0.0
        %483 = vmatprep.subr.mxu0 0.0
        %484 = vmatpush1.msra.mxu0 0.0
        %485 = vmatprep.subr.mxu0 0.0
        %486 = vmatpush1.msra.mxu0 0.0
        %487 = vmatprep.subr.mxu0 0.0
        %488 = vmatpush1.msra.mxu0 0.0
        %489 = vmatprep.subr.mxu0 0.0
        %490 = vmatpush1.msra.mxu0 0.0
        %491 = vmatprep.subr.mxu0 0.0
        %492 = vmatpush1.msra.mxu0 0.0
        %493 = vmatprep.subr.mxu0 0.0
        %494 = vmatpush1.msra.mxu0 0.0
        %495 = vmatprep.subr.mxu0 0.0
        %496 = vmatpush1.msra.mxu0 0.0
        %497 = vmatprep.subr.mxu0 0.0
        %498 = vmatpush1.msra.mxu0 0.0
        %499 = vmatprep.subr.mxu0 0.0
        %500 = vmatpush1.msra.mxu0 0.0
        %501 = vmatprep.subr.mxu0 0.0
        %502 = vmatpush1.msra.mxu0 0.0
        %503 = vmatprep.subr.mxu0 0.0
        %504 = vmatpush1.msra.mxu0 0.0
        %505 = vmatprep.mubr.f32.mxu0 0.0
        %506 = vmatmul.mubr.f32.gmra.mrb[0].mxu0 %v439
        %v507 = vpop.f32.mrb[0].mxu0
        %v508 = vadd.f32 0.0, %v507
        %v509 = vpop.f32.mrb[0].mxu0
        %v510 = vadd.f32 0.0, %v509
        %511 = vdwg.mxu0
        %v513 = vsel %vm437, %v384, 0
        %515 = vmatprep.subr.mxu0 %v390
        %516 = vmatpush1.msra.mxu0 %v389
        %517 = vmatprep.subr.mxu0 %v392
        %518 = vmatpush1.msra.mxu0 %v391
        %519 = vmatprep.subr.mxu0 %v394
        %520 = vmatpush1.msra.mxu0 %v393
        %521 = vmatprep.subr.mxu0 %v396
        %522 = vmatpush1.msra.mxu0 %v395
        %523 = vmatprep.subr.mxu0 %v398
        %524 = vmatpush1.msra.mxu0 %v397
        %525 = vmatprep.subr.mxu0 %v400
        %526 = vmatpush1.msra.mxu0 %v399
        %527 = vmatprep.subr.mxu0 %v402
        %528 = vmatpush1.msra.mxu0 %v401
        %529 = vmatprep.subr.mxu0 %v404
        %530 = vmatpush1.msra.mxu0 %v403
        %531 = vmatprep.subr.mxu0 %v406
        %532 = vmatpush1.msra.mxu0 %v405
        %533 = vmatprep.subr.mxu0 %v408
        %534 = vmatpush1.msra.mxu0 %v407
        %535 = vmatprep.subr.mxu0 %v410
        %536 = vmatpush1.msra.mxu0 %v409
        %537 = vmatprep.subr.mxu0 %v412
        %538 = vmatpush1.msra.mxu0 %v411
        %539 = vmatprep.subr.mxu0 0.0
        %540 = vmatpush1.msra.mxu0 0.0
        %541 = vmatprep.subr.mxu0 0.0
        %542 = vmatpush1.msra.mxu0 0.0
        %543 = vmatprep.subr.mxu0 0.0
        %544 = vmatpush1.msra.mxu0 0.0
        %545 = vmatprep.subr.mxu0 0.0
        %546 = vmatpush1.msra.mxu0 0.0
        %547 = vmatprep.subr.mxu0 0.0
        %548 = vmatpush1.msra.mxu0 0.0
        %549 = vmatprep.subr.mxu0 0.0
        %550 = vmatpush1.msra.mxu0 0.0
        %551 = vmatprep.subr.mxu0 0.0
        %552 = vmatpush1.msra.mxu0 0.0
        %553 = vmatprep.subr.mxu0 0.0
        %554 = vmatpush1.msra.mxu0 0.0
        %555 = vmatprep.subr.mxu0 0.0
        %556 = vmatpush1.msra.mxu0 0.0
        %557 = vmatprep.subr.mxu0 0.0
        %558 = vmatpush1.msra.mxu0 0.0
        %559 = vmatprep.subr.mxu0 0.0
        %560 = vmatpush1.msra.mxu0 0.0
        %561 = vmatprep.subr.mxu0 0.0
        %562 = vmatpush1.msra.mxu0 0.0
        %563 = vmatprep.subr.mxu0 0.0
        %564 = vmatpush1.msra.mxu0 0.0
        %565 = vmatprep.subr.mxu0 0.0
        %566 = vmatpush1.msra.mxu0 0.0
        %567 = vmatprep.subr.mxu0 0.0
        %568 = vmatpush1.msra.mxu0 0.0
        %569 = vmatprep.subr.mxu0 0.0
        %570 = vmatpush1.msra.mxu0 0.0
        %571 = vmatprep.subr.mxu0 0.0
        %572 = vmatpush1.msra.mxu0 0.0
        %573 = vmatprep.subr.mxu0 0.0
        %574 = vmatpush1.msra.mxu0 0.0
        %575 = vmatprep.subr.mxu0 0.0
        %576 = vmatpush1.msra.mxu0 0.0
        %577 = vmatprep.subr.mxu0 0.0
        %578 = vmatpush1.msra.mxu0 0.0
        %579 = vmatprep.mubr.f32.mxu0 0.0
        %580 = vmatmul.mubr.f32.gmra.mrb[0].mxu0 %v513
        %v581 = vpop.f32.mrb[0].mxu0
        %v582 = vadd.f32 %v508, %v581
        %v583 = vpop.f32.mrb[0].mxu0
        %v584 = vadd.f32 %v510, %v583
        %585 = vdwg.mxu0
        %v587 = vsel %vm437, %v386, 0
        %589 = vmatprep.subr.mxu0 %v414
        %590 = vmatpush1.msra.mxu0 %v413
        %591 = vmatprep.subr.mxu0 %v416
        %592 = vmatpush1.msra.mxu0 %v415
        %593 = vmatprep.subr.mxu0 %v418
        %594 = vmatpush1.msra.mxu0 %v417
        %595 = vmatprep.subr.mxu0 %v420
        %596 = vmatpush1.msra.mxu0 %v419
        %597 = vmatprep.subr.mxu0 %v422
        %598 = vmatpush1.msra.mxu0 %v421
        %599 = vmatprep.subr.mxu0 %v424
        %600 = vmatpush1.msra.mxu0 %v423
        %601 = vmatprep.subr.mxu0 %v426
        %602 = vmatpush1.msra.mxu0 %v425
        %603 = vmatprep.subr.mxu0 %v428
        %604 = vmatpush1.msra.mxu0 %v427
        %605 = vmatprep.subr.mxu0 %v430
        %606 = vmatpush1.msra.mxu0 %v429
        %607 = vmatprep.subr.mxu0 %v432
        %608 = vmatpush1.msra.mxu0 %v431
        %609 = vmatprep.subr.mxu0 %v434
        %610 = vmatpush1.msra.mxu0 %v433
        %611 = vmatprep.subr.mxu0 %v436
        %612 = vmatpush1.msra.mxu0 %v435
        %613 = vmatprep.subr.mxu0 0.0
        %614 = vmatpush1.msra.mxu0 0.0
        %615 = vmatprep.subr.mxu0 0.0
        %616 = vmatpush1.msra.mxu0 0.0
        %617 = vmatprep.subr.mxu0 0.0
        %618 = vmatpush1.msra.mxu0 0.0
        %619 = vmatprep.subr.mxu0 0.0
        %620 = vmatpush1.msra.mxu0 0.0
        %621 = vmatprep.subr.mxu0 0.0
        %622 = vmatpush1.msra.mxu0 0.0
        %623 = vmatprep.subr.mxu0 0.0
        %624 = vmatpush1.msra.mxu0 0.0
        %625 = vmatprep.subr.mxu0 0.0
        %626 = vmatpush1.msra.mxu0 0.0
        %627 = vmatprep.subr.mxu0 0.0
        %628 = vmatpush1.msra.mxu0 0.0
        %629 = vmatprep.subr.mxu0 0.0
        %630 = vmatpush1.msra.mxu0 0.0
        %631 = vmatprep.subr.mxu0 0.0
        %632 = vmatpush1.msra.mxu0 0.0
        %633 = vmatprep.subr.mxu0 0.0
        %634 = vmatpush1.msra.mxu0 0.0
        %635 = vmatprep.subr.mxu0 0.0
        %636 = vmatpush1.msra.mxu0 0.0
        %637 = vmatprep.subr.mxu0 0.0
        %638 = vmatpush1.msra.mxu0 0.0
        %639 = vmatprep.subr.mxu0 0.0
        %640 = vmatpush1.msra.mxu0 0.0
        %641 = vmatprep.subr.mxu0 0.0
        %642 = vmatpush1.msra.mxu0 0.0
        %643 = vmatprep.subr.mxu0 0.0
        %644 = vmatpush1.msra.mxu0 0.0
        %645 = vmatprep.subr.mxu0 0.0
        %646 = vmatpush1.msra.mxu0 0.0
        %647 = vmatprep.subr.mxu0 0.0
        %648 = vmatpush1.msra.mxu0 0.0
        %649 = vmatprep.subr.mxu0 0.0
        %650 = vmatpush1.msra.mxu0 0.0
        %651 = vmatprep.subr.mxu0 0.0
        %652 = vmatpush1.msra.mxu0 0.0
        %653 = vmatprep.mubr.f32.mxu0 0.0
        %654 = vmatmul.mubr.f32.gmra.mrb[0].mxu0 %v587
        %v655 = vpop.f32.mrb[0].mxu0
        %v656 = vadd.f32 0.0, %v655
        %v657 = vpop.f32.mrb[0].mxu0
        %v658 = vadd.f32 0.0, %v657
        %659 = vdwg.mxu0
        %660 = vmatprep.subr.mxu0 %v390
        %661 = vmatpush1.msra.mxu0 %v389
        %662 = vmatprep.subr.mxu0 %v392
        %663 = vmatpush1.msra.mxu0 %v391
        %664 = vmatprep.subr.mxu0 %v394
        %665 = vmatpush1.msra.mxu0 %v393
        %666 = vmatprep.subr.mxu0 %v396
        %667 = vmatpush1.msra.mxu0 %v395
        %668 = vmatprep.subr.mxu0 %v398
        %669 = vmatpush1.msra.mxu0 %v397
        %670 = vmatprep.subr.mxu0 %v400
        %671 = vmatpush1.msra.mxu0 %v399
        %672 = vmatprep.subr.mxu0 %v402
        %673 = vmatpush1.msra.mxu0 %v401
        %674 = vmatprep.subr.mxu0 %v404
        %675 = vmatpush1.msra.mxu0 %v403
        %676 = vmatprep.subr.mxu0 %v406
        %677 = vmatpush1.msra.mxu0 %v405
        %678 = vmatprep.subr.mxu0 %v408
        %679 = vmatpush1.msra.mxu0 %v407
        %680 = vmatprep.subr.mxu0 %v410
        %681 = vmatpush1.msra.mxu0 %v409
        %682 = vmatprep.subr.mxu0 %v412
        %683 = vmatpush1.msra.mxu0 %v411
        %684 = vmatprep.subr.mxu0 0.0
        %685 = vmatpush1.msra.mxu0 0.0
        %686 = vmatprep.subr.mxu0 0.0
        %687 = vmatpush1.msra.mxu0 0.0
        %688 = vmatprep.subr.mxu0 0.0
        %689 = vmatpush1.msra.mxu0 0.0
        %690 = vmatprep.subr.mxu0 0.0
        %691 = vmatpush1.msra.mxu0 0.0
        %692 = vmatprep.subr.mxu0 0.0
        %693 = vmatpush1.msra.mxu0 0.0
        %694 = vmatprep.subr.mxu0 0.0
        %695 = vmatpush1.msra.mxu0 0.0
        %696 = vmatprep.subr.mxu0 0.0
        %697 = vmatpush1.msra.mxu0 0.0
        %698 = vmatprep.subr.mxu0 0.0
        %699 = vmatpush1.msra.mxu0 0.0
        %700 = vmatprep.subr.mxu0 0.0
        %701 = vmatpush1.msra.mxu0 0.0
        %702 = vmatprep.subr.mxu0 0.0
        %703 = vmatpush1.msra.mxu0 0.0
        %704 = vmatprep.subr.mxu0 0.0
        %705 = vmatpush1.msra.mxu0 0.0
        %706 = vmatprep.subr.mxu0 0.0
        %707 = vmatpush1.msra.mxu0 0.0
        %708 = vmatprep.subr.mxu0 0.0
        %709 = vmatpush1.msra.mxu0 0.0
        %710 = vmatprep.subr.mxu0 0.0
        %711 = vmatpush1.msra.mxu0 0.0
        %712 = vmatprep.subr.mxu0 0.0
        %713 = vmatpush1.msra.mxu0 0.0
        %714 = vmatprep.subr.mxu0 0.0
        %715 = vmatpush1.msra.mxu0 0.0
        %716 = vmatprep.subr.mxu0 0.0
        %717 = vmatpush1.msra.mxu0 0.0
        %718 = vmatprep.subr.mxu0 0.0
        %719 = vmatpush1.msra.mxu0 0.0
        %720 = vmatprep.subr.mxu0 0.0
        %721 = vmatpush1.msra.mxu0 0.0
        %722 = vmatprep.subr.mxu0 0.0
        %723 = vmatpush1.msra.mxu0 0.0
        %724 = vmatprep.mubr.f32.mxu0 0.0
        %725 = vmatmul.mubr.f32.gmra.mrb[0].mxu0 %v439
        %v726 = vpop.f32.mrb[0].mxu0
        %v727 = vadd.f32 %v656, %v726
        %v728 = vpop.f32.mrb[0].mxu0
        %v729 = vadd.f32 %v658, %v728
        %730 = vdwg.mxu0
        %v732 = vsel %vm437, %v387, 0
        %734 = vmatprep.subr.mxu0 %v414
        %735 = vmatpush1.msra.mxu0 %v413
        %736 = vmatprep.subr.mxu0 %v416
        %737 = vmatpush1.msra.mxu0 %v415
        %738 = vmatprep.subr.mxu0 %v418
        %739 = vmatpush1.msra.mxu0 %v417
        %740 = vmatprep.subr.mxu0 %v420
        %741 = vmatpush1.msra.mxu0 %v419
        %742 = vmatprep.subr.mxu0 %v422
        %743 = vmatpush1.msra.mxu0 %v421
        %744 = vmatprep.subr.mxu0 %v424
        %745 = vmatpush1.msra.mxu0 %v423
        %746 = vmatprep.subr.mxu0 %v426
        %747 = vmatpush1.msra.mxu0 %v425
        %748 = vmatprep.subr.mxu0 %v428
        %749 = vmatpush1.msra.mxu0 %v427
        %750 = vmatprep.subr.mxu0 %v430
        %751 = vmatpush1.msra.mxu0 %v429
        %752 = vmatprep.subr.mxu0 %v432
        %753 = vmatpush1.msra.mxu0 %v431
        %754 = vmatprep.subr.mxu0 %v434
        %755 = vmatpush1.msra.mxu0 %v433
        %756 = vmatprep.subr.mxu0 %v436
        %757 = vmatpush1.msra.mxu0 %v435
        %758 = vmatprep.subr.mxu0 0.0
        %759 = vmatpush1.msra.mxu0 0.0
        %760 = vmatprep.subr.mxu0 0.0
        %761 = vmatpush1.msra.mxu0 0.0
        %762 = vmatprep.subr.mxu0 0.0
        %763 = vmatpush1.msra.mxu0 0.0
        %764 = vmatprep.subr.mxu0 0.0
        %765 = vmatpush1.msra.mxu0 0.0
        %766 = vmatprep.subr.mxu0 0.0
        %767 = vmatpush1.msra.mxu0 0.0
        %768 = vmatprep.subr.mxu0 0.0
        %769 = vmatpush1.msra.mxu0 0.0
        %770 = vmatprep.subr.mxu0 0.0
        %771 = vmatpush1.msra.mxu0 0.0
        %772 = vmatprep.subr.mxu0 0.0
        %773 = vmatpush1.msra.mxu0 0.0
        %774 = vmatprep.subr.mxu0 0.0
        %775 = vmatpush1.msra.mxu0 0.0
        %776 = vmatprep.subr.mxu0 0.0
        %777 = vmatpush1.msra.mxu0 0.0
        %778 = vmatprep.subr.mxu0 0.0
        %779 = vmatpush1.msra.mxu0 0.0
        %780 = vmatprep.subr.mxu0 0.0
        %781 = vmatpush1.msra.mxu0 0.0
        %782 = vmatprep.subr.mxu0 0.0
        %783 = vmatpush1.msra.mxu0 0.0
        %784 = vmatprep.subr.mxu0 0.0
        %785 = vmatpush1.msra.mxu0 0.0
        %786 = vmatprep.subr.mxu0 0.0
        %787 = vmatpush1.msra.mxu0 0.0
        %788 = vmatprep.subr.mxu0 0.0
        %789 = vmatpush1.msra.mxu0 0.0
        %790 = vmatprep.subr.mxu0 0.0
        %791 = vmatpush1.msra.mxu0 0.0
        %792 = vmatprep.subr.mxu0 0.0
        %793 = vmatpush1.msra.mxu0 0.0
        %794 = vmatprep.subr.mxu0 0.0
        %795 = vmatpush1.msra.mxu0 0.0
        %796 = vmatprep.subr.mxu0 0.0
        %797 = vmatpush1.msra.mxu0 0.0
        %798 = vmatprep.mubr.f32.mxu0 0.0
        %799 = vmatmul.mubr.f32.gmra.mrb[0].mxu0 %v732
        %v800 = vpop.f32.mrb[0].mxu0
        %v801 = vadd.f32 0.0, %v800
        %v802 = vpop.f32.mrb[0].mxu0
        %v803 = vadd.f32 0.0, %v802
        %804 = vdwg.mxu0
        %805 = vmatprep.subr.mxu0 %v390
        %806 = vmatpush1.msra.mxu0 %v389
        %807 = vmatprep.subr.mxu0 %v392
        %808 = vmatpush1.msra.mxu0 %v391
        %809 = vmatprep.subr.mxu0 %v394
        %810 = vmatpush1.msra.mxu0 %v393
        %811 = vmatprep.subr.mxu0 %v396
        %812 = vmatpush1.msra.mxu0 %v395
        %813 = vmatprep.subr.mxu0 %v398
        %814 = vmatpush1.msra.mxu0 %v397
        %815 = vmatprep.subr.mxu0 %v400
        %816 = vmatpush1.msra.mxu0 %v399
        %817 = vmatprep.subr.mxu0 %v402
        %818 = vmatpush1.msra.mxu0 %v401
        %819 = vmatprep.subr.mxu0 %v404
        %820 = vmatpush1.msra.mxu0 %v403
        %821 = vmatprep.subr.mxu0 %v406
        %822 = vmatpush1.msra.mxu0 %v405
        %823 = vmatprep.subr.mxu0 %v408
        %824 = vmatpush1.msra.mxu0 %v407
        %825 = vmatprep.subr.mxu0 %v410
        %826 = vmatpush1.msra.mxu0 %v409
        %827 = vmatprep.subr.mxu0 %v412
        %828 = vmatpush1.msra.mxu0 %v411
        %829 = vmatprep.subr.mxu0 0.0
        %830 = vmatpush1.msra.mxu0 0.0
        %831 = vmatprep.subr.mxu0 0.0
        %832 = vmatpush1.msra.mxu0 0.0
        %833 = vmatprep.subr.mxu0 0.0
        %834 = vmatpush1.msra.mxu0 0.0
        %835 = vmatprep.subr.mxu0 0.0
        %836 = vmatpush1.msra.mxu0 0.0
        %837 = vmatprep.subr.mxu0 0.0
        %838 = vmatpush1.msra.mxu0 0.0
        %839 = vmatprep.subr.mxu0 0.0
        %840 = vmatpush1.msra.mxu0 0.0
        %841 = vmatprep.subr.mxu0 0.0
        %842 = vmatpush1.msra.mxu0 0.0
        %843 = vmatprep.subr.mxu0 0.0
        %844 = vmatpush1.msra.mxu0 0.0
        %845 = vmatprep.subr.mxu0 0.0
        %846 = vmatpush1.msra.mxu0 0.0
        %847 = vmatprep.subr.mxu0 0.0
        %848 = vmatpush1.msra.mxu0 0.0
        %849 = vmatprep.subr.mxu0 0.0
        %850 = vmatpush1.msra.mxu0 0.0
        %851 = vmatprep.subr.mxu0 0.0
        %852 = vmatpush1.msra.mxu0 0.0
        %853 = vmatprep.subr.mxu0 0.0
        %854 = vmatpush1.msra.mxu0 0.0
        %855 = vmatprep.subr.mxu0 0.0
        %856 = vmatpush1.msra.mxu0 0.0
        %857 = vmatprep.subr.mxu0 0.0
        %858 = vmatpush1.msra.mxu0 0.0
        %859 = vmatprep.subr.mxu0 0.0
        %860 = vmatpush1.msra.mxu0 0.0
        %861 = vmatprep.subr.mxu0 0.0
        %862 = vmatpush1.msra.mxu0 0.0
        %863 = vmatprep.subr.mxu0 0.0
        %864 = vmatpush1.msra.mxu0 0.0
        %865 = vmatprep.subr.mxu0 0.0
        %866 = vmatpush1.msra.mxu0 0.0
        %867 = vmatprep.subr.mxu0 0.0
        %868 = vmatpush1.msra.mxu0 0.0
        %869 = vmatprep.mubr.f32.mxu0 0.0
        %870 = vmatmul.mubr.f32.gmra.mrb[0].mxu0 %v587
        %v871 = vpop.f32.mrb[0].mxu0
        %v872 = vadd.f32 %v801, %v871
        %v873 = vpop.f32.mrb[0].mxu0
        %v874 = vadd.f32 %v803, %v873
        %875 = vdwg.mxu0
        %v876 = vrot.slane %v384, 1
        %v877 = vsel %vm437, %v876, 0
        %879 = vmatprep.subr.mxu0 %v414
        %880 = vmatpush1.msra.mxu0 %v413
        %881 = vmatprep.subr.mxu0 %v416
        %882 = vmatpush1.msra.mxu0 %v415
        %883 = vmatprep.subr.mxu0 %v418
        %884 = vmatpush1.msra.mxu0 %v417
        %885 = vmatprep.subr.mxu0 %v420
        %886 = vmatpush1.msra.mxu0 %v419
        %887 = vmatprep.subr.mxu0 %v422
        %888 = vmatpush1.msra.mxu0 %v421
        %889 = vmatprep.subr.mxu0 %v424
        %890 = vmatpush1.msra.mxu0 %v423
        %891 = vmatprep.subr.mxu0 %v426
        %892 = vmatpush1.msra.mxu0 %v425
        %893 = vmatprep.subr.mxu0 %v428
        %894 = vmatpush1.msra.mxu0 %v427
        %895 = vmatprep.subr.mxu0 %v430
        %896 = vmatpush1.msra.mxu0 %v429
        %897 = vmatprep.subr.mxu0 %v432
        %898 = vmatpush1.msra.mxu0 %v431
        %899 = vmatprep.subr.mxu0 %v434
        %900 = vmatpush1.msra.mxu0 %v433
        %901 = vmatprep.subr.mxu0 %v436
        %902 = vmatpush1.msra.mxu0 %v435
        %903 = vmatprep.subr.mxu0 0.0
        %904 = vmatpush1.msra.mxu0 0.0
        %905 = vmatprep.subr.mxu0 0.0
        %906 = vmatpush1.msra.mxu0 0.0
        %907 = vmatprep.subr.mxu0 0.0
        %908 = vmatpush1.msra.mxu0 0.0
        %909 = vmatprep.subr.mxu0 0.0
        %910 = vmatpush1.msra.mxu0 0.0
        %911 = vmatprep.subr.mxu0 0.0
        %912 = vmatpush1.msra.mxu0 0.0
        %913 = vmatprep.subr.mxu0 0.0
        %914 = vmatpush1.msra.mxu0 0.0
        %915 = vmatprep.subr.mxu0 0.0
        %916 = vmatpush1.msra.mxu0 0.0
        %917 = vmatprep.subr.mxu0 0.0
        %918 = vmatpush1.msra.mxu0 0.0
        %919 = vmatprep.subr.mxu0 0.0
        %920 = vmatpush1.msra.mxu0 0.0
        %921 = vmatprep.subr.mxu0 0.0
        %922 = vmatpush1.msra.mxu0 0.0
        %923 = vmatprep.subr.mxu0 0.0
        %924 = vmatpush1.msra.mxu0 0.0
        %925 = vmatprep.subr.mxu0 0.0
        %926 = vmatpush1.msra.mxu0 0.0
        %927 = vmatprep.subr.mxu0 0.0
        %928 = vmatpush1.msra.mxu0 0.0
        %929 = vmatprep.subr.mxu0 0.0
        %930 = vmatpush1.msra.mxu0 0.0
        %931 = vmatprep.subr.mxu0 0.0
        %932 = vmatpush1.msra.mxu0 0.0
        %933 = vmatprep.subr.mxu0 0.0
        %934 = vmatpush1.msra.mxu0 0.0
        %935 = vmatprep.subr.mxu0 0.0
        %936 = vmatpush1.msra.mxu0 0.0
        %937 = vmatprep.subr.mxu0 0.0
        %938 = vmatpush1.msra.mxu0 0.0
        %939 = vmatprep.subr.mxu0 0.0
        %940 = vmatpush1.msra.mxu0 0.0
        %941 = vmatprep.subr.mxu0 0.0
        %942 = vmatpush1.msra.mxu0 0.0
        %943 = vmatprep.mubr.f32.mxu0 0.0
        %944 = vmatmul.mubr.f32.gmra.mrb[0].mxu0 %v877
        %v945 = vpop.f32.mrb[0].mxu0
        %v946 = vadd.f32 0.0, %v945
        %v947 = vpop.f32.mrb[0].mxu0
        %v948 = vadd.f32 0.0, %v947
        %949 = vdwg.mxu0
        %950 = vmatprep.subr.mxu0 %v390
        %951 = vmatpush1.msra.mxu0 %v389
        %952 = vmatprep.subr.mxu0 %v392
        %953 = vmatpush1.msra.mxu0 %v391
        %954 = vmatprep.subr.mxu0 %v394
        %955 = vmatpush1.msra.mxu0 %v393
        %956 = vmatprep.subr.mxu0 %v396
        %957 = vmatpush1.msra.mxu0 %v395
        %958 = vmatprep.subr.mxu0 %v398
        %959 = vmatpush1.msra.mxu0 %v397
        %960 = vmatprep.subr.mxu0 %v400
        %961 = vmatpush1.msra.mxu0 %v399
        %962 = vmatprep.subr.mxu0 %v402
        %963 = vmatpush1.msra.mxu0 %v401
        %964 = vmatprep.subr.mxu0 %v404
        %965 = vmatpush1.msra.mxu0 %v403
        %966 = vmatprep.subr.mxu0 %v406
        %967 = vmatpush1.msra.mxu0 %v405
        %968 = vmatprep.subr.mxu0 %v408
        %969 = vmatpush1.msra.mxu0 %v407
        %970 = vmatprep.subr.mxu0 %v410
        %971 = vmatpush1.msra.mxu0 %v409
        %972 = vmatprep.subr.mxu0 %v412
        %973 = vmatpush1.msra.mxu0 %v411
        %974 = vmatprep.subr.mxu0 0.0
        %975 = vmatpush1.msra.mxu0 0.0
        %976 = vmatprep.subr.mxu0 0.0
        %977 = vmatpush1.msra.mxu0 0.0
        %978 = vmatprep.subr.mxu0 0.0
        %979 = vmatpush1.msra.mxu0 0.0
        %980 = vmatprep.subr.mxu0 0.0
        %981 = vmatpush1.msra.mxu0 0.0
        %982 = vmatprep.subr.mxu0 0.0
        %983 = vmatpush1.msra.mxu0 0.0
        %984 = vmatprep.subr.mxu0 0.0
        %985 = vmatpush1.msra.mxu0 0.0
        %986 = vmatprep.subr.mxu0 0.0
        %987 = vmatpush1.msra.mxu0 0.0
        %988 = vmatprep.subr.mxu0 0.0
        %989 = vmatpush1.msra.mxu0 0.0
        %990 = vmatprep.subr.mxu0 0.0
        %991 = vmatpush1.msra.mxu0 0.0
        %992 = vmatprep.subr.mxu0 0.0
        %993 = vmatpush1.msra.mxu0 0.0
        %994 = vmatprep.subr.mxu0 0.0
        %995 = vmatpush1.msra.mxu0 0.0
        %996 = vmatprep.subr.mxu0 0.0
        %997 = vmatpush1.msra.mxu0 0.0
        %998 = vmatprep.subr.mxu0 0.0
        %999 = vmatpush1.msra.mxu0 0.0
        %1000 = vmatprep.subr.mxu0 0.0
        %1001 = vmatpush1.msra.mxu0 0.0
        %1002 = vmatprep.subr.mxu0 0.0
        %1003 = vmatpush1.msra.mxu0 0.0
        %1004 = vmatprep.subr.mxu0 0.0
        %1005 = vmatpush1.msra.mxu0 0.0
        %1006 = vmatprep.subr.mxu0 0.0
        %1007 = vmatpush1.msra.mxu0 0.0
        %1008 = vmatprep.subr.mxu0 0.0
        %1009 = vmatpush1.msra.mxu0 0.0
        %1010 = vmatprep.subr.mxu0 0.0
        %1011 = vmatpush1.msra.mxu0 0.0
        %1012 = vmatprep.subr.mxu0 0.0
        %1013 = vmatpush1.msra.mxu0 0.0
        %1014 = vmatprep.mubr.f32.mxu0 0.0
        %1015 = vmatmul.mubr.f32.gmra.mrb[0].mxu0 %v732
        %v1016 = vpop.f32.mrb[0].mxu0
        %v1017 = vadd.f32 %v946, %v1016
        %v1018 = vpop.f32.mrb[0].mxu0
        %v1019 = vadd.f32 %v948, %v1018
        %1020 = vdwg.mxu0
        %v1021 = vld [vmem:[%s1 + $0x180] sm:$0xff]
        %v1022 = vld [vmem:[%s1 + $0x188] sm:$0xff]
        %v1023 = vld [vmem:[%s1 + $0x190] sm:$0xff]
        %v1024 = vld [vmem:[%s1 + $0x198] sm:$0xff]
        %v1025 = vld [vmem:[%s1 + $0x1a0] sm:$0xff]
        %v1026 = vld [vmem:[%s1 + $0x1a8] sm:$0xff]
        %v1027 = vld [vmem:[%s1 + $0x1b0] sm:$0xff]
        %v1028 = vld [vmem:[%s1 + $0x1b8] sm:$0xff]
        %v1029 = vld [vmem:[%s1 + $0x1c0] sm:$0xff]
        %v1030 = vld [vmem:[%s1 + $0x1c8] sm:$0xff]
        %v1031 = vld [vmem:[%s1 + $0x1d0] sm:$0xff]
        %v1032 = vld [vmem:[%s1 + $0x1d8] sm:$0xff]
        %v1033 = vld [vmem:[%s1 + $0x1e0] sm:$0xff]
        %v1034 = vld [vmem:[%s1 + $0x1e8] sm:$0xff]
        %v1035 = vld [vmem:[%s1 + $0x1f0] sm:$0xff]
        %v1036 = vld [vmem:[%s1 + $0x1f8] sm:$0xff]
        %v1037 = vld [vmem:[%s1 + $0x200] sm:$0xff]
        %v1038 = vld [vmem:[%s1 + $0x208] sm:$0xff]
        %v1039 = vld [vmem:[%s1 + $0x210] sm:$0xff]
        %v1040 = vld [vmem:[%s1 + $0x218] sm:$0xff]
        %v1041 = vld [vmem:[%s1 + $0x220] sm:$0xff]
        %v1042 = vld [vmem:[%s1 + $0x228] sm:$0xff]
        %v1043 = vld [vmem:[%s1 + $0x230] sm:$0xff]
        %v1044 = vld [vmem:[%s1 + $0x238] sm:$0xff]
        %1045 = vmatprep.subr.mxu0 %v1022
        %1046 = vmatpush1.msra.mxu0 %v1021
        %1047 = vmatprep.subr.mxu0 %v1024
        %1048 = vmatpush1.msra.mxu0 %v1023
        %1049 = vmatprep.subr.mxu0 %v1026
        %1050 = vmatpush1.msra.mxu0 %v1025
        %1051 = vmatprep.subr.mxu0 %v1028
        %1052 = vmatpush1.msra.mxu0 %v1027
        %1053 = vmatprep.subr.mxu0 %v1030
        %1054 = vmatpush1.msra.mxu0 %v1029
        %1055 = vmatprep.subr.mxu0 %v1032
        %1056 = vmatpush1.msra.mxu0 %v1031
        %1057 = vmatprep.subr.mxu0 %v1034
        %1058 = vmatpush1.msra.mxu0 %v1033
        %1059 = vmatprep.subr.mxu0 %v1036
        %1060 = vmatpush1.msra.mxu0 %v1035
        %1061 = vmatprep.subr.mxu0 %v1038
        %1062 = vmatpush1.msra.mxu0 %v1037
        %1063 = vmatprep.subr.mxu0 %v1040
        %1064 = vmatpush1.msra.mxu0 %v1039
        %1065 = vmatprep.subr.mxu0 %v1042
        %1066 = vmatpush1.msra.mxu0 %v1041
        %1067 = vmatprep.subr.mxu0 %v1044
        %1068 = vmatpush1.msra.mxu0 %v1043
        %1069 = vmatprep.subr.mxu0 0.0
        %1070 = vmatpush1.msra.mxu0 0.0
        %1071 = vmatprep.subr.mxu0 0.0
        %1072 = vmatpush1.msra.mxu0 0.0
        %1073 = vmatprep.subr.mxu0 0.0
        %1074 = vmatpush1.msra.mxu0 0.0
        %1075 = vmatprep.subr.mxu0 0.0
        %1076 = vmatpush1.msra.mxu0 0.0
        %1077 = vmatprep.subr.mxu0 0.0
        %1078 = vmatpush1.msra.mxu0 0.0
        %1079 = vmatprep.subr.mxu0 0.0
        %1080 = vmatpush1.msra.mxu0 0.0
        %1081 = vmatprep.subr.mxu0 0.0
        %1082 = vmatpush1.msra.mxu0 0.0
        %1083 = vmatprep.subr.mxu0 0.0
        %1084 = vmatpush1.msra.mxu0 0.0
        %1085 = vmatprep.subr.mxu0 0.0
        %1086 = vmatpush1.msra.mxu0 0.0
        %1087 = vmatprep.subr.mxu0 0.0
        %1088 = vmatpush1.msra.mxu0 0.0
        %1089 = vmatprep.subr.mxu0 0.0
        %1090 = vmatpush1.msra.mxu0 0.0
        %1091 = vmatprep.subr.mxu0 0.0
        %1092 = vmatpush1.msra.mxu0 0.0
        %1093 = vmatprep.subr.mxu0 0.0
        %1094 = vmatpush1.msra.mxu0 0.0
        %1095 = vmatprep.subr.mxu0 0.0
        %1096 = vmatpush1.msra.mxu0 0.0
        %1097 = vmatprep.subr.mxu0 0.0
        %1098 = vmatpush1.msra.mxu0 0.0
        %1099 = vmatprep.subr.mxu0 0.0
        %1100 = vmatpush1.msra.mxu0 0.0
        %1101 = vmatprep.subr.mxu0 0.0
        %1102 = vmatpush1.msra.mxu0 0.0
        %1103 = vmatprep.subr.mxu0 0.0
        %1104 = vmatpush1.msra.mxu0 0.0
        %1105 = vmatprep.subr.mxu0 0.0
        %1106 = vmatpush1.msra.mxu0 0.0
        %1107 = vmatprep.subr.mxu0 0.0
        %1108 = vmatpush1.msra.mxu0 0.0
        %1109 = vmatprep.mubr.f32.mxu0 0.0
        %1110 = vmatmul.mubr.f32.gmra.mrb[0].mxu0 %v587
        %v1111 = vpop.f32.mrb[0].mxu0
        %v1112 = vadd.f32 0.0, %v1111
        %v1113 = vpop.f32.mrb[0].mxu0
        %v1114 = vadd.f32 0.0, %v1113
        %1115 = vdwg.mxu0
        %v1116 = vadd.f32 %v582, %v1112
        %v1117 = vadd.f32 %v584, %v1114
        %1118 = vmatprep.subr.mxu0 %v1022
        %1119 = vmatpush1.msra.mxu0 %v1021
        %1120 = vmatprep.subr.mxu0 %v1024
        %1121 = vmatpush1.msra.mxu0 %v1023
        %1122 = vmatprep.subr.mxu0 %v1026
        %1123 = vmatpush1.msra.mxu0 %v1025
        %1124 = vmatprep.subr.mxu0 %v1028
        %1125 = vmatpush1.msra.mxu0 %v1027
        %1126 = vmatprep.subr.mxu0 %v1030
        %1127 = vmatpush1.msra.mxu0 %v1029
        %1128 = vmatprep.subr.mxu0 %v1032
        %1129 = vmatpush1.msra.mxu0 %v1031
        %1130 = vmatprep.subr.mxu0 %v1034
        %1131 = vmatpush1.msra.mxu0 %v1033
        %1132 = vmatprep.subr.mxu0 %v1036
        %1133 = vmatpush1.msra.mxu0 %v1035
        %1134 = vmatprep.subr.mxu0 %v1038
        %1135 = vmatpush1.msra.mxu0 %v1037
        %1136 = vmatprep.subr.mxu0 %v1040
        %1137 = vmatpush1.msra.mxu0 %v1039
        %1138 = vmatprep.subr.mxu0 %v1042
        %1139 = vmatpush1.msra.mxu0 %v1041
        %1140 = vmatprep.subr.mxu0 %v1044
        %1141 = vmatpush1.msra.mxu0 %v1043
        %1142 = vmatprep.subr.mxu0 0.0
        %1143 = vmatpush1.msra.mxu0 0.0
        %1144 = vmatprep.subr.mxu0 0.0
        %1145 = vmatpush1.msra.mxu0 0.0
        %1146 = vmatprep.subr.mxu0 0.0
        %1147 = vmatpush1.msra.mxu0 0.0
        %1148 = vmatprep.subr.mxu0 0.0
        %1149 = vmatpush1.msra.mxu0 0.0
        %1150 = vmatprep.subr.mxu0 0.0
        %1151 = vmatpush1.msra.mxu0 0.0
        %1152 = vmatprep.subr.mxu0 0.0
        %1153 = vmatpush1.msra.mxu0 0.0
        %1154 = vmatprep.subr.mxu0 0.0
        %1155 = vmatpush1.msra.mxu0 0.0
        %1156 = vmatprep.subr.mxu0 0.0
        %1157 = vmatpush1.msra.mxu0 0.0
        %1158 = vmatprep.subr.mxu0 0.0
        %1159 = vmatpush1.msra.mxu0 0.0
        %1160 = vmatprep.subr.mxu0 0.0
        %1161 = vmatpush1.msra.mxu0 0.0
        %1162 = vmatprep.subr.mxu0 0.0
        %1163 = vmatpush1.msra.mxu0 0.0
        %1164 = vmatprep.subr.mxu0 0.0
        %1165 = vmatpush1.msra.mxu0 0.0
        %1166 = vmatprep.subr.mxu0 0.0
        %1167 = vmatpush1.msra.mxu0 0.0
        %1168 = vmatprep.subr.mxu0 0.0
        %1169 = vmatpush1.msra.mxu0 0.0
        %1170 = vmatprep.subr.mxu0 0.0
        %1171 = vmatpush1.msra.mxu0 0.0
        %1172 = vmatprep.subr.mxu0 0.0
        %1173 = vmatpush1.msra.mxu0 0.0
        %1174 = vmatprep.subr.mxu0 0.0
        %1175 = vmatpush1.msra.mxu0 0.0
        %1176 = vmatprep.subr.mxu0 0.0
        %1177 = vmatpush1.msra.mxu0 0.0
        %1178 = vmatprep.subr.mxu0 0.0
        %1179 = vmatpush1.msra.mxu0 0.0
        %1180 = vmatprep.subr.mxu0 0.0
        %1181 = vmatpush1.msra.mxu0 0.0
        %1182 = vmatprep.mubr.f32.mxu0 0.0
        %1183 = vmatmul.mubr.f32.gmra.mrb[0].mxu0 %v732
        %v1184 = vpop.f32.mrb[0].mxu0
        %v1185 = vadd.f32 0.0, %v1184
        %v1186 = vpop.f32.mrb[0].mxu0
        %v1187 = vadd.f32 0.0, %v1186
        %1188 = vdwg.mxu0
        %v1189 = vadd.f32 %v727, %v1185
        %v1190 = vadd.f32 %v729, %v1187
        %1191 = vmatprep.subr.mxu0 %v1022
        %1192 = vmatpush1.msra.mxu0 %v1021
        %1193 = vmatprep.subr.mxu0 %v1024
        %1194 = vmatpush1.msra.mxu0 %v1023
        %1195 = vmatprep.subr.mxu0 %v1026
        %1196 = vmatpush1.msra.mxu0 %v1025
        %1197 = vmatprep.subr.mxu0 %v1028
        %1198 = vmatpush1.msra.mxu0 %v1027
        %1199 = vmatprep.subr.mxu0 %v1030
        %1200 = vmatpush1.msra.mxu0 %v1029
        %1201 = vmatprep.subr.mxu0 %v1032
        %1202 = vmatpush1.msra.mxu0 %v1031
        %1203 = vmatprep.subr.mxu0 %v1034
        %1204 = vmatpush1.msra.mxu0 %v1033
        %1205 = vmatprep.subr.mxu0 %v1036
        %1206 = vmatpush1.msra.mxu0 %v1035
        %1207 = vmatprep.subr.mxu0 %v1038
        %1208 = vmatpush1.msra.mxu0 %v1037
        %1209 = vmatprep.subr.mxu0 %v1040
        %1210 = vmatpush1.msra.mxu0 %v1039
        %1211 = vmatprep.subr.mxu0 %v1042
        %1212 = vmatpush1.msra.mxu0 %v1041
        %1213 = vmatprep.subr.mxu0 %v1044
        %1214 = vmatpush1.msra.mxu0 %v1043
        %1215 = vmatprep.subr.mxu0 0.0
        %1216 = vmatpush1.msra.mxu0 0.0
        %1217 = vmatprep.subr.mxu0 0.0
        %1218 = vmatpush1.msra.mxu0 0.0
        %1219 = vmatprep.subr.mxu0 0.0
        %1220 = vmatpush1.msra.mxu0 0.0
        %1221 = vmatprep.subr.mxu0 0.0
        %1222 = vmatpush1.msra.mxu0 0.0
        %1223 = vmatprep.subr.mxu0 0.0
        %1224 = vmatpush1.msra.mxu0 0.0
        %1225 = vmatprep.subr.mxu0 0.0
        %1226 = vmatpush1.msra.mxu0 0.0
        %1227 = vmatprep.subr.mxu0 0.0
        %1228 = vmatpush1.msra.mxu0 0.0
        %1229 = vmatprep.subr.mxu0 0.0
        %1230 = vmatpush1.msra.mxu0 0.0
        %1231 = vmatprep.subr.mxu0 0.0
        %1232 = vmatpush1.msra.mxu0 0.0
        %1233 = vmatprep.subr.mxu0 0.0
        %1234 = vmatpush1.msra.mxu0 0.0
        %1235 = vmatprep.subr.mxu0 0.0
        %1236 = vmatpush1.msra.mxu0 0.0
        %1237 = vmatprep.subr.mxu0 0.0
        %1238 = vmatpush1.msra.mxu0 0.0
        %1239 = vmatprep.subr.mxu0 0.0
        %1240 = vmatpush1.msra.mxu0 0.0
        %1241 = vmatprep.subr.mxu0 0.0
        %1242 = vmatpush1.msra.mxu0 0.0
        %1243 = vmatprep.subr.mxu0 0.0
        %1244 = vmatpush1.msra.mxu0 0.0
        %1245 = vmatprep.subr.mxu0 0.0
        %1246 = vmatpush1.msra.mxu0 0.0
        %1247 = vmatprep.subr.mxu0 0.0
        %1248 = vmatpush1.msra.mxu0 0.0
        %1249 = vmatprep.subr.mxu0 0.0
        %1250 = vmatpush1.msra.mxu0 0.0
        %1251 = vmatprep.subr.mxu0 0.0
        %1252 = vmatpush1.msra.mxu0 0.0
        %1253 = vmatprep.subr.mxu0 0.0
        %1254 = vmatpush1.msra.mxu0 0.0
        %1255 = vmatprep.mubr.f32.mxu0 0.0
        %1256 = vmatmul.mubr.f32.gmra.mrb[0].mxu0 %v877
        %v1257 = vpop.f32.mrb[0].mxu0
        %v1258 = vadd.f32 0.0, %v1257
        %v1259 = vpop.f32.mrb[0].mxu0
        %v1260 = vadd.f32 0.0, %v1259
        %1261 = vdwg.mxu0
        %v1262 = vadd.f32 %v872, %v1258
        %v1263 = vadd.f32 %v874, %v1260
        %v1264 = vrot.slane %v385, 1
        %v1265 = vsel %vm437, %v1264, 0
        %1267 = vmatprep.subr.mxu0 %v1022
        %1268 = vmatpush1.msra.mxu0 %v1021
        %1269 = vmatprep.subr.mxu0 %v1024
        %1270 = vmatpush1.msra.mxu0 %v1023
        %1271 = vmatprep.subr.mxu0 %v1026
        %1272 = vmatpush1.msra.mxu0 %v1025
        %1273 = vmatprep.subr.mxu0 %v1028
        %1274 = vmatpush1.msra.mxu0 %v1027
        %1275 = vmatprep.subr.mxu0 %v1030
        %1276 = vmatpush1.msra.mxu0 %v1029
        %1277 = vmatprep.subr.mxu0 %v1032
        %1278 = vmatpush1.msra.mxu0 %v1031
        %1279 = vmatprep.subr.mxu0 %v1034
        %1280 = vmatpush1.msra.mxu0 %v1033
        %1281 = vmatprep.subr.mxu0 %v1036
        %1282 = vmatpush1.msra.mxu0 %v1035
        %1283 = vmatprep.subr.mxu0 %v1038
        %1284 = vmatpush1.msra.mxu0 %v1037
        %1285 = vmatprep.subr.mxu0 %v1040
        %1286 = vmatpush1.msra.mxu0 %v1039
        %1287 = vmatprep.subr.mxu0 %v1042
        %1288 = vmatpush1.msra.mxu0 %v1041
        %1289 = vmatprep.subr.mxu0 %v1044
        %1290 = vmatpush1.msra.mxu0 %v1043
        %1291 = vmatprep.subr.mxu0 0.0
        %1292 = vmatpush1.msra.mxu0 0.0
        %1293 = vmatprep.subr.mxu0 0.0
        %1294 = vmatpush1.msra.mxu0 0.0
        %1295 = vmatprep.subr.mxu0 0.0
        %1296 = vmatpush1.msra.mxu0 0.0
        %1297 = vmatprep.subr.mxu0 0.0
        %1298 = vmatpush1.msra.mxu0 0.0
        %1299 = vmatprep.subr.mxu0 0.0
        %1300 = vmatpush1.msra.mxu0 0.0
        %1301 = vmatprep.subr.mxu0 0.0
        %1302 = vmatpush1.msra.mxu0 0.0
        %1303 = vmatprep.subr.mxu0 0.0
        %1304 = vmatpush1.msra.mxu0 0.0
        %1305 = vmatprep.subr.mxu0 0.0
        %1306 = vmatpush1.msra.mxu0 0.0
        %1307 = vmatprep.subr.mxu0 0.0
        %1308 = vmatpush1.msra.mxu0 0.0
        %1309 = vmatprep.subr.mxu0 0.0
        %1310 = vmatpush1.msra.mxu0 0.0
        %1311 = vmatprep.subr.mxu0 0.0
        %1312 = vmatpush1.msra.mxu0 0.0
        %1313 = vmatprep.subr.mxu0 0.0
        %1314 = vmatpush1.msra.mxu0 0.0
        %1315 = vmatprep.subr.mxu0 0.0
        %1316 = vmatpush1.msra.mxu0 0.0
        %1317 = vmatprep.subr.mxu0 0.0
        %1318 = vmatpush1.msra.mxu0 0.0
        %1319 = vmatprep.subr.mxu0 0.0
        %1320 = vmatpush1.msra.mxu0 0.0
        %1321 = vmatprep.subr.mxu0 0.0
        %1322 = vmatpush1.msra.mxu0 0.0
        %1323 = vmatprep.subr.mxu0 0.0
        %1324 = vmatpush1.msra.mxu0 0.0
        %1325 = vmatprep.subr.mxu0 0.0
        %1326 = vmatpush1.msra.mxu0 0.0
        %1327 = vmatprep.subr.mxu0 0.0
        %1328 = vmatpush1.msra.mxu0 0.0
        %1329 = vmatprep.subr.mxu0 0.0
        %1330 = vmatpush1.msra.mxu0 0.0
        %1331 = vmatprep.mubr.f32.mxu0 0.0
        %1332 = vmatmul.mubr.f32.gmra.mrb[0].mxu0 %v1265
        %v1333 = vpop.f32.mrb[0].mxu0
        %v1334 = vadd.f32 0.0, %v1333
        %v1335 = vpop.f32.mrb[0].mxu0
        %v1336 = vadd.f32 0.0, %v1335
        %1337 = vdwg.mxu0
        %v1338 = vadd.f32 %v1017, %v1334
        %v1339 = vadd.f32 %v1019, %v1336
        %v1340 = vld [vmem:[%s1 + $0x240] sm:$0xff]
        %v1341 = vld [vmem:[%s1 + $0x248] sm:$0xff]
        %v1342 = vld [vmem:[%s1 + $0x250] sm:$0xff]
        %v1343 = vld [vmem:[%s1 + $0x258] sm:$0xff]
        %v1344 = vld [vmem:[%s1 + $0x260] sm:$0xff]
        %v1345 = vld [vmem:[%s1 + $0x268] sm:$0xff]
        %v1346 = vld [vmem:[%s1 + $0x270] sm:$0xff]
        %v1347 = vld [vmem:[%s1 + $0x278] sm:$0xff]
        %v1348 = vld [vmem:[%s1 + $0x280] sm:$0xff]
        %v1349 = vld [vmem:[%s1 + $0x288] sm:$0xff]
        %v1350 = vld [vmem:[%s1 + $0x290] sm:$0xff]
        %v1351 = vld [vmem:[%s1 + $0x298] sm:$0xff]
        %v1352 = vld [vmem:[%s1 + $0x2a0] sm:$0xff]
        %v1353 = vld [vmem:[%s1 + $0x2a8] sm:$0xff]
        %v1354 = vld [vmem:[%s1 + $0x2b0] sm:$0xff]
        %v1355 = vld [vmem:[%s1 + $0x2b8] sm:$0xff]
        %v1356 = vld [vmem:[%s1 + $0x2c0] sm:$0xff]
        %v1357 = vld [vmem:[%s1 + $0x2c8] sm:$0xff]
        %v1358 = vld [vmem:[%s1 + $0x2d0] sm:$0xff]
        %v1359 = vld [vmem:[%s1 + $0x2d8] sm:$0xff]
        %v1360 = vld [vmem:[%s1 + $0x2e0] sm:$0xff]
        %v1361 = vld [vmem:[%s1 + $0x2e8] sm:$0xff]
        %v1362 = vld [vmem:[%s1 + $0x2f0] sm:$0xff]
        %v1363 = vld [vmem:[%s1 + $0x2f8] sm:$0xff]
        %1364 = vmatprep.subr.mxu0 %v1341
        %1365 = vmatpush1.msra.mxu0 %v1340
        %1366 = vmatprep.subr.mxu0 %v1343
        %1367 = vmatpush1.msra.mxu0 %v1342
        %1368 = vmatprep.subr.mxu0 %v1345
        %1369 = vmatpush1.msra.mxu0 %v1344
        %1370 = vmatprep.subr.mxu0 %v1347
        %1371 = vmatpush1.msra.mxu0 %v1346
        %1372 = vmatprep.subr.mxu0 %v1349
        %1373 = vmatpush1.msra.mxu0 %v1348
        %1374 = vmatprep.subr.mxu0 %v1351
        %1375 = vmatpush1.msra.mxu0 %v1350
        %1376 = vmatprep.subr.mxu0 %v1353
        %1377 = vmatpush1.msra.mxu0 %v1352
        %1378 = vmatprep.subr.mxu0 %v1355
        %1379 = vmatpush1.msra.mxu0 %v1354
        %1380 = vmatprep.subr.mxu0 %v1357
        %1381 = vmatpush1.msra.mxu0 %v1356
        %1382 = vmatprep.subr.mxu0 %v1359
        %1383 = vmatpush1.msra.mxu0 %v1358
        %1384 = vmatprep.subr.mxu0 %v1361
        %1385 = vmatpush1.msra.mxu0 %v1360
        %1386 = vmatprep.subr.mxu0 %v1363
        %1387 = vmatpush1.msra.mxu0 %v1362
        %1388 = vmatprep.subr.mxu0 0.0
        %1389 = vmatpush1.msra.mxu0 0.0
        %1390 = vmatprep.subr.mxu0 0.0
        %1391 = vmatpush1.msra.mxu0 0.0
        %1392 = vmatprep.subr.mxu0 0.0
        %1393 = vmatpush1.msra.mxu0 0.0
        %1394 = vmatprep.subr.mxu0 0.0
        %1395 = vmatpush1.msra.mxu0 0.0
        %1396 = vmatprep.subr.mxu0 0.0
        %1397 = vmatpush1.msra.mxu0 0.0
        %1398 = vmatprep.subr.mxu0 0.0
        %1399 = vmatpush1.msra.mxu0 0.0
        %1400 = vmatprep.subr.mxu0 0.0
        %1401 = vmatpush1.msra.mxu0 0.0
        %1402 = vmatprep.subr.mxu0 0.0
        %1403 = vmatpush1.msra.mxu0 0.0
        %1404 = vmatprep.subr.mxu0 0.0
        %1405 = vmatpush1.msra.mxu0 0.0
        %1406 = vmatprep.subr.mxu0 0.0
        %1407 = vmatpush1.msra.mxu0 0.0
        %1408 = vmatprep.subr.mxu0 0.0
        %1409 = vmatpush1.msra.mxu0 0.0
        %1410 = vmatprep.subr.mxu0 0.0
        %1411 = vmatpush1.msra.mxu0 0.0
        %1412 = vmatprep.subr.mxu0 0.0
        %1413 = vmatpush1.msra.mxu0 0.0
        %1414 = vmatprep.subr.mxu0 0.0
        %1415 = vmatpush1.msra.mxu0 0.0
        %1416 = vmatprep.subr.mxu0 0.0
        %1417 = vmatpush1.msra.mxu0 0.0
        %1418 = vmatprep.subr.mxu0 0.0
        %1419 = vmatpush1.msra.mxu0 0.0
        %1420 = vmatprep.subr.mxu0 0.0
        %1421 = vmatpush1.msra.mxu0 0.0
        %1422 = vmatprep.subr.mxu0 0.0
        %1423 = vmatpush1.msra.mxu0 0.0
        %1424 = vmatprep.subr.mxu0 0.0
        %1425 = vmatpush1.msra.mxu0 0.0
        %1426 = vmatprep.subr.mxu0 0.0
        %1427 = vmatpush1.msra.mxu0 0.0
        %1428 = vmatprep.mubr.f32.mxu0 0.0
        %1429 = vmatmul.mubr.f32.gmra.mrb[0].mxu0 %v732
        %v1430 = vpop.f32.mrb[0].mxu0
        %v1431 = vadd.f32 0.0, %v1430
        %v1432 = vpop.f32.mrb[0].mxu0
        %v1433 = vadd.f32 0.0, %v1432
        %1434 = vdwg.mxu0
        %v1435 = vadd.f32 %v1116, %v1431
        %v1436 = vadd.f32 %v1117, %v1433
        %1437 = vmatprep.subr.mxu0 %v1341
        %1438 = vmatpush1.msra.mxu0 %v1340
        %1439 = vmatprep.subr.mxu0 %v1343
        %1440 = vmatpush1.msra.mxu0 %v1342
        %1441 = vmatprep.subr.mxu0 %v1345
        %1442 = vmatpush1.msra.mxu0 %v1344
        %1443 = vmatprep.subr.mxu0 %v1347
        %1444 = vmatpush1.msra.mxu0 %v1346
        %1445 = vmatprep.subr.mxu0 %v1349
        %1446 = vmatpush1.msra.mxu0 %v1348
        %1447 = vmatprep.subr.mxu0 %v1351
        %1448 = vmatpush1.msra.mxu0 %v1350
        %1449 = vmatprep.subr.mxu0 %v1353
        %1450 = vmatpush1.msra.mxu0 %v1352
        %1451 = vmatprep.subr.mxu0 %v1355
        %1452 = vmatpush1.msra.mxu0 %v1354
        %1453 = vmatprep.subr.mxu0 %v1357
        %1454 = vmatpush1.msra.mxu0 %v1356
        %1455 = vmatprep.subr.mxu0 %v1359
        %1456 = vmatpush1.msra.mxu0 %v1358
        %1457 = vmatprep.subr.mxu0 %v1361
        %1458 = vmatpush1.msra.mxu0 %v1360
        %1459 = vmatprep.subr.mxu0 %v1363
        %1460 = vmatpush1.msra.mxu0 %v1362
        %1461 = vmatprep.subr.mxu0 0.0
        %1462 = vmatpush1.msra.mxu0 0.0
        %1463 = vmatprep.subr.mxu0 0.0
        %1464 = vmatpush1.msra.mxu0 0.0
        %1465 = vmatprep.subr.mxu0 0.0
        %1466 = vmatpush1.msra.mxu0 0.0
        %1467 = vmatprep.subr.mxu0 0.0
        %1468 = vmatpush1.msra.mxu0 0.0
        %1469 = vmatprep.subr.mxu0 0.0
        %1470 = vmatpush1.msra.mxu0 0.0
        %1471 = vmatprep.subr.mxu0 0.0
        %1472 = vmatpush1.msra.mxu0 0.0
        %1473 = vmatprep.subr.mxu0 0.0
        %1474 = vmatpush1.msra.mxu0 0.0
        %1475 = vmatprep.subr.mxu0 0.0
        %1476 = vmatpush1.msra.mxu0 0.0
        %1477 = vmatprep.subr.mxu0 0.0
        %1478 = vmatpush1.msra.mxu0 0.0
        %1479 = vmatprep.subr.mxu0 0.0
        %1480 = vmatpush1.msra.mxu0 0.0
        %1481 = vmatprep.subr.mxu0 0.0
        %1482 = vmatpush1.msra.mxu0 0.0
        %1483 = vmatprep.subr.mxu0 0.0
        %1484 = vmatpush1.msra.mxu0 0.0
        %1485 = vmatprep.subr.mxu0 0.0
        %1486 = vmatpush1.msra.mxu0 0.0
        %1487 = vmatprep.subr.mxu0 0.0
        %1488 = vmatpush1.msra.mxu0 0.0
        %1489 = vmatprep.subr.mxu0 0.0
        %1490 = vmatpush1.msra.mxu0 0.0
        %1491 = vmatprep.subr.mxu0 0.0
        %1492 = vmatpush1.msra.mxu0 0.0
        %1493 = vmatprep.subr.mxu0 0.0
        %1494 = vmatpush1.msra.mxu0 0.0
        %1495 = vmatprep.subr.mxu0 0.0
        %1496 = vmatpush1.msra.mxu0 0.0
        %1497 = vmatprep.subr.mxu0 0.0
        %1498 = vmatpush1.msra.mxu0 0.0
        %1499 = vmatprep.subr.mxu0 0.0
        %1500 = vmatpush1.msra.mxu0 0.0
        %1501 = vmatprep.mubr.f32.mxu0 0.0
        %1502 = vmatmul.mubr.f32.gmra.mrb[0].mxu0 %v877
        %v1503 = vpop.f32.mrb[0].mxu0
        %v1504 = vadd.f32 0.0, %v1503
        %v1505 = vpop.f32.mrb[0].mxu0
        %v1506 = vadd.f32 0.0, %v1505
        %1507 = vdwg.mxu0
        %v1508 = vadd.f32 %v1189, %v1504
        %v1509 = vadd.f32 %v1190, %v1506
        %1510 = vmatprep.subr.mxu0 %v1341
        %1511 = vmatpush1.msra.mxu0 %v1340
        %1512 = vmatprep.subr.mxu0 %v1343
        %1513 = vmatpush1.msra.mxu0 %v1342
        %1514 = vmatprep.subr.mxu0 %v1345
        %1515 = vmatpush1.msra.mxu0 %v1344
        %1516 = vmatprep.subr.mxu0 %v1347
        %1517 = vmatpush1.msra.mxu0 %v1346
        %1518 = vmatprep.subr.mxu0 %v1349
        %1519 = vmatpush1.msra.mxu0 %v1348
        %1520 = vmatprep.subr.mxu0 %v1351
        %1521 = vmatpush1.msra.mxu0 %v1350
        %1522 = vmatprep.subr.mxu0 %v1353
        %1523 = vmatpush1.msra.mxu0 %v1352
        %1524 = vmatprep.subr.mxu0 %v1355
        %1525 = vmatpush1.msra.mxu0 %v1354
        %1526 = vmatprep.subr.mxu0 %v1357
        %1527 = vmatpush1.msra.mxu0 %v1356
        %1528 = vmatprep.subr.mxu0 %v1359
        %1529 = vmatpush1.msra.mxu0 %v1358
        %1530 = vmatprep.subr.mxu0 %v1361
        %1531 = vmatpush1.msra.mxu0 %v1360
        %1532 = vmatprep.subr.mxu0 %v1363
        %1533 = vmatpush1.msra.mxu0 %v1362
        %1534 = vmatprep.subr.mxu0 0.0
        %1535 = vmatpush1.msra.mxu0 0.0
        %1536 = vmatprep.subr.mxu0 0.0
        %1537 = vmatpush1.msra.mxu0 0.0
        %1538 = vmatprep.subr.mxu0 0.0
        %1539 = vmatpush1.msra.mxu0 0.0
        %1540 = vmatprep.subr.mxu0 0.0
        %1541 = vmatpush1.msra.mxu0 0.0
        %1542 = vmatprep.subr.mxu0 0.0
        %1543 = vmatpush1.msra.mxu0 0.0
        %1544 = vmatprep.subr.mxu0 0.0
        %1545 = vmatpush1.msra.mxu0 0.0
        %1546 = vmatprep.subr.mxu0 0.0
        %1547 = vmatpush1.msra.mxu0 0.0
        %1548 = vmatprep.subr.mxu0 0.0
        %1549 = vmatpush1.msra.mxu0 0.0
        %1550 = vmatprep.subr.mxu0 0.0
        %1551 = vmatpush1.msra.mxu0 0.0
        %1552 = vmatprep.subr.mxu0 0.0
        %1553 = vmatpush1.msra.mxu0 0.0
        %1554 = vmatprep.subr.mxu0 0.0
        %1555 = vmatpush1.msra.mxu0 0.0
        %1556 = vmatprep.subr.mxu0 0.0
        %1557 = vmatpush1.msra.mxu0 0.0
        %1558 = vmatprep.subr.mxu0 0.0
        %1559 = vmatpush1.msra.mxu0 0.0
        %1560 = vmatprep.subr.mxu0 0.0
        %1561 = vmatpush1.msra.mxu0 0.0
        %1562 = vmatprep.subr.mxu0 0.0
        %1563 = vmatpush1.msra.mxu0 0.0
        %1564 = vmatprep.subr.mxu0 0.0
        %1565 = vmatpush1.msra.mxu0 0.0
        %1566 = vmatprep.subr.mxu0 0.0
        %1567 = vmatpush1.msra.mxu0 0.0
        %1568 = vmatprep.subr.mxu0 0.0
        %1569 = vmatpush1.msra.mxu0 0.0
        %1570 = vmatprep.subr.mxu0 0.0
        %1571 = vmatpush1.msra.mxu0 0.0
        %1572 = vmatprep.subr.mxu0 0.0
        %1573 = vmatpush1.msra.mxu0 0.0
        %1574 = vmatprep.mubr.f32.mxu0 0.0
        %1575 = vmatmul.mubr.f32.gmra.mrb[0].mxu0 %v1265
        %v1576 = vpop.f32.mrb[0].mxu0
        %v1577 = vadd.f32 0.0, %v1576
        %v1578 = vpop.f32.mrb[0].mxu0
        %v1579 = vadd.f32 0.0, %v1578
        %1580 = vdwg.mxu0
        %v1581 = vadd.f32 %v1262, %v1577
        %v1582 = vadd.f32 %v1263, %v1579
        %v1583 = vrot.slane %v386, 1
        %v1584 = vsel %vm437, %v1583, 0
        %1586 = vmatprep.subr.mxu0 %v1341
        %1587 = vmatpush1.msra.mxu0 %v1340
        %1588 = vmatprep.subr.mxu0 %v1343
        %1589 = vmatpush1.msra.mxu0 %v1342
        %1590 = vmatprep.subr.mxu0 %v1345
        %1591 = vmatpush1.msra.mxu0 %v1344
        %1592 = vmatprep.subr.mxu0 %v1347
        %1593 = vmatpush1.msra.mxu0 %v1346
        %1594 = vmatprep.subr.mxu0 %v1349
        %1595 = vmatpush1.msra.mxu0 %v1348
        %1596 = vmatprep.subr.mxu0 %v1351
        %1597 = vmatpush1.msra.mxu0 %v1350
        %1598 = vmatprep.subr.mxu0 %v1353
        %1599 = vmatpush1.msra.mxu0 %v1352
        %1600 = vmatprep.subr.mxu0 %v1355
        %1601 = vmatpush1.msra.mxu0 %v1354
        %1602 = vmatprep.subr.mxu0 %v1357
        %1603 = vmatpush1.msra.mxu0 %v1356
        %1604 = vmatprep.subr.mxu0 %v1359
        %1605 = vmatpush1.msra.mxu0 %v1358
        %1606 = vmatprep.subr.mxu0 %v1361
        %1607 = vmatpush1.msra.mxu0 %v1360
        %1608 = vmatprep.subr.mxu0 %v1363
        %1609 = vmatpush1.msra.mxu0 %v1362
        %1610 = vmatprep.subr.mxu0 0.0
        %1611 = vmatpush1.msra.mxu0 0.0
        %1612 = vmatprep.subr.mxu0 0.0
        %1613 = vmatpush1.msra.mxu0 0.0
        %1614 = vmatprep.subr.mxu0 0.0
        %1615 = vmatpush1.msra.mxu0 0.0
        %1616 = vmatprep.subr.mxu0 0.0
        %1617 = vmatpush1.msra.mxu0 0.0
        %1618 = vmatprep.subr.mxu0 0.0
        %1619 = vmatpush1.msra.mxu0 0.0
        %1620 = vmatprep.subr.mxu0 0.0
        %1621 = vmatpush1.msra.mxu0 0.0
        %1622 = vmatprep.subr.mxu0 0.0
        %1623 = vmatpush1.msra.mxu0 0.0
        %1624 = vmatprep.subr.mxu0 0.0
        %1625 = vmatpush1.msra.mxu0 0.0
        %1626 = vmatprep.subr.mxu0 0.0
        %1627 = vmatpush1.msra.mxu0 0.0
        %1628 = vmatprep.subr.mxu0 0.0
        %1629 = vmatpush1.msra.mxu0 0.0
        %1630 = vmatprep.subr.mxu0 0.0
        %1631 = vmatpush1.msra.mxu0 0.0
        %1632 = vmatprep.subr.mxu0 0.0
        %1633 = vmatpush1.msra.mxu0 0.0
        %1634 = vmatprep.subr.mxu0 0.0
        %1635 = vmatpush1.msra.mxu0 0.0
        %1636 = vmatprep.subr.mxu0 0.0
        %1637 = vmatpush1.msra.mxu0 0.0
        %1638 = vmatprep.subr.mxu0 0.0
        %1639 = vmatpush1.msra.mxu0 0.0
        %1640 = vmatprep.subr.mxu0 0.0
        %1641 = vmatpush1.msra.mxu0 0.0
        %1642 = vmatprep.subr.mxu0 0.0
        %1643 = vmatpush1.msra.mxu0 0.0
        %1644 = vmatprep.subr.mxu0 0.0
        %1645 = vmatpush1.msra.mxu0 0.0
        %1646 = vmatprep.subr.mxu0 0.0
        %1647 = vmatpush1.msra.mxu0 0.0
        %1648 = vmatprep.subr.mxu0 0.0
        %1649 = vmatpush1.msra.mxu0 0.0
        %1650 = vmatprep.mubr.f32.mxu0 0.0
        %1651 = vmatmul.mubr.f32.gmra.mrb[0].mxu0 %v1584
        %v1652 = vpop.f32.mrb[0].mxu0
        %v1653 = vadd.f32 0.0, %v1652
        %v1654 = vpop.f32.mrb[0].mxu0
        %v1655 = vadd.f32 0.0, %v1654
        %1656 = vdwg.mxu0
        %v1657 = vadd.f32 %v1338, %v1653
        %v1658 = vadd.f32 %v1339, %v1655
        %v1659 = vld [vmem:[%s1 + $0x300] sm:$0xff]
        %v1660 = vld [vmem:[%s1 + $0x308] sm:$0xff]
        %v1661 = vld [vmem:[%s1 + $0x310] sm:$0xff]
        %v1662 = vld [vmem:[%s1 + $0x318] sm:$0xff]
        %v1663 = vld [vmem:[%s1 + $0x320] sm:$0xff]
        %v1664 = vld [vmem:[%s1 + $0x328] sm:$0xff]
        %v1665 = vld [vmem:[%s1 + $0x330] sm:$0xff]
        %v1666 = vld [vmem:[%s1 + $0x338] sm:$0xff]
        %v1667 = vld [vmem:[%s1 + $0x340] sm:$0xff]
        %v1668 = vld [vmem:[%s1 + $0x348] sm:$0xff]
        %v1669 = vld [vmem:[%s1 + $0x350] sm:$0xff]
        %v1670 = vld [vmem:[%s1 + $0x358] sm:$0xff]
        %v1671 = vld [vmem:[%s1 + $0x360] sm:$0xff]
        %v1672 = vld [vmem:[%s1 + $0x368] sm:$0xff]
        %v1673 = vld [vmem:[%s1 + $0x370] sm:$0xff]
        %v1674 = vld [vmem:[%s1 + $0x378] sm:$0xff]
        %v1675 = vld [vmem:[%s1 + $0x380] sm:$0xff]
        %v1676 = vld [vmem:[%s1 + $0x388] sm:$0xff]
        %v1677 = vld [vmem:[%s1 + $0x390] sm:$0xff]
        %v1678 = vld [vmem:[%s1 + $0x398] sm:$0xff]
        %v1679 = vld [vmem:[%s1 + $0x3a0] sm:$0xff]
        %v1680 = vld [vmem:[%s1 + $0x3a8] sm:$0xff]
        %v1681 = vld [vmem:[%s1 + $0x3b0] sm:$0xff]
        %v1682 = vld [vmem:[%s1 + $0x3b8] sm:$0xff]
        %1683 = vmatprep.subr.mxu0 %v1660
        %1684 = vmatpush1.msra.mxu0 %v1659
        %1685 = vmatprep.subr.mxu0 %v1662
        %1686 = vmatpush1.msra.mxu0 %v1661
        %1687 = vmatprep.subr.mxu0 %v1664
        %1688 = vmatpush1.msra.mxu0 %v1663
        %1689 = vmatprep.subr.mxu0 %v1666
        %1690 = vmatpush1.msra.mxu0 %v1665
        %1691 = vmatprep.subr.mxu0 %v1668
        %1692 = vmatpush1.msra.mxu0 %v1667
        %1693 = vmatprep.subr.mxu0 %v1670
        %1694 = vmatpush1.msra.mxu0 %v1669
        %1695 = vmatprep.subr.mxu0 %v1672
        %1696 = vmatpush1.msra.mxu0 %v1671
        %1697 = vmatprep.subr.mxu0 %v1674
        %1698 = vmatpush1.msra.mxu0 %v1673
        %1699 = vmatprep.subr.mxu0 %v1676
        %1700 = vmatpush1.msra.mxu0 %v1675
        %1701 = vmatprep.subr.mxu0 %v1678
        %1702 = vmatpush1.msra.mxu0 %v1677
        %1703 = vmatprep.subr.mxu0 %v1680
        %1704 = vmatpush1.msra.mxu0 %v1679
        %1705 = vmatprep.subr.mxu0 %v1682
        %1706 = vmatpush1.msra.mxu0 %v1681
        %1707 = vmatprep.subr.mxu0 0.0
        %1708 = vmatpush1.msra.mxu0 0.0
        %1709 = vmatprep.subr.mxu0 0.0
        %1710 = vmatpush1.msra.mxu0 0.0
        %1711 = vmatprep.subr.mxu0 0.0
        %1712 = vmatpush1.msra.mxu0 0.0
        %1713 = vmatprep.subr.mxu0 0.0
        %1714 = vmatpush1.msra.mxu0 0.0
        %1715 = vmatprep.subr.mxu0 0.0
        %1716 = vmatpush1.msra.mxu0 0.0
        %1717 = vmatprep.subr.mxu0 0.0
        %1718 = vmatpush1.msra.mxu0 0.0
        %1719 = vmatprep.subr.mxu0 0.0
        %1720 = vmatpush1.msra.mxu0 0.0
        %1721 = vmatprep.subr.mxu0 0.0
        %1722 = vmatpush1.msra.mxu0 0.0
        %1723 = vmatprep.subr.mxu0 0.0
        %1724 = vmatpush1.msra.mxu0 0.0
        %1725 = vmatprep.subr.mxu0 0.0
        %1726 = vmatpush1.msra.mxu0 0.0
        %1727 = vmatprep.subr.mxu0 0.0
        %1728 = vmatpush1.msra.mxu0 0.0
        %1729 = vmatprep.subr.mxu0 0.0
        %1730 = vmatpush1.msra.mxu0 0.0
        %1731 = vmatprep.subr.mxu0 0.0
        %1732 = vmatpush1.msra.mxu0 0.0
        %1733 = vmatprep.subr.mxu0 0.0
        %1734 = vmatpush1.msra.mxu0 0.0
        %1735 = vmatprep.subr.mxu0 0.0
        %1736 = vmatpush1.msra.mxu0 0.0
        %1737 = vmatprep.subr.mxu0 0.0
        %1738 = vmatpush1.msra.mxu0 0.0
        %1739 = vmatprep.subr.mxu0 0.0
        %1740 = vmatpush1.msra.mxu0 0.0
        %1741 = vmatprep.subr.mxu0 0.0
        %1742 = vmatpush1.msra.mxu0 0.0
        %1743 = vmatprep.subr.mxu0 0.0
        %1744 = vmatpush1.msra.mxu0 0.0
        %1745 = vmatprep.subr.mxu0 0.0
        %1746 = vmatpush1.msra.mxu0 0.0
        %1747 = vmatprep.mubr.f32.mxu0 0.0
        %1748 = vmatmul.mubr.f32.gmra.mrb[0].mxu0 %v877
        %v1749 = vpop.f32.mrb[0].mxu0
        %v1750 = vadd.f32 0.0, %v1749
        %v1751 = vpop.f32.mrb[0].mxu0
        %v1752 = vadd.f32 0.0, %v1751
        %1753 = vdwg.mxu0
        %v1754 = vadd.f32 %v1435, %v1750
        %v1755 = vadd.f32 %v1436, %v1752
        %1756 = vmatprep.subr.mxu0 %v1660
        %1757 = vmatpush1.msra.mxu0 %v1659
        %1758 = vmatprep.subr.mxu0 %v1662
        %1759 = vmatpush1.msra.mxu0 %v1661
        %1760 = vmatprep.subr.mxu0 %v1664
        %1761 = vmatpush1.msra.mxu0 %v1663
        %1762 = vmatprep.subr.mxu0 %v1666
        %1763 = vmatpush1.msra.mxu0 %v1665
        %1764 = vmatprep.subr.mxu0 %v1668
        %1765 = vmatpush1.msra.mxu0 %v1667
        %1766 = vmatprep.subr.mxu0 %v1670
        %1767 = vmatpush1.msra.mxu0 %v1669
        %1768 = vmatprep.subr.mxu0 %v1672
        %1769 = vmatpush1.msra.mxu0 %v1671
        %1770 = vmatprep.subr.mxu0 %v1674
        %1771 = vmatpush1.msra.mxu0 %v1673
        %1772 = vmatprep.subr.mxu0 %v1676
        %1773 = vmatpush1.msra.mxu0 %v1675
        %1774 = vmatprep.subr.mxu0 %v1678
        %1775 = vmatpush1.msra.mxu0 %v1677
        %1776 = vmatprep.subr.mxu0 %v1680
        %1777 = vmatpush1.msra.mxu0 %v1679
        %1778 = vmatprep.subr.mxu0 %v1682
        %1779 = vmatpush1.msra.mxu0 %v1681
        %1780 = vmatprep.subr.mxu0 0.0
        %1781 = vmatpush1.msra.mxu0 0.0
        %1782 = vmatprep.subr.mxu0 0.0
        %1783 = vmatpush1.msra.mxu0 0.0
        %1784 = vmatprep.subr.mxu0 0.0
        %1785 = vmatpush1.msra.mxu0 0.0
        %1786 = vmatprep.subr.mxu0 0.0
        %1787 = vmatpush1.msra.mxu0 0.0
        %1788 = vmatprep.subr.mxu0 0.0
        %1789 = vmatpush1.msra.mxu0 0.0
        %1790 = vmatprep.subr.mxu0 0.0
        %1791 = vmatpush1.msra.mxu0 0.0
        %1792 = vmatprep.subr.mxu0 0.0
        %1793 = vmatpush1.msra.mxu0 0.0
        %1794 = vmatprep.subr.mxu0 0.0
        %1795 = vmatpush1.msra.mxu0 0.0
        %1796 = vmatprep.subr.mxu0 0.0
        %1797 = vmatpush1.msra.mxu0 0.0
        %1798 = vmatprep.subr.mxu0 0.0
        %1799 = vmatpush1.msra.mxu0 0.0
        %1800 = vmatprep.subr.mxu0 0.0
        %1801 = vmatpush1.msra.mxu0 0.0
        %1802 = vmatprep.subr.mxu0 0.0
        %1803 = vmatpush1.msra.mxu0 0.0
        %1804 = vmatprep.subr.mxu0 0.0
        %1805 = vmatpush1.msra.mxu0 0.0
        %1806 = vmatprep.subr.mxu0 0.0
        %1807 = vmatpush1.msra.mxu0 0.0
        %1808 = vmatprep.subr.mxu0 0.0
        %1809 = vmatpush1.msra.mxu0 0.0
        %1810 = vmatprep.subr.mxu0 0.0
        %1811 = vmatpush1.msra.mxu0 0.0
        %1812 = vmatprep.subr.mxu0 0.0
        %1813 = vmatpush1.msra.mxu0 0.0
        %1814 = vmatprep.subr.mxu0 0.0
        %1815 = vmatpush1.msra.mxu0 0.0
        %1816 = vmatprep.subr.mxu0 0.0
        %1817 = vmatpush1.msra.mxu0 0.0
        %1818 = vmatprep.subr.mxu0 0.0
        %1819 = vmatpush1.msra.mxu0 0.0
        %1820 = vmatprep.mubr.f32.mxu0 0.0
        %1821 = vmatmul.mubr.f32.gmra.mrb[0].mxu0 %v1265
        %v1822 = vpop.f32.mrb[0].mxu0
        %v1823 = vadd.f32 0.0, %v1822
        %v1824 = vpop.f32.mrb[0].mxu0
        %v1825 = vadd.f32 0.0, %v1824
        %1826 = vdwg.mxu0
        %v1827 = vadd.f32 %v1508, %v1823
        %v1828 = vadd.f32 %v1509, %v1825
        %1829 = vmatprep.subr.mxu0 %v1660
        %1830 = vmatpush1.msra.mxu0 %v1659
        %1831 = vmatprep.subr.mxu0 %v1662
        %1832 = vmatpush1.msra.mxu0 %v1661
        %1833 = vmatprep.subr.mxu0 %v1664
        %1834 = vmatpush1.msra.mxu0 %v1663
        %1835 = vmatprep.subr.mxu0 %v1666
        %1836 = vmatpush1.msra.mxu0 %v1665
        %1837 = vmatprep.subr.mxu0 %v1668
        %1838 = vmatpush1.msra.mxu0 %v1667
        %1839 = vmatprep.subr.mxu0 %v1670
        %1840 = vmatpush1.msra.mxu0 %v1669
        %1841 = vmatprep.subr.mxu0 %v1672
        %1842 = vmatpush1.msra.mxu0 %v1671
        %1843 = vmatprep.subr.mxu0 %v1674
        %1844 = vmatpush1.msra.mxu0 %v1673
        %1845 = vmatprep.subr.mxu0 %v1676
        %1846 = vmatpush1.msra.mxu0 %v1675
        %1847 = vmatprep.subr.mxu0 %v1678
        %1848 = vmatpush1.msra.mxu0 %v1677
        %1849 = vmatprep.subr.mxu0 %v1680
        %1850 = vmatpush1.msra.mxu0 %v1679
        %1851 = vmatprep.subr.mxu0 %v1682
        %1852 = vmatpush1.msra.mxu0 %v1681
        %1853 = vmatprep.subr.mxu0 0.0
        %1854 = vmatpush1.msra.mxu0 0.0
        %1855 = vmatprep.subr.mxu0 0.0
        %1856 = vmatpush1.msra.mxu0 0.0
        %1857 = vmatprep.subr.mxu0 0.0
        %1858 = vmatpush1.msra.mxu0 0.0
        %1859 = vmatprep.subr.mxu0 0.0
        %1860 = vmatpush1.msra.mxu0 0.0
        %1861 = vmatprep.subr.mxu0 0.0
        %1862 = vmatpush1.msra.mxu0 0.0
        %1863 = vmatprep.subr.mxu0 0.0
        %1864 = vmatpush1.msra.mxu0 0.0
        %1865 = vmatprep.subr.mxu0 0.0
        %1866 = vmatpush1.msra.mxu0 0.0
        %1867 = vmatprep.subr.mxu0 0.0
        %1868 = vmatpush1.msra.mxu0 0.0
        %1869 = vmatprep.subr.mxu0 0.0
        %1870 = vmatpush1.msra.mxu0 0.0
        %1871 = vmatprep.subr.mxu0 0.0
        %1872 = vmatpush1.msra.mxu0 0.0
        %1873 = vmatprep.subr.mxu0 0.0
        %1874 = vmatpush1.msra.mxu0 0.0
        %1875 = vmatprep.subr.mxu0 0.0
        %1876 = vmatpush1.msra.mxu0 0.0
        %1877 = vmatprep.subr.mxu0 0.0
        %1878 = vmatpush1.msra.mxu0 0.0
        %1879 = vmatprep.subr.mxu0 0.0
        %1880 = vmatpush1.msra.mxu0 0.0
        %1881 = vmatprep.subr.mxu0 0.0
        %1882 = vmatpush1.msra.mxu0 0.0
        %1883 = vmatprep.subr.mxu0 0.0
        %1884 = vmatpush1.msra.mxu0 0.0
        %1885 = vmatprep.subr.mxu0 0.0
        %1886 = vmatpush1.msra.mxu0 0.0
        %1887 = vmatprep.subr.mxu0 0.0
        %1888 = vmatpush1.msra.mxu0 0.0
        %1889 = vmatprep.subr.mxu0 0.0
        %1890 = vmatpush1.msra.mxu0 0.0
        %1891 = vmatprep.subr.mxu0 0.0
        %1892 = vmatpush1.msra.mxu0 0.0
        %1893 = vmatprep.mubr.f32.mxu0 0.0
        %1894 = vmatmul.mubr.f32.gmra.mrb[0].mxu0 %v1584
        %v1895 = vpop.f32.mrb[0].mxu0
        %v1896 = vadd.f32 0.0, %v1895
        %v1897 = vpop.f32.mrb[0].mxu0
        %v1898 = vadd.f32 0.0, %v1897
        %1899 = vdwg.mxu0
        %v1900 = vadd.f32 %v1581, %v1896
        %v1901 = vadd.f32 %v1582, %v1898
        %v1902 = vrot.slane %v387, 1
        %v1903 = vsel %vm437, %v1902, 0
        %1905 = vmatprep.subr.mxu0 %v1660
        %1906 = vmatpush1.msra.mxu0 %v1659
        %1907 = vmatprep.subr.mxu0 %v1662
        %1908 = vmatpush1.msra.mxu0 %v1661
        %1909 = vmatprep.subr.mxu0 %v1664
        %1910 = vmatpush1.msra.mxu0 %v1663
        %1911 = vmatprep.subr.mxu0 %v1666
        %1912 = vmatpush1.msra.mxu0 %v1665
        %1913 = vmatprep.subr.mxu0 %v1668
        %1914 = vmatpush1.msra.mxu0 %v1667
        %1915 = vmatprep.subr.mxu0 %v1670
        %1916 = vmatpush1.msra.mxu0 %v1669
        %1917 = vmatprep.subr.mxu0 %v1672
        %1918 = vmatpush1.msra.mxu0 %v1671
        %1919 = vmatprep.subr.mxu0 %v1674
        %1920 = vmatpush1.msra.mxu0 %v1673
        %1921 = vmatprep.subr.mxu0 %v1676
        %1922 = vmatpush1.msra.mxu0 %v1675
        %1923 = vmatprep.subr.mxu0 %v1678
        %1924 = vmatpush1.msra.mxu0 %v1677
        %1925 = vmatprep.subr.mxu0 %v1680
        %1926 = vmatpush1.msra.mxu0 %v1679
        %1927 = vmatprep.subr.mxu0 %v1682
        %1928 = vmatpush1.msra.mxu0 %v1681
        %1929 = vmatprep.subr.mxu0 0.0
        %1930 = vmatpush1.msra.mxu0 0.0
        %1931 = vmatprep.subr.mxu0 0.0
        %1932 = vmatpush1.msra.mxu0 0.0
        %1933 = vmatprep.subr.mxu0 0.0
        %1934 = vmatpush1.msra.mxu0 0.0
        %1935 = vmatprep.subr.mxu0 0.0
        %1936 = vmatpush1.msra.mxu0 0.0
        %1937 = vmatprep.subr.mxu0 0.0
        %1938 = vmatpush1.msra.mxu0 0.0
        %1939 = vmatprep.subr.mxu0 0.0
        %1940 = vmatpush1.msra.mxu0 0.0
        %1941 = vmatprep.subr.mxu0 0.0
        %1942 = vmatpush1.msra.mxu0 0.0
        %1943 = vmatprep.subr.mxu0 0.0
        %1944 = vmatpush1.msra.mxu0 0.0
        %1945 = vmatprep.subr.mxu0 0.0
        %1946 = vmatpush1.msra.mxu0 0.0
        %1947 = vmatprep.subr.mxu0 0.0
        %1948 = vmatpush1.msra.mxu0 0.0
        %1949 = vmatprep.subr.mxu0 0.0
        %1950 = vmatpush1.msra.mxu0 0.0
        %1951 = vmatprep.subr.mxu0 0.0
        %1952 = vmatpush1.msra.mxu0 0.0
        %1953 = vmatprep.subr.mxu0 0.0
        %1954 = vmatpush1.msra.mxu0 0.0
        %1955 = vmatprep.subr.mxu0 0.0
        %1956 = vmatpush1.msra.mxu0 0.0
        %1957 = vmatprep.subr.mxu0 0.0
        %1958 = vmatpush1.msra.mxu0 0.0
        %1959 = vmatprep.subr.mxu0 0.0
        %1960 = vmatpush1.msra.mxu0 0.0
        %1961 = vmatprep.subr.mxu0 0.0
        %1962 = vmatpush1.msra.mxu0 0.0
        %1963 = vmatprep.subr.mxu0 0.0
        %1964 = vmatpush1.msra.mxu0 0.0
        %1965 = vmatprep.subr.mxu0 0.0
        %1966 = vmatpush1.msra.mxu0 0.0
        %1967 = vmatprep.subr.mxu0 0.0
        %1968 = vmatpush1.msra.mxu0 0.0
        %1969 = vmatprep.mubr.f32.mxu0 0.0
        %1970 = vmatmul.mubr.f32.gmra.mrb[0].mxu0 %v1903
        %v1971 = vpop.f32.mrb[0].mxu0
        %v1972 = vadd.f32 0.0, %v1971
        %v1973 = vpop.f32.mrb[0].mxu0
        %v1974 = vadd.f32 0.0, %v1973
        %1975 = vdwg.mxu0
        %v1976 = vadd.f32 %v1657, %v1972
        %v1977 = vadd.f32 %v1658, %v1974
        %1980 = vrot.lane.b32.xlu0 %v1754, 44
        %v1981 = vpop.permute.xlu0 %1980
        %1982 = vrot.lane.b32.xlu0 %v1755, 44
        %v1983 = vpop.permute.xlu0 %1982
        %vm1984 = vcmask 359424
        %v1985 = vsel %vm1984, %v1981, %v1983
        %v1987 = vmax.f32 %v1754, %v1985
        %1990 = vrot.lane.b32.xlu0 %v1827, 44
        %v1991 = vpop.permute.xlu0 %1990
        %1992 = vrot.lane.b32.xlu0 %v1828, 44
        %v1993 = vpop.permute.xlu0 %1992
        %v1994 = vsel %vm1984, %v1991, %v1993
        %v1996 = vmax.f32 %v1827, %v1994
        %v1997 = vmax.f32 %v1987, %v1996
        %v1999 = vlaneseq
        %v2000 = vshrl.u32 %v1999, 7
        %v2001 = vsub.s32 0, %v2000
        %v2002 = vrot.slane %v388, %v2001
        %v2004 = vadd.f32 %v1997, %v2002
        %v2005 = vmax.f32 %v2004, 0.0
        %2008 = vrot.lane.b32.xlu0 %v1900, 44
        %v2009 = vpop.permute.xlu0 %2008
        %2010 = vrot.lane.b32.xlu0 %v1901, 44
        %v2011 = vpop.permute.xlu0 %2010
        %v2012 = vsel %vm1984, %v2009, %v2011
        %v2014 = vmax.f32 %v1900, %v2012
        %2017 = vrot.lane.b32.xlu0 %v1976, 44
        %v2018 = vpop.permute.xlu0 %2017
        %2019 = vrot.lane.b32.xlu0 %v1977, 44
        %v2020 = vpop.permute.xlu0 %2019
        %v2021 = vsel %vm1984, %v2018, %v2020
        %v2023 = vmax.f32 %v1976, %v2021
        %v2024 = vmax.f32 %v2014, %v2023
        %v2025 = vadd.f32 %v2024, %v2002
        %v2026 = vmax.f32 %v2025, 0.0
        %v2027 = vld [vmem:[%s4] sm:$0x1]
        %v2028 = vld [vmem:[%s3] sm:$0xff]
        %v2029 = vld [vmem:[%s3 + $0x8] sm:$0xff]
        %v2030 = vld [vmem:[%s3 + $0x10] sm:$0xff]
        %v2031 = vld [vmem:[%s3 + $0x18] sm:$0xff]
        %v2032 = vld [vmem:[%s3 + $0x20] sm:$0xff]
        %v2033 = vld [vmem:[%s3 + $0x28] sm:$0xff]
        %v2034 = vld [vmem:[%s3 + $0x30] sm:$0xff]
        %v2035 = vld [vmem:[%s3 + $0x38] sm:$0xff]
        %v2036 = vld [vmem:[%s3 + $0x40] sm:$0xff]
        %v2037 = vld [vmem:[%s3 + $0x48] sm:$0xff]
        %v2038 = vld [vmem:[%s3 + $0x50] sm:$0xff]
        %v2039 = vld [vmem:[%s3 + $0x58] sm:$0xff]
        %v2040 = vld [vmem:[%s3 + $0x60] sm:$0xff]
        %v2041 = vld [vmem:[%s3 + $0x68] sm:$0xff]
        %v2042 = vld [vmem:[%s3 + $0x70] sm:$0xff]
        %v2043 = vld [vmem:[%s3 + $0x78] sm:$0xff]
        %v2044 = vld [vmem:[%s3 + $0x80] sm:$0xff]
        %v2045 = vld [vmem:[%s3 + $0x88] sm:$0xff]
        %v2046 = vld [vmem:[%s3 + $0x90] sm:$0xff]
        %v2047 = vld [vmem:[%s3 + $0x98] sm:$0xff]
        %v2048 = vld [vmem:[%s3 + $0xa0] sm:$0xf]
        %v2049 = vld [vmem:[%s3 + $0xa8] sm:$0xf]
        %v2050 = vld [vmem:[%s3 + $0xa0] sm:$0xf0]
        %v2051 = vld [vmem:[%s3 + $0xa8] sm:$0xf0]
        %v2052 = vld [vmem:[%s3 + $0xb0] sm:$0xff]
        %v2053 = vld [vmem:[%s3 + $0xb8] sm:$0xff]
        %v2054 = vld [vmem:[%s3 + $0xc0] sm:$0xff]
        %v2055 = vld [vmem:[%s3 + $0xc8] sm:$0xff]
        %v2056 = vld [vmem:[%s3 + $0xd0] sm:$0xff]
        %v2057 = vld [vmem:[%s3 + $0xd8] sm:$0xff]
        %v2058 = vld [vmem:[%s3 + $0xe0] sm:$0xff]
        %v2059 = vld [vmem:[%s3 + $0xe8] sm:$0xff]
        %v2060 = vld [vmem:[%s3 + $0xf0] sm:$0xff]
        %v2061 = vld [vmem:[%s3 + $0xf8] sm:$0xff]
        %v2062 = vld [vmem:[%s3 + $0x100] sm:$0xff]
        %v2063 = vld [vmem:[%s3 + $0x108] sm:$0xff]
        %v2064 = vld [vmem:[%s3 + $0x110] sm:$0xff]
        %v2065 = vld [vmem:[%s3 + $0x118] sm:$0xff]
        %v2066 = vld [vmem:[%s3 + $0x120] sm:$0xff]
        %v2067 = vld [vmem:[%s3 + $0x128] sm:$0xff]
        %v2068 = vld [vmem:[%s3 + $0x130] sm:$0xff]
        %v2069 = vld [vmem:[%s3 + $0x138] sm:$0xff]
        %v2070 = vld [vmem:[%s3 + $0x140] sm:$0xff]
        %v2071 = vld [vmem:[%s3 + $0x148] sm:$0xff]
        %vm2094 = vcmask 1043456
        %v2095 = vrot.slane %v2050, 4
        %v2096 = vrot.slane %v2052, 4
        %v2097 = vsel %vm2094, %v2095, %v2096
        %v2098 = vrot.slane %v2051, 4
        %v2099 = vrot.slane %v2053, 4
        %v2100 = vsel %vm2094, %v2098, %v2099
        %v2101 = vrot.slane %v2054, 4
        %v2102 = vsel %vm2094, %v2096, %v2101
        %v2103 = vrot.slane %v2055, 4
        %v2104 = vsel %vm2094, %v2099, %v2103
        %v2105 = vrot.slane %v2056, 4
        %v2106 = vsel %vm2094, %v2101, %v2105
        %v2107 = vrot.slane %v2057, 4
        %v2108 = vsel %vm2094, %v2103, %v2107
        %v2109 = vrot.slane %v2058, 4
        %v2110 = vsel %vm2094, %v2105, %v2109
        %v2111 = vrot.slane %v2059, 4
        %v2112 = vsel %vm2094, %v2107, %v2111
        %v2113 = vrot.slane %v2060, 4
        %v2114 = vsel %vm2094, %v2109, %v2113
        %v2115 = vrot.slane %v2061, 4
        %v2116 = vsel %vm2094, %v2111, %v2115
        %v2117 = vrot.slane %v2062, 4
        %v2118 = vsel %vm2094, %v2113, %v2117
        %v2119 = vrot.slane %v2063, 4
        %v2120 = vsel %vm2094, %v2115, %v2119
        %v2121 = vrot.slane %v2064, 4
        %v2122 = vsel %vm2094, %v2117, %v2121
        %v2123 = vrot.slane %v2065, 4
        %v2124 = vsel %vm2094, %v2119, %v2123
        %v2125 = vrot.slane %v2066, 4
        %v2126 = vsel %vm2094, %v2121, %v2125
        %v2127 = vrot.slane %v2067, 4
        %v2128 = vsel %vm2094, %v2123, %v2127
        %v2129 = vrot.slane %v2068, 4
        %v2130 = vsel %vm2094, %v2125, %v2129
        %v2131 = vrot.slane %v2069, 4
        %v2132 = vsel %vm2094, %v2127, %v2131
        %v2133 = vrot.slane %v2070, 4
        %v2134 = vsel %vm2094, %v2129, %v2133
        %v2135 = vrot.slane %v2071, 4
        %v2136 = vsel %vm2094, %v2131, %v2135
        %vm2157 = vcmask 687104
        %v2159 = vsel %vm2157, %v2026, 0
        %v2161 = vsel %vm2094, %v2133, 0
        %v2163 = vsel %vm2094, %v2135, 0
        %2165 = vmatprep.subr.mxu0 %v2100
        %2166 = vmatpush1.msra.mxu0 %v2097
        %2167 = vmatprep.subr.mxu0 %v2104
        %2168 = vmatpush1.msra.mxu0 %v2102
        %2169 = vmatprep.subr.mxu0 %v2108
        %2170 = vmatpush1.msra.mxu0 %v2106
        %2171 = vmatprep.subr.mxu0 %v2112
        %2172 = vmatpush1.msra.mxu0 %v2110
        %2173 = vmatprep.subr.mxu0 %v2116
        %2174 = vmatpush1.msra.mxu0 %v2114
        %2175 = vmatprep.subr.mxu0 %v2120
        %2176 = vmatpush1.msra.mxu0 %v2118
        %2177 = vmatprep.subr.mxu0 %v2124
        %2178 = vmatpush1.msra.mxu0 %v2122
        %2179 = vmatprep.subr.mxu0 %v2128
        %2180 = vmatpush1.msra.mxu0 %v2126
        %2181 = vmatprep.subr.mxu0 %v2132
        %2182 = vmatpush1.msra.mxu0 %v2130
        %2183 = vmatprep.subr.mxu0 %v2136
        %2184 = vmatpush1.msra.mxu0 %v2134
        %2185 = vmatprep.subr.mxu0 %v2163
        %2186 = vmatpush1.msra.mxu0 %v2161
        %2187 = vmatprep.subr.mxu0 0.0
        %2188 = vmatpush1.msra.mxu0 0.0
        %2189 = vmatprep.subr.mxu0 0.0
        %2190 = vmatpush1.msra.mxu0 0.0
        %2191 = vmatprep.subr.mxu0 0.0
        %2192 = vmatpush1.msra.mxu0 0.0
        %2193 = vmatprep.subr.mxu0 0.0
        %2194 = vmatpush1.msra.mxu0 0.0
        %2195 = vmatprep.subr.mxu0 0.0
        %2196 = vmatpush1.msra.mxu0 0.0
        %2197 = vmatprep.subr.mxu0 0.0
        %2198 = vmatpush1.msra.mxu0 0.0
        %2199 = vmatprep.subr.mxu0 0.0
        %2200 = vmatpush1.msra.mxu0 0.0
        %2201 = vmatprep.subr.mxu0 0.0
        %2202 = vmatpush1.msra.mxu0 0.0
        %2203 = vmatprep.subr.mxu0 0.0
        %2204 = vmatpush1.msra.mxu0 0.0
        %2205 = vmatprep.subr.mxu0 0.0
        %2206 = vmatpush1.msra.mxu0 0.0
        %2207 = vmatprep.subr.mxu0 0.0
        %2208 = vmatpush1.msra.mxu0 0.0
        %2209 = vmatprep.subr.mxu0 0.0
        %2210 = vmatpush1.msra.mxu0 0.0
        %2211 = vmatprep.subr.mxu0 0.0
        %2212 = vmatpush1.msra.mxu0 0.0
        %2213 = vmatprep.subr.mxu0 0.0
        %2214 = vmatpush1.msra.mxu0 0.0
        %2215 = vmatprep.subr.mxu0 0.0
        %2216 = vmatpush1.msra.mxu0 0.0
        %2217 = vmatprep.subr.mxu0 0.0
        %2218 = vmatpush1.msra.mxu0 0.0
        %2219 = vmatprep.subr.mxu0 0.0
        %2220 = vmatpush1.msra.mxu0 0.0
        %2221 = vmatprep.subr.mxu0 0.0
        %2222 = vmatpush1.msra.mxu0 0.0
        %2223 = vmatprep.subr.mxu0 0.0
        %2224 = vmatpush1.msra.mxu0 0.0
        %2225 = vmatprep.subr.mxu0 0.0
        %2226 = vmatpush1.msra.mxu0 0.0
        %2227 = vmatprep.subr.mxu0 0.0
        %2228 = vmatpush1.msra.mxu0 0.0
        %2229 = vmatprep.mubr.f32.mxu0 0.0
        %2230 = vmatmul.mubr.f32.gmra.mrb[0].mxu0 %v2159
        %v2231 = vpop.f32.mrb[0].mxu0
        %v2232 = vadd.f32 0.0, %v2231
        %v2233 = vpop.f32.mrb[0].mxu0
        %v2234 = vadd.f32 0.0, %v2233
        %2235 = vdwg.mxu0
        %v2237 = vsel %vm2157, %v2005, 0
        %v2240 = vsel %vm2094, %v2048, 0
        %v2243 = vsel %vm2094, %v2049, 0
        %2245 = vmatprep.subr.mxu0 %v2029
        %2246 = vmatpush1.msra.mxu0 %v2028
        %2247 = vmatprep.subr.mxu0 %v2031
        %2248 = vmatpush1.msra.mxu0 %v2030
        %2249 = vmatprep.subr.mxu0 %v2033
        %2250 = vmatpush1.msra.mxu0 %v2032
        %2251 = vmatprep.subr.mxu0 %v2035
        %2252 = vmatpush1.msra.mxu0 %v2034
        %2253 = vmatprep.subr.mxu0 %v2037
        %2254 = vmatpush1.msra.mxu0 %v2036
        %2255 = vmatprep.subr.mxu0 %v2039
        %2256 = vmatpush1.msra.mxu0 %v2038
        %2257 = vmatprep.subr.mxu0 %v2041
        %2258 = vmatpush1.msra.mxu0 %v2040
        %2259 = vmatprep.subr.mxu0 %v2043
        %2260 = vmatpush1.msra.mxu0 %v2042
        %2261 = vmatprep.subr.mxu0 %v2045
        %2262 = vmatpush1.msra.mxu0 %v2044
        %2263 = vmatprep.subr.mxu0 %v2047
        %2264 = vmatpush1.msra.mxu0 %v2046
        %2265 = vmatprep.subr.mxu0 %v2243
        %2266 = vmatpush1.msra.mxu0 %v2240
        %2267 = vmatprep.subr.mxu0 0.0
        %2268 = vmatpush1.msra.mxu0 0.0
        %2269 = vmatprep.subr.mxu0 0.0
        %2270 = vmatpush1.msra.mxu0 0.0
        %2271 = vmatprep.subr.mxu0 0.0
        %2272 = vmatpush1.msra.mxu0 0.0
        %2273 = vmatprep.subr.mxu0 0.0
        %2274 = vmatpush1.msra.mxu0 0.0
        %2275 = vmatprep.subr.mxu0 0.0
        %2276 = vmatpush1.msra.mxu0 0.0
        %2277 = vmatprep.subr.mxu0 0.0
        %2278 = vmatpush1.msra.mxu0 0.0
        %2279 = vmatprep.subr.mxu0 0.0
        %2280 = vmatpush1.msra.mxu0 0.0
        %2281 = vmatprep.subr.mxu0 0.0
        %2282 = vmatpush1.msra.mxu0 0.0
        %2283 = vmatprep.subr.mxu0 0.0
        %2284 = vmatpush1.msra.mxu0 0.0
        %2285 = vmatprep.subr.mxu0 0.0
        %2286 = vmatpush1.msra.mxu0 0.0
        %2287 = vmatprep.subr.mxu0 0.0
        %2288 = vmatpush1.msra.mxu0 0.0
        %2289 = vmatprep.subr.mxu0 0.0
        %2290 = vmatpush1.msra.mxu0 0.0
        %2291 = vmatprep.subr.mxu0 0.0
        %2292 = vmatpush1.msra.mxu0 0.0
        %2293 = vmatprep.subr.mxu0 0.0
        %2294 = vmatpush1.msra.mxu0 0.0
        %2295 = vmatprep.subr.mxu0 0.0
        %2296 = vmatpush1.msra.mxu0 0.0
        %2297 = vmatprep.subr.mxu0 0.0
        %2298 = vmatpush1.msra.mxu0 0.0
        %2299 = vmatprep.subr.mxu0 0.0
        %2300 = vmatpush1.msra.mxu0 0.0
        %2301 = vmatprep.subr.mxu0 0.0
        %2302 = vmatpush1.msra.mxu0 0.0
        %2303 = vmatprep.subr.mxu0 0.0
        %2304 = vmatpush1.msra.mxu0 0.0
        %2305 = vmatprep.subr.mxu0 0.0
        %2306 = vmatpush1.msra.mxu0 0.0
        %2307 = vmatprep.subr.mxu0 0.0
        %2308 = vmatpush1.msra.mxu0 0.0
        %2309 = vmatprep.mubr.f32.mxu0 0.0
        %2310 = vmatmul.mubr.f32.gmra.mrb[0].mxu0 %v2237
        %v2311 = vpop.f32.mrb[0].mxu0
        %v2312 = vadd.f32 %v2232, %v2311
        %v2313 = vpop.f32.mrb[0].mxu0
        %v2314 = vadd.f32 %v2234, %v2313
        %2315 = vdwg.mxu0
        %v2316 = vrot.slane %v2005, 1
        %v2317 = vsel %vm2157, %v2316, 0
        %2319 = vmatprep.subr.mxu0 %v2100
        %2320 = vmatpush1.msra.mxu0 %v2097
        %2321 = vmatprep.subr.mxu0 %v2104
        %2322 = vmatpush1.msra.mxu0 %v2102
        %2323 = vmatprep.subr.mxu0 %v2108
        %2324 = vmatpush1.msra.mxu0 %v2106
        %2325 = vmatprep.subr.mxu0 %v2112
        %2326 = vmatpush1.msra.mxu0 %v2110
        %2327 = vmatprep.subr.mxu0 %v2116
        %2328 = vmatpush1.msra.mxu0 %v2114
        %2329 = vmatprep.subr.mxu0 %v2120
        %2330 = vmatpush1.msra.mxu0 %v2118
        %2331 = vmatprep.subr.mxu0 %v2124
        %2332 = vmatpush1.msra.mxu0 %v2122
        %2333 = vmatprep.subr.mxu0 %v2128
        %2334 = vmatpush1.msra.mxu0 %v2126
        %2335 = vmatprep.subr.mxu0 %v2132
        %2336 = vmatpush1.msra.mxu0 %v2130
        %2337 = vmatprep.subr.mxu0 %v2136
        %2338 = vmatpush1.msra.mxu0 %v2134
        %2339 = vmatprep.subr.mxu0 %v2163
        %2340 = vmatpush1.msra.mxu0 %v2161
        %2341 = vmatprep.subr.mxu0 0.0
        %2342 = vmatpush1.msra.mxu0 0.0
        %2343 = vmatprep.subr.mxu0 0.0
        %2344 = vmatpush1.msra.mxu0 0.0
        %2345 = vmatprep.subr.mxu0 0.0
        %2346 = vmatpush1.msra.mxu0 0.0
        %2347 = vmatprep.subr.mxu0 0.0
        %2348 = vmatpush1.msra.mxu0 0.0
        %2349 = vmatprep.subr.mxu0 0.0
        %2350 = vmatpush1.msra.mxu0 0.0
        %2351 = vmatprep.subr.mxu0 0.0
        %2352 = vmatpush1.msra.mxu0 0.0
        %2353 = vmatprep.subr.mxu0 0.0
        %2354 = vmatpush1.msra.mxu0 0.0
        %2355 = vmatprep.subr.mxu0 0.0
        %2356 = vmatpush1.msra.mxu0 0.0
        %2357 = vmatprep.subr.mxu0 0.0
        %2358 = vmatpush1.msra.mxu0 0.0
        %2359 = vmatprep.subr.mxu0 0.0
        %2360 = vmatpush1.msra.mxu0 0.0
        %2361 = vmatprep.subr.mxu0 0.0
        %2362 = vmatpush1.msra.mxu0 0.0
        %2363 = vmatprep.subr.mxu0 0.0
        %2364 = vmatpush1.msra.mxu0 0.0
        %2365 = vmatprep.subr.mxu0 0.0
        %2366 = vmatpush1.msra.mxu0 0.0
        %2367 = vmatprep.subr.mxu0 0.0
        %2368 = vmatpush1.msra.mxu0 0.0
        %2369 = vmatprep.subr.mxu0 0.0
        %2370 = vmatpush1.msra.mxu0 0.0
        %2371 = vmatprep.subr.mxu0 0.0
        %2372 = vmatpush1.msra.mxu0 0.0
        %2373 = vmatprep.subr.mxu0 0.0
        %2374 = vmatpush1.msra.mxu0 0.0
        %2375 = vmatprep.subr.mxu0 0.0
        %2376 = vmatpush1.msra.mxu0 0.0
        %2377 = vmatprep.subr.mxu0 0.0
        %2378 = vmatpush1.msra.mxu0 0.0
        %2379 = vmatprep.subr.mxu0 0.0
        %2380 = vmatpush1.msra.mxu0 0.0
        %2381 = vmatprep.subr.mxu0 0.0
        %2382 = vmatpush1.msra.mxu0 0.0
        %2383 = vmatprep.mubr.f32.mxu0 0.0
        %2384 = vmatmul.mubr.f32.gmra.mrb[0].mxu0 %v2317
        %v2385 = vpop.f32.mrb[0].mxu0
        %v2386 = vadd.f32 0.0, %v2385
        %v2387 = vpop.f32.mrb[0].mxu0
        %v2388 = vadd.f32 0.0, %v2387
        %2389 = vdwg.mxu0
        %2390 = vmatprep.subr.mxu0 %v2029
        %2391 = vmatpush1.msra.mxu0 %v2028
        %2392 = vmatprep.subr.mxu0 %v2031
        %2393 = vmatpush1.msra.mxu0 %v2030
        %2394 = vmatprep.subr.mxu0 %v2033
        %2395 = vmatpush1.msra.mxu0 %v2032
        %2396 = vmatprep.subr.mxu0 %v2035
        %2397 = vmatpush1.msra.mxu0 %v2034
        %2398 = vmatprep.subr.mxu0 %v2037
        %2399 = vmatpush1.msra.mxu0 %v2036
        %2400 = vmatprep.subr.mxu0 %v2039
        %2401 = vmatpush1.msra.mxu0 %v2038
        %2402 = vmatprep.subr.mxu0 %v2041
        %2403 = vmatpush1.msra.mxu0 %v2040
        %2404 = vmatprep.subr.mxu0 %v2043
        %2405 = vmatpush1.msra.mxu0 %v2042
        %2406 = vmatprep.subr.mxu0 %v2045
        %2407 = vmatpush1.msra.mxu0 %v2044
        %2408 = vmatprep.subr.mxu0 %v2047
        %2409 = vmatpush1.msra.mxu0 %v2046
        %2410 = vmatprep.subr.mxu0 %v2243
        %2411 = vmatpush1.msra.mxu0 %v2240
        %2412 = vmatprep.subr.mxu0 0.0
        %2413 = vmatpush1.msra.mxu0 0.0
        %2414 = vmatprep.subr.mxu0 0.0
        %2415 = vmatpush1.msra.mxu0 0.0
        %2416 = vmatprep.subr.mxu0 0.0
        %2417 = vmatpush1.msra.mxu0 0.0
        %2418 = vmatprep.subr.mxu0 0.0
        %2419 = vmatpush1.msra.mxu0 0.0
        %2420 = vmatprep.subr.mxu0 0.0
        %2421 = vmatpush1.msra.mxu0 0.0
        %2422 = vmatprep.subr.mxu0 0.0
        %2423 = vmatpush1.msra.mxu0 0.0
        %2424 = vmatprep.subr.mxu0 0.0
        %2425 = vmatpush1.msra.mxu0 0.0
        %2426 = vmatprep.subr.mxu0 0.0
        %2427 = vmatpush1.msra.mxu0 0.0
        %2428 = vmatprep.subr.mxu0 0.0
        %2429 = vmatpush1.msra.mxu0 0.0
        %2430 = vmatprep.subr.mxu0 0.0
        %2431 = vmatpush1.msra.mxu0 0.0
        %2432 = vmatprep.subr.mxu0 0.0
        %2433 = vmatpush1.msra.mxu0 0.0
        %2434 = vmatprep.subr.mxu0 0.0
        %2435 = vmatpush1.msra.mxu0 0.0
        %2436 = vmatprep.subr.mxu0 0.0
        %2437 = vmatpush1.msra.mxu0 0.0
        %2438 = vmatprep.subr.mxu0 0.0
        %2439 = vmatpush1.msra.mxu0 0.0
        %2440 = vmatprep.subr.mxu0 0.0
        %2441 = vmatpush1.msra.mxu0 0.0
        %2442 = vmatprep.subr.mxu0 0.0
        %2443 = vmatpush1.msra.mxu0 0.0
        %2444 = vmatprep.subr.mxu0 0.0
        %2445 = vmatpush1.msra.mxu0 0.0
        %2446 = vmatprep.subr.mxu0 0.0
        %2447 = vmatpush1.msra.mxu0 0.0
        %2448 = vmatprep.subr.mxu0 0.0
        %2449 = vmatpush1.msra.mxu0 0.0
        %2450 = vmatprep.subr.mxu0 0.0
        %2451 = vmatpush1.msra.mxu0 0.0
        %2452 = vmatprep.subr.mxu0 0.0
        %2453 = vmatpush1.msra.mxu0 0.0
        %2454 = vmatprep.mubr.f32.mxu0 0.0
        %2455 = vmatmul.mubr.f32.gmra.mrb[0].mxu0 %v2159
        %v2456 = vpop.f32.mrb[0].mxu0
        %v2457 = vadd.f32 %v2386, %v2456
        %v2458 = vpop.f32.mrb[0].mxu0
        %v2459 = vadd.f32 %v2388, %v2458
        %2460 = vdwg.mxu0
        %v2461 = vld [vmem:[%s3 + $0x150] sm:$0xff]
        %v2462 = vld [vmem:[%s3 + $0x158] sm:$0xff]
        %v2463 = vld [vmem:[%s3 + $0x160] sm:$0xff]
        %v2464 = vld [vmem:[%s3 + $0x168] sm:$0xff]
        %v2465 = vld [vmem:[%s3 + $0x170] sm:$0xff]
        %v2466 = vld [vmem:[%s3 + $0x178] sm:$0xff]
        %v2467 = vld [vmem:[%s3 + $0x180] sm:$0xff]
        %v2468 = vld [vmem:[%s3 + $0x188] sm:$0xff]
        %v2469 = vld [vmem:[%s3 + $0x190] sm:$0xff]
        %v2470 = vld [vmem:[%s3 + $0x198] sm:$0xff]
        %v2471 = vld [vmem:[%s3 + $0x1a0] sm:$0xff]
        %v2472 = vld [vmem:[%s3 + $0x1a8] sm:$0xff]
        %v2473 = vld [vmem:[%s3 + $0x1b0] sm:$0xff]
        %v2474 = vld [vmem:[%s3 + $0x1b8] sm:$0xff]
        %v2475 = vld [vmem:[%s3 + $0x1c0] sm:$0xff]
        %v2476 = vld [vmem:[%s3 + $0x1c8] sm:$0xff]
        %v2477 = vld [vmem:[%s3 + $0x1d0] sm:$0xff]
        %v2478 = vld [vmem:[%s3 + $0x1d8] sm:$0xff]
        %v2479 = vld [vmem:[%s3 + $0x1e0] sm:$0xff]
        %v2480 = vld [vmem:[%s3 + $0x1e8] sm:$0xff]
        %v2481 = vld [vmem:[%s3 + $0x1f0] sm:$0xf]
        %v2482 = vld [vmem:[%s3 + $0x1f8] sm:$0xf]
        %v2484 = vsel %vm2094, %v2481, 0
        %v2487 = vsel %vm2094, %v2482, 0
        %2489 = vmatprep.subr.mxu0 %v2462
        %2490 = vmatpush1.msra.mxu0 %v2461
        %2491 = vmatprep.subr.mxu0 %v2464
        %2492 = vmatpush1.msra.mxu0 %v2463
        %2493 = vmatprep.subr.mxu0 %v2466
        %2494 = vmatpush1.msra.mxu0 %v2465
        %2495 = vmatprep.subr.mxu0 %v2468
        %2496 = vmatpush1.msra.mxu0 %v2467
        %2497 = vmatprep.subr.mxu0 %v2470
        %2498 = vmatpush1.msra.mxu0 %v2469
        %2499 = vmatprep.subr.mxu0 %v2472
        %2500 = vmatpush1.msra.mxu0 %v2471
        %2501 = vmatprep.subr.mxu0 %v2474
        %2502 = vmatpush1.msra.mxu0 %v2473
        %2503 = vmatprep.subr.mxu0 %v2476
        %2504 = vmatpush1.msra.mxu0 %v2475
        %2505 = vmatprep.subr.mxu0 %v2478
        %2506 = vmatpush1.msra.mxu0 %v2477
        %2507 = vmatprep.subr.mxu0 %v2480
        %2508 = vmatpush1.msra.mxu0 %v2479
        %2509 = vmatprep.subr.mxu0 %v2487
        %2510 = vmatpush1.msra.mxu0 %v2484
        %2511 = vmatprep.subr.mxu0 0.0
        %2512 = vmatpush1.msra.mxu0 0.0
        %2513 = vmatprep.subr.mxu0 0.0
        %2514 = vmatpush1.msra.mxu0 0.0
        %2515 = vmatprep.subr.mxu0 0.0
        %2516 = vmatpush1.msra.mxu0 0.0
        %2517 = vmatprep.subr.mxu0 0.0
        %2518 = vmatpush1.msra.mxu0 0.0
        %2519 = vmatprep.subr.mxu0 0.0
        %2520 = vmatpush1.msra.mxu0 0.0
        %2521 = vmatprep.subr.mxu0 0.0
        %2522 = vmatpush1.msra.mxu0 0.0
        %2523 = vmatprep.subr.mxu0 0.0
        %2524 = vmatpush1.msra.mxu0 0.0
        %2525 = vmatprep.subr.mxu0 0.0
        %2526 = vmatpush1.msra.mxu0 0.0
        %2527 = vmatprep.subr.mxu0 0.0
        %2528 = vmatpush1.msra.mxu0 0.0
        %2529 = vmatprep.subr.mxu0 0.0
        %2530 = vmatpush1.msra.mxu0 0.0
        %2531 = vmatprep.subr.mxu0 0.0
        %2532 = vmatpush1.msra.mxu0 0.0
        %2533 = vmatprep.subr.mxu0 0.0
        %2534 = vmatpush1.msra.mxu0 0.0
        %2535 = vmatprep.subr.mxu0 0.0
        %2536 = vmatpush1.msra.mxu0 0.0
        %2537 = vmatprep.subr.mxu0 0.0
        %2538 = vmatpush1.msra.mxu0 0.0
        %2539 = vmatprep.subr.mxu0 0.0
        %2540 = vmatpush1.msra.mxu0 0.0
        %2541 = vmatprep.subr.mxu0 0.0
        %2542 = vmatpush1.msra.mxu0 0.0
        %2543 = vmatprep.subr.mxu0 0.0
        %2544 = vmatpush1.msra.mxu0 0.0
        %2545 = vmatprep.subr.mxu0 0.0
        %2546 = vmatpush1.msra.mxu0 0.0
        %2547 = vmatprep.subr.mxu0 0.0
        %2548 = vmatpush1.msra.mxu0 0.0
        %2549 = vmatprep.subr.mxu0 0.0
        %2550 = vmatpush1.msra.mxu0 0.0
        %2551 = vmatprep.subr.mxu0 0.0
        %2552 = vmatpush1.msra.mxu0 0.0
        %2553 = vmatprep.mubr.f32.mxu0 0.0
        %2554 = vmatmul.mubr.f32.gmra.mrb[0].mxu0 %v2317
        %v2555 = vpop.f32.mrb[0].mxu0
        %v2556 = vadd.f32 0.0, %v2555
        %v2557 = vpop.f32.mrb[0].mxu0
        %v2558 = vadd.f32 0.0, %v2557
        %2559 = vdwg.mxu0
        %v2560 = vadd.f32 %v2312, %v2556
        %v2561 = vadd.f32 %v2314, %v2558
        %v2562 = vrot.slane %v2026, 1
        %v2563 = vsel %vm2157, %v2562, 0
        %2565 = vmatprep.subr.mxu0 %v2462
        %2566 = vmatpush1.msra.mxu0 %v2461
        %2567 = vmatprep.subr.mxu0 %v2464
        %2568 = vmatpush1.msra.mxu0 %v2463
        %2569 = vmatprep.subr.mxu0 %v2466
        %2570 = vmatpush1.msra.mxu0 %v2465
        %2571 = vmatprep.subr.mxu0 %v2468
        %2572 = vmatpush1.msra.mxu0 %v2467
        %2573 = vmatprep.subr.mxu0 %v2470
        %2574 = vmatpush1.msra.mxu0 %v2469
        %2575 = vmatprep.subr.mxu0 %v2472
        %2576 = vmatpush1.msra.mxu0 %v2471
        %2577 = vmatprep.subr.mxu0 %v2474
        %2578 = vmatpush1.msra.mxu0 %v2473
        %2579 = vmatprep.subr.mxu0 %v2476
        %2580 = vmatpush1.msra.mxu0 %v2475
        %2581 = vmatprep.subr.mxu0 %v2478
        %2582 = vmatpush1.msra.mxu0 %v2477
        %2583 = vmatprep.subr.mxu0 %v2480
        %2584 = vmatpush1.msra.mxu0 %v2479
        %2585 = vmatprep.subr.mxu0 %v2487
        %2586 = vmatpush1.msra.mxu0 %v2484
        %2587 = vmatprep.subr.mxu0 0.0
        %2588 = vmatpush1.msra.mxu0 0.0
        %2589 = vmatprep.subr.mxu0 0.0
        %2590 = vmatpush1.msra.mxu0 0.0
        %2591 = vmatprep.subr.mxu0 0.0
        %2592 = vmatpush1.msra.mxu0 0.0
        %2593 = vmatprep.subr.mxu0 0.0
        %2594 = vmatpush1.msra.mxu0 0.0
        %2595 = vmatprep.subr.mxu0 0.0
        %2596 = vmatpush1.msra.mxu0 0.0
        %2597 = vmatprep.subr.mxu0 0.0
        %2598 = vmatpush1.msra.mxu0 0.0
        %2599 = vmatprep.subr.mxu0 0.0
        %2600 = vmatpush1.msra.mxu0 0.0
        %2601 = vmatprep.subr.mxu0 0.0
        %2602 = vmatpush1.msra.mxu0 0.0
        %2603 = vmatprep.subr.mxu0 0.0
        %2604 = vmatpush1.msra.mxu0 0.0
        %2605 = vmatprep.subr.mxu0 0.0
        %2606 = vmatpush1.msra.mxu0 0.0
        %2607 = vmatprep.subr.mxu0 0.0
        %2608 = vmatpush1.msra.mxu0 0.0
        %2609 = vmatprep.subr.mxu0 0.0
        %2610 = vmatpush1.msra.mxu0 0.0
        %2611 = vmatprep.subr.mxu0 0.0
        %2612 = vmatpush1.msra.mxu0 0.0
        %2613 = vmatprep.subr.mxu0 0.0
        %2614 = vmatpush1.msra.mxu0 0.0
        %2615 = vmatprep.subr.mxu0 0.0
        %2616 = vmatpush1.msra.mxu0 0.0
        %2617 = vmatprep.subr.mxu0 0.0
        %2618 = vmatpush1.msra.mxu0 0.0
        %2619 = vmatprep.subr.mxu0 0.0
        %2620 = vmatpush1.msra.mxu0 0.0
        %2621 = vmatprep.subr.mxu0 0.0
        %2622 = vmatpush1.msra.mxu0 0.0
        %2623 = vmatprep.subr.mxu0 0.0
        %2624 = vmatpush1.msra.mxu0 0.0
        %2625 = vmatprep.subr.mxu0 0.0
        %2626 = vmatpush1.msra.mxu0 0.0
        %2627 = vmatprep.subr.mxu0 0.0
        %2628 = vmatpush1.msra.mxu0 0.0
        %2629 = vmatprep.mubr.f32.mxu0 0.0
        %2630 = vmatmul.mubr.f32.gmra.mrb[0].mxu0 %v2563
        %v2631 = vpop.f32.mrb[0].mxu0
        %v2632 = vadd.f32 0.0, %v2631
        %v2633 = vpop.f32.mrb[0].mxu0
        %v2634 = vadd.f32 0.0, %v2633
        %2635 = vdwg.mxu0
        %v2636 = vadd.f32 %v2457, %v2632
        %v2637 = vadd.f32 %v2459, %v2634
        %v2638 = vld [vmem:[%s3 + $0x1f0] sm:$0xf0]
        %v2639 = vld [vmem:[%s3 + $0x1f8] sm:$0xf0]
        %v2640 = vld [vmem:[%s3 + $0x200] sm:$0xff]
        %v2641 = vld [vmem:[%s3 + $0x208] sm:$0xff]
        %v2642 = vld [vmem:[%s3 + $0x210] sm:$0xff]
        %v2643 = vld [vmem:[%s3 + $0x218] sm:$0xff]
        %v2644 = vld [vmem:[%s3 + $0x220] sm:$0xff]
        %v2645 = vld [vmem:[%s3 + $0x228] sm:$0xff]
        %v2646 = vld [vmem:[%s3 + $0x230] sm:$0xff]
        %v2647 = vld [vmem:[%s3 + $0x238] sm:$0xff]
        %v2648 = vld [vmem:[%s3 + $0x240] sm:$0xff]
        %v2649 = vld [vmem:[%s3 + $0x248] sm:$0xff]
        %v2650 = vld [vmem:[%s3 + $0x250] sm:$0xff]
        %v2651 = vld [vmem:[%s3 + $0x258] sm:$0xff]
        %v2652 = vld [vmem:[%s3 + $0x260] sm:$0xff]
        %v2653 = vld [vmem:[%s3 + $0x268] sm:$0xff]
        %v2654 = vld [vmem:[%s3 + $0x270] sm:$0xff]
        %v2655 = vld [vmem:[%s3 + $0x278] sm:$0xff]
        %v2656 = vld [vmem:[%s3 + $0x280] sm:$0xff]
        %v2657 = vld [vmem:[%s3 + $0x288] sm:$0xff]
        %v2658 = vld [vmem:[%s3 + $0x290] sm:$0xff]
        %v2659 = vld [vmem:[%s3 + $0x298] sm:$0xff]
        %v2682 = vrot.slane %v2638, 4
        %v2683 = vrot.slane %v2640, 4
        %v2684 = vsel %vm2094, %v2682, %v2683
        %v2685 = vrot.slane %v2639, 4
        %v2686 = vrot.slane %v2641, 4
        %v2687 = vsel %vm2094, %v2685, %v2686
        %v2688 = vrot.slane %v2642, 4
        %v2689 = vsel %vm2094, %v2683, %v2688
        %v2690 = vrot.slane %v2643, 4
        %v2691 = vsel %vm2094, %v2686, %v2690
        %v2692 = vrot.slane %v2644, 4
        %v2693 = vsel %vm2094, %v2688, %v2692
        %v2694 = vrot.slane %v2645, 4
        %v2695 = vsel %vm2094, %v2690, %v2694
        %v2696 = vrot.slane %v2646, 4
        %v2697 = vsel %vm2094, %v2692, %v2696
        %v2698 = vrot.slane %v2647, 4
        %v2699 = vsel %vm2094, %v2694, %v2698
        %v2700 = vrot.slane %v2648, 4
        %v2701 = vsel %vm2094, %v2696, %v2700
        %v2702 = vrot.slane %v2649, 4
        %v2703 = vsel %vm2094, %v2698, %v2702
        %v2704 = vrot.slane %v2650, 4
        %v2705 = vsel %vm2094, %v2700, %v2704
        %v2706 = vrot.slane %v2651, 4
        %v2707 = vsel %vm2094, %v2702, %v2706
        %v2708 = vrot.slane %v2652, 4
        %v2709 = vsel %vm2094, %v2704, %v2708
        %v2710 = vrot.slane %v2653, 4
        %v2711 = vsel %vm2094, %v2706, %v2710
        %v2712 = vrot.slane %v2654, 4
        %v2713 = vsel %vm2094, %v2708, %v2712
        %v2714 = vrot.slane %v2655, 4
        %v2715 = vsel %vm2094, %v2710, %v2714
        %v2716 = vrot.slane %v2656, 4
        %v2717 = vsel %vm2094, %v2712, %v2716
        %v2718 = vrot.slane %v2657, 4
        %v2719 = vsel %vm2094, %v2714, %v2718
        %v2720 = vrot.slane %v2658, 4
        %v2721 = vsel %vm2094, %v2716, %v2720
        %v2722 = vrot.slane %v2659, 4
        %v2723 = vsel %vm2094, %v2718, %v2722
        %v2744 = vsel %vm2094, %v2720, 0
        %v2746 = vsel %vm2094, %v2722, 0
        %2748 = vmatprep.subr.mxu0 %v2687
        %2749 = vmatpush1.msra.mxu0 %v2684
        %2750 = vmatprep.subr.mxu0 %v2691
        %2751 = vmatpush1.msra.mxu0 %v2689
        %2752 = vmatprep.subr.mxu0 %v2695
        %2753 = vmatpush1.msra.mxu0 %v2693
        %2754 = vmatprep.subr.mxu0 %v2699
        %2755 = vmatpush1.msra.mxu0 %v2697
        %2756 = vmatprep.subr.mxu0 %v2703
        %2757 = vmatpush1.msra.mxu0 %v2701
        %2758 = vmatprep.subr.mxu0 %v2707
        %2759 = vmatpush1.msra.mxu0 %v2705
        %2760 = vmatprep.subr.mxu0 %v2711
        %2761 = vmatpush1.msra.mxu0 %v2709
        %2762 = vmatprep.subr.mxu0 %v2715
        %2763 = vmatpush1.msra.mxu0 %v2713
        %2764 = vmatprep.subr.mxu0 %v2719
        %2765 = vmatpush1.msra.mxu0 %v2717
        %2766 = vmatprep.subr.mxu0 %v2723
        %2767 = vmatpush1.msra.mxu0 %v2721
        %2768 = vmatprep.subr.mxu0 %v2746
        %2769 = vmatpush1.msra.mxu0 %v2744
        %2770 = vmatprep.subr.mxu0 0.0
        %2771 = vmatpush1.msra.mxu0 0.0
        %2772 = vmatprep.subr.mxu0 0.0
        %2773 = vmatpush1.msra.mxu0 0.0
        %2774 = vmatprep.subr.mxu0 0.0
        %2775 = vmatpush1.msra.mxu0 0.0
        %2776 = vmatprep.subr.mxu0 0.0
        %2777 = vmatpush1.msra.mxu0 0.0
        %2778 = vmatprep.subr.mxu0 0.0
        %2779 = vmatpush1.msra.mxu0 0.0
        %2780 = vmatprep.subr.mxu0 0.0
        %2781 = vmatpush1.msra.mxu0 0.0
        %2782 = vmatprep.subr.mxu0 0.0
        %2783 = vmatpush1.msra.mxu0 0.0
        %2784 = vmatprep.subr.mxu0 0.0
        %2785 = vmatpush1.msra.mxu0 0.0
        %2786 = vmatprep.subr.mxu0 0.0
        %2787 = vmatpush1.msra.mxu0 0.0
        %2788 = vmatprep.subr.mxu0 0.0
        %2789 = vmatpush1.msra.mxu0 0.0
        %2790 = vmatprep.subr.mxu0 0.0
        %2791 = vmatpush1.msra.mxu0 0.0
        %2792 = vmatprep.subr.mxu0 0.0
        %2793 = vmatpush1.msra.mxu0 0.0
        %2794 = vmatprep.subr.mxu0 0.0
        %2795 = vmatpush1.msra.mxu0 0.0
        %2796 = vmatprep.subr.mxu0 0.0
        %2797 = vmatpush1.msra.mxu0 0.0
        %2798 = vmatprep.subr.mxu0 0.0
        %2799 = vmatpush1.msra.mxu0 0.0
        %2800 = vmatprep.subr.mxu0 0.0
        %2801 = vmatpush1.msra.mxu0 0.0
        %2802 = vmatprep.subr.mxu0 0.0
        %2803 = vmatpush1.msra.mxu0 0.0
        %2804 = vmatprep.subr.mxu0 0.0
        %2805 = vmatpush1.msra.mxu0 0.0
        %2806 = vmatprep.subr.mxu0 0.0
        %2807 = vmatpush1.msra.mxu0 0.0
        %2808 = vmatprep.subr.mxu0 0.0
        %2809 = vmatpush1.msra.mxu0 0.0
        %2810 = vmatprep.subr.mxu0 0.0
        %2811 = vmatpush1.msra.mxu0 0.0
        %2812 = vmatprep.mubr.f32.mxu0 0.0
        %2813 = vmatmul.mubr.f32.gmra.mrb[0].mxu0 %v2563
        %v2814 = vpop.f32.mrb[0].mxu0
        %v2815 = vadd.f32 0.0, %v2814
        %v2816 = vpop.f32.mrb[0].mxu0
        %v2817 = vadd.f32 0.0, %v2816
        %2818 = vdwg.mxu0
        %v2819 = vadd.f32 %v2560, %v2815
        %v2820 = vadd.f32 %v2561, %v2817
        %v2821 = vrot.slane %v2005, 2
        %v2822 = vsel %vm2157, %v2821, 0
        %2824 = vmatprep.subr.mxu0 %v2687
        %2825 = vmatpush1.msra.mxu0 %v2684
        %2826 = vmatprep.subr.mxu0 %v2691
        %2827 = vmatpush1.msra.mxu0 %v2689
        %2828 = vmatprep.subr.mxu0 %v2695
        %2829 = vmatpush1.msra.mxu0 %v2693
        %2830 = vmatprep.subr.mxu0 %v2699
        %2831 = vmatpush1.msra.mxu0 %v2697
        %2832 = vmatprep.subr.mxu0 %v2703
        %2833 = vmatpush1.msra.mxu0 %v2701
        %2834 = vmatprep.subr.mxu0 %v2707
        %2835 = vmatpush1.msra.mxu0 %v2705
        %2836 = vmatprep.subr.mxu0 %v2711
        %2837 = vmatpush1.msra.mxu0 %v2709
        %2838 = vmatprep.subr.mxu0 %v2715
        %2839 = vmatpush1.msra.mxu0 %v2713
        %2840 = vmatprep.subr.mxu0 %v2719
        %2841 = vmatpush1.msra.mxu0 %v2717
        %2842 = vmatprep.subr.mxu0 %v2723
        %2843 = vmatpush1.msra.mxu0 %v2721
        %2844 = vmatprep.subr.mxu0 %v2746
        %2845 = vmatpush1.msra.mxu0 %v2744
        %2846 = vmatprep.subr.mxu0 0.0
        %2847 = vmatpush1.msra.mxu0 0.0
        %2848 = vmatprep.subr.mxu0 0.0
        %2849 = vmatpush1.msra.mxu0 0.0
        %2850 = vmatprep.subr.mxu0 0.0
        %2851 = vmatpush1.msra.mxu0 0.0
        %2852 = vmatprep.subr.mxu0 0.0
        %2853 = vmatpush1.msra.mxu0 0.0
        %2854 = vmatprep.subr.mxu0 0.0
        %2855 = vmatpush1.msra.mxu0 0.0
        %2856 = vmatprep.subr.mxu0 0.0
        %2857 = vmatpush1.msra.mxu0 0.0
        %2858 = vmatprep.subr.mxu0 0.0
        %2859 = vmatpush1.msra.mxu0 0.0
        %2860 = vmatprep.subr.mxu0 0.0
        %2861 = vmatpush1.msra.mxu0 0.0
        %2862 = vmatprep.subr.mxu0 0.0
        %2863 = vmatpush1.msra.mxu0 0.0
        %2864 = vmatprep.subr.mxu0 0.0
        %2865 = vmatpush1.msra.mxu0 0.0
        %2866 = vmatprep.subr.mxu0 0.0
        %2867 = vmatpush1.msra.mxu0 0.0
        %2868 = vmatprep.subr.mxu0 0.0
        %2869 = vmatpush1.msra.mxu0 0.0
        %2870 = vmatprep.subr.mxu0 0.0
        %2871 = vmatpush1.msra.mxu0 0.0
        %2872 = vmatprep.subr.mxu0 0.0
        %2873 = vmatpush1.msra.mxu0 0.0
        %2874 = vmatprep.subr.mxu0 0.0
        %2875 = vmatpush1.msra.mxu0 0.0
        %2876 = vmatprep.subr.mxu0 0.0
        %2877 = vmatpush1.msra.mxu0 0.0
        %2878 = vmatprep.subr.mxu0 0.0
        %2879 = vmatpush1.msra.mxu0 0.0
        %2880 = vmatprep.subr.mxu0 0.0
        %2881 = vmatpush1.msra.mxu0 0.0
        %2882 = vmatprep.subr.mxu0 0.0
        %2883 = vmatpush1.msra.mxu0 0.0
        %2884 = vmatprep.subr.mxu0 0.0
        %2885 = vmatpush1.msra.mxu0 0.0
        %2886 = vmatprep.subr.mxu0 0.0
        %2887 = vmatpush1.msra.mxu0 0.0
        %2888 = vmatprep.mubr.f32.mxu0 0.0
        %2889 = vmatmul.mubr.f32.gmra.mrb[0].mxu0 %v2822
        %v2890 = vpop.f32.mrb[0].mxu0
        %v2891 = vadd.f32 0.0, %v2890
        %v2892 = vpop.f32.mrb[0].mxu0
        %v2893 = vadd.f32 0.0, %v2892
        %2894 = vdwg.mxu0
        %v2895 = vadd.f32 %v2636, %v2891
        %v2896 = vadd.f32 %v2637, %v2893
        %v2897 = vld [vmem:[%s3 + $0x2a0] sm:$0xff]
        %v2898 = vld [vmem:[%s3 + $0x2a8] sm:$0xff]
        %v2899 = vld [vmem:[%s3 + $0x2b0] sm:$0xff]
        %v2900 = vld [vmem:[%s3 + $0x2b8] sm:$0xff]
        %v2901 = vld [vmem:[%s3 + $0x2c0] sm:$0xff]
        %v2902 = vld [vmem:[%s3 + $0x2c8] sm:$0xff]
        %v2903 = vld [vmem:[%s3 + $0x2d0] sm:$0xff]
        %v2904 = vld [vmem:[%s3 + $0x2d8] sm:$0xff]
        %v2905 = vld [vmem:[%s3 + $0x2e0] sm:$0xff]
        %v2906 = vld [vmem:[%s3 + $0x2e8] sm:$0xff]
        %v2907 = vld [vmem:[%s3 + $0x2f0] sm:$0xff]
        %v2908 = vld [vmem:[%s3 + $0x2f8] sm:$0xff]
        %v2909 = vld [vmem:[%s3 + $0x300] sm:$0xff]
        %v2910 = vld [vmem:[%s3 + $0x308] sm:$0xff]
        %v2911 = vld [vmem:[%s3 + $0x310] sm:$0xff]
        %v2912 = vld [vmem:[%s3 + $0x318] sm:$0xff]
        %v2913 = vld [vmem:[%s3 + $0x320] sm:$0xff]
        %v2914 = vld [vmem:[%s3 + $0x328] sm:$0xff]
        %v2915 = vld [vmem:[%s3 + $0x330] sm:$0xff]
        %v2916 = vld [vmem:[%s3 + $0x338] sm:$0xff]
        %v2917 = vld [vmem:[%s3 + $0x340] sm:$0xf]
        %v2918 = vld [vmem:[%s3 + $0x348] sm:$0xf]
        %v2920 = vsel %vm2094, %v2917, 0
        %v2923 = vsel %vm2094, %v2918, 0
        %2925 = vmatprep.subr.mxu0 %v2898
        %2926 = vmatpush1.msra.mxu0 %v2897
        %2927 = vmatprep.subr.mxu0 %v2900
        %2928 = vmatpush1.msra.mxu0 %v2899
        %2929 = vmatprep.subr.mxu0 %v2902
        %2930 = vmatpush1.msra.mxu0 %v2901
        %2931 = vmatprep.subr.mxu0 %v2904
        %2932 = vmatpush1.msra.mxu0 %v2903
        %2933 = vmatprep.subr.mxu0 %v2906
        %2934 = vmatpush1.msra.mxu0 %v2905
        %2935 = vmatprep.subr.mxu0 %v2908
        %2936 = vmatpush1.msra.mxu0 %v2907
        %2937 = vmatprep.subr.mxu0 %v2910
        %2938 = vmatpush1.msra.mxu0 %v2909
        %2939 = vmatprep.subr.mxu0 %v2912
        %2940 = vmatpush1.msra.mxu0 %v2911
        %2941 = vmatprep.subr.mxu0 %v2914
        %2942 = vmatpush1.msra.mxu0 %v2913
        %2943 = vmatprep.subr.mxu0 %v2916
        %2944 = vmatpush1.msra.mxu0 %v2915
        %2945 = vmatprep.subr.mxu0 %v2923
        %2946 = vmatpush1.msra.mxu0 %v2920
        %2947 = vmatprep.subr.mxu0 0.0
        %2948 = vmatpush1.msra.mxu0 0.0
        %2949 = vmatprep.subr.mxu0 0.0
        %2950 = vmatpush1.msra.mxu0 0.0
        %2951 = vmatprep.subr.mxu0 0.0
        %2952 = vmatpush1.msra.mxu0 0.0
        %2953 = vmatprep.subr.mxu0 0.0
        %2954 = vmatpush1.msra.mxu0 0.0
        %2955 = vmatprep.subr.mxu0 0.0
        %2956 = vmatpush1.msra.mxu0 0.0
        %2957 = vmatprep.subr.mxu0 0.0
        %2958 = vmatpush1.msra.mxu0 0.0
        %2959 = vmatprep.subr.mxu0 0.0
        %2960 = vmatpush1.msra.mxu0 0.0
        %2961 = vmatprep.subr.mxu0 0.0
        %2962 = vmatpush1.msra.mxu0 0.0
        %2963 = vmatprep.subr.mxu0 0.0
        %2964 = vmatpush1.msra.mxu0 0.0
        %2965 = vmatprep.subr.mxu0 0.0
        %2966 = vmatpush1.msra.mxu0 0.0
        %2967 = vmatprep.subr.mxu0 0.0
        %2968 = vmatpush1.msra.mxu0 0.0
        %2969 = vmatprep.subr.mxu0 0.0
        %2970 = vmatpush1.msra.mxu0 0.0
        %2971 = vmatprep.subr.mxu0 0.0
        %2972 = vmatpush1.msra.mxu0 0.0
        %2973 = vmatprep.subr.mxu0 0.0
        %2974 = vmatpush1.msra.mxu0 0.0
        %2975 = vmatprep.subr.mxu0 0.0
        %2976 = vmatpush1.msra.mxu0 0.0
        %2977 = vmatprep.subr.mxu0 0.0
        %2978 = vmatpush1.msra.mxu0 0.0
        %2979 = vmatprep.subr.mxu0 0.0
        %2980 = vmatpush1.msra.mxu0 0.0
        %2981 = vmatprep.subr.mxu0 0.0
        %2982 = vmatpush1.msra.mxu0 0.0
        %2983 = vmatprep.subr.mxu0 0.0
        %2984 = vmatpush1.msra.mxu0 0.0
        %2985 = vmatprep.subr.mxu0 0.0
        %2986 = vmatpush1.msra.mxu0 0.0
        %2987 = vmatprep.subr.mxu0 0.0
        %2988 = vmatpush1.msra.mxu0 0.0
        %2989 = vmatprep.mubr.f32.mxu0 0.0
        %2990 = vmatmul.mubr.f32.gmra.mrb[0].mxu0 %v2822
        %v2991 = vpop.f32.mrb[0].mxu0
        %v2992 = vadd.f32 0.0, %v2991
        %v2993 = vpop.f32.mrb[0].mxu0
        %v2994 = vadd.f32 0.0, %v2993
        %2995 = vdwg.mxu0
        %v2996 = vadd.f32 %v2819, %v2992
        %v2997 = vadd.f32 %v2820, %v2994
        %v2998 = vrot.slane %v2026, 2
        %v2999 = vsel %vm2157, %v2998, 0
        %3001 = vmatprep.subr.mxu0 %v2898
        %3002 = vmatpush1.msra.mxu0 %v2897
        %3003 = vmatprep.subr.mxu0 %v2900
        %3004 = vmatpush1.msra.mxu0 %v2899
        %3005 = vmatprep.subr.mxu0 %v2902
        %3006 = vmatpush1.msra.mxu0 %v2901
        %3007 = vmatprep.subr.mxu0 %v2904
        %3008 = vmatpush1.msra.mxu0 %v2903
        %3009 = vmatprep.subr.mxu0 %v2906
        %3010 = vmatpush1.msra.mxu0 %v2905
        %3011 = vmatprep.subr.mxu0 %v2908
        %3012 = vmatpush1.msra.mxu0 %v2907
        %3013 = vmatprep.subr.mxu0 %v2910
        %3014 = vmatpush1.msra.mxu0 %v2909
        %3015 = vmatprep.subr.mxu0 %v2912
        %3016 = vmatpush1.msra.mxu0 %v2911
        %3017 = vmatprep.subr.mxu0 %v2914
        %3018 = vmatpush1.msra.mxu0 %v2913
        %3019 = vmatprep.subr.mxu0 %v2916
        %3020 = vmatpush1.msra.mxu0 %v2915
        %3021 = vmatprep.subr.mxu0 %v2923
        %3022 = vmatpush1.msra.mxu0 %v2920
        %3023 = vmatprep.subr.mxu0 0.0
        %3024 = vmatpush1.msra.mxu0 0.0
        %3025 = vmatprep.subr.mxu0 0.0
        %3026 = vmatpush1.msra.mxu0 0.0
        %3027 = vmatprep.subr.mxu0 0.0
        %3028 = vmatpush1.msra.mxu0 0.0
        %3029 = vmatprep.subr.mxu0 0.0
        %3030 = vmatpush1.msra.mxu0 0.0
        %3031 = vmatprep.subr.mxu0 0.0
        %3032 = vmatpush1.msra.mxu0 0.0
        %3033 = vmatprep.subr.mxu0 0.0
        %3034 = vmatpush1.msra.mxu0 0.0
        %3035 = vmatprep.subr.mxu0 0.0
        %3036 = vmatpush1.msra.mxu0 0.0
        %3037 = vmatprep.subr.mxu0 0.0
        %3038 = vmatpush1.msra.mxu0 0.0
        %3039 = vmatprep.subr.mxu0 0.0
        %3040 = vmatpush1.msra.mxu0 0.0
        %3041 = vmatprep.subr.mxu0 0.0
        %3042 = vmatpush1.msra.mxu0 0.0
        %3043 = vmatprep.subr.mxu0 0.0
        %3044 = vmatpush1.msra.mxu0 0.0
        %3045 = vmatprep.subr.mxu0 0.0
        %3046 = vmatpush1.msra.mxu0 0.0
        %3047 = vmatprep.subr.mxu0 0.0
        %3048 = vmatpush1.msra.mxu0 0.0
        %3049 = vmatprep.subr.mxu0 0.0
        %3050 = vmatpush1.msra.mxu0 0.0
        %3051 = vmatprep.subr.mxu0 0.0
        %3052 = vmatpush1.msra.mxu0 0.0
        %3053 = vmatprep.subr.mxu0 0.0
        %3054 = vmatpush1.msra.mxu0 0.0
        %3055 = vmatprep.subr.mxu0 0.0
        %3056 = vmatpush1.msra.mxu0 0.0
        %3057 = vmatprep.subr.mxu0 0.0
        %3058 = vmatpush1.msra.mxu0 0.0
        %3059 = vmatprep.subr.mxu0 0.0
        %3060 = vmatpush1.msra.mxu0 0.0
        %3061 = vmatprep.subr.mxu0 0.0
        %3062 = vmatpush1.msra.mxu0 0.0
        %3063 = vmatprep.subr.mxu0 0.0
        %3064 = vmatpush1.msra.mxu0 0.0
        %3065 = vmatprep.mubr.f32.mxu0 0.0
        %3066 = vmatmul.mubr.f32.gmra.mrb[0].mxu0 %v2999
        %v3067 = vpop.f32.mrb[0].mxu0
        %v3068 = vadd.f32 0.0, %v3067
        %v3069 = vpop.f32.mrb[0].mxu0
        %v3070 = vadd.f32 0.0, %v3069
        %3071 = vdwg.mxu0
        %v3072 = vadd.f32 %v2895, %v3068
        %v3073 = vadd.f32 %v2896, %v3070
        %3076 = vrot.lane.b32.xlu0 %v2996, 48
        %v3077 = vpop.permute.xlu0 %3076
        %3078 = vrot.lane.b32.xlu0 %v2997, 48
        %v3079 = vpop.permute.xlu0 %3078
        %vm3080 = vcmask 392192
        %v3081 = vsel %vm3080, %v3077, %v3079
        %v3083 = vmax.f32 %v2996, %v3081
        %3086 = vrot.lane.b32.xlu0 %v3072, 48
        %v3087 = vpop.permute.xlu0 %3086
        %3088 = vrot.lane.b32.xlu0 %v3073, 48
        %v3089 = vpop.permute.xlu0 %3088
        %v3090 = vsel %vm3080, %v3087, %v3089
        %v3092 = vmax.f32 %v3072, %v3090
        %v3093 = vmax.f32 %v3083, %v3092
        %v3095 = vlaneseq
        %v3096 = vshrl.u32 %v3095, 7
        %v3097 = vsub.s32 0, %v3096
        %v3098 = vrot.slane %v2027, %v3097
        %v3100 = vadd.f32 %v3093, %v3098
        %v3101 = vmax.f32 %v3100, 0.0
        %v3102 = vld [vmem:[%s6] sm:$0x1]
        %v3103 = vld [vmem:[%s5] sm:$0xff]
        %v3104 = vld [vmem:[%s5 + $0x8] sm:$0xff]
        %v3105 = vld [vmem:[%s5 + $0x10] sm:$0xff]
        %v3106 = vld [vmem:[%s5 + $0x18] sm:$0xff]
        %v3107 = vld [vmem:[%s5 + $0x20] sm:$0xff]
        %v3108 = vld [vmem:[%s5 + $0x28] sm:$0xff]
        %v3109 = vld [vmem:[%s5 + $0x30] sm:$0xff]
        %v3110 = vld [vmem:[%s5 + $0x38] sm:$0xff]
        %v3111 = vld [vmem:[%s5 + $0x40] sm:$0xff]
        %v3112 = vld [vmem:[%s5 + $0x48] sm:$0xff]
        %vm3113 = vcmask 654336
        %v3115 = vsel %vm3113, %v3101, 0
        %3117 = vmatprep.subr.mxu0 0.0
        %3118 = vmatpush1.msra.mxu0 %v3103
        %3119 = vmatprep.subr.mxu0 0.0
        %3120 = vmatpush1.msra.mxu0 %v3104
        %3121 = vmatprep.subr.mxu0 0.0
        %3122 = vmatpush1.msra.mxu0 %v3105
        %3123 = vmatprep.subr.mxu0 0.0
        %3124 = vmatpush1.msra.mxu0 %v3106
        %3125 = vmatprep.subr.mxu0 0.0
        %3126 = vmatpush1.msra.mxu0 %v3107
        %3127 = vmatprep.subr.mxu0 0.0
        %3128 = vmatpush1.msra.mxu0 %v3108
        %3129 = vmatprep.subr.mxu0 0.0
        %3130 = vmatpush1.msra.mxu0 %v3109
        %3131 = vmatprep.subr.mxu0 0.0
        %3132 = vmatpush1.msra.mxu0 %v3110
        %3133 = vmatprep.subr.mxu0 0.0
        %3134 = vmatpush1.msra.mxu0 %v3111
        %3135 = vmatprep.subr.mxu0 0.0
        %3136 = vmatpush1.msra.mxu0 %v3112
        %3137 = vmatprep.subr.mxu0 0.0
        %3138 = vmatpush1.msra.mxu0 0.0
        %3139 = vmatprep.subr.mxu0 0.0
        %3140 = vmatpush1.msra.mxu0 0.0
        %3141 = vmatprep.subr.mxu0 0.0
        %3142 = vmatpush1.msra.mxu0 0.0
        %3143 = vmatprep.subr.mxu0 0.0
        %3144 = vmatpush1.msra.mxu0 0.0
        %3145 = vmatprep.subr.mxu0 0.0
        %3146 = vmatpush1.msra.mxu0 0.0
        %3147 = vmatprep.subr.mxu0 0.0
        %3148 = vmatpush1.msra.mxu0 0.0
        %3149 = vmatprep.subr.mxu0 0.0
        %3150 = vmatpush1.msra.mxu0 0.0
        %3151 = vmatprep.subr.mxu0 0.0
        %3152 = vmatpush1.msra.mxu0 0.0
        %3153 = vmatprep.subr.mxu0 0.0
        %3154 = vmatpush1.msra.mxu0 0.0
        %3155 = vmatprep.subr.mxu0 0.0
        %3156 = vmatpush1.msra.mxu0 0.0
        %3157 = vmatprep.subr.mxu0 0.0
        %3158 = vmatpush1.msra.mxu0 0.0
        %3159 = vmatprep.subr.mxu0 0.0
        %3160 = vmatpush1.msra.mxu0 0.0
        %3161 = vmatprep.subr.mxu0 0.0
        %3162 = vmatpush1.msra.mxu0 0.0
        %3163 = vmatprep.subr.mxu0 0.0
        %3164 = vmatpush1.msra.mxu0 0.0
        %3165 = vmatprep.subr.mxu0 0.0
        %3166 = vmatpush1.msra.mxu0 0.0
        %3167 = vmatprep.subr.mxu0 0.0
        %3168 = vmatpush1.msra.mxu0 0.0
        %3169 = vmatprep.subr.mxu0 0.0
        %3170 = vmatpush1.msra.mxu0 0.0
        %3171 = vmatprep.subr.mxu0 0.0
        %3172 = vmatpush1.msra.mxu0 0.0
        %3173 = vmatprep.subr.mxu0 0.0
        %3174 = vmatpush1.msra.mxu0 0.0
        %3175 = vmatprep.subr.mxu0 0.0
        %3176 = vmatpush1.msra.mxu0 0.0
        %3177 = vmatprep.subr.mxu0 0.0
        %3178 = vmatpush1.msra.mxu0 0.0
        %3179 = vmatprep.subr.mxu0 0.0
        %3180 = vmatpush1.msra.mxu0 0.0
        %3181 = vmatprep.mubr.f32.mxu0 0.0
        %3182 = vmatmul.mubr.f32.gmra.mrb[0].mxu0 %v3115
        %v3183 = vpop.f32.mrb[0].mxu0
        %v3184 = vadd.f32 0.0, %v3183
        %v3185 = vpop.f32.mrb[0].mxu0
        %3186 = vdwg.mxu0
        %v3187 = vadd.f32 %v3102, %v3184
        %v3188 = vld [vmem:[%s5 + $0x50] sm:$0xff]
        %v3189 = vld [vmem:[%s5 + $0x58] sm:$0xff]
        %v3190 = vld [vmem:[%s5 + $0x60] sm:$0xff]
        %v3191 = vld [vmem:[%s5 + $0x68] sm:$0xff]
        %v3192 = vld [vmem:[%s5 + $0x70] sm:$0xff]
        %v3193 = vld [vmem:[%s5 + $0x78] sm:$0xff]
        %v3194 = vld [vmem:[%s5 + $0x80] sm:$0xff]
        %v3195 = vld [vmem:[%s5 + $0x88] sm:$0xff]
        %v3196 = vld [vmem:[%s5 + $0x90] sm:$0xff]
        %v3197 = vld [vmem:[%s5 + $0x98] sm:$0xff]
        %v3198 = vrot.slane %v3101, 1
        %v3199 = vsel %vm3113, %v3198, 0
        %3201 = vmatprep.subr.mxu0 0.0
        %3202 = vmatpush1.msra.mxu0 %v3188
        %3203 = vmatprep.subr.mxu0 0.0
        %3204 = vmatpush1.msra.mxu0 %v3189
        %3205 = vmatprep.subr.mxu0 0.0
        %3206 = vmatpush1.msra.mxu0 %v3190
        %3207 = vmatprep.subr.mxu0 0.0
        %3208 = vmatpush1.msra.mxu0 %v3191
        %3209 = vmatprep.subr.mxu0 0.0
        %3210 = vmatpush1.msra.mxu0 %v3192
        %3211 = vmatprep.subr.mxu0 0.0
        %3212 = vmatpush1.msra.mxu0 %v3193
        %3213 = vmatprep.subr.mxu0 0.0
        %3214 = vmatpush1.msra.mxu0 %v3194
        %3215 = vmatprep.subr.mxu0 0.0
        %3216 = vmatpush1.msra.mxu0 %v3195
        %3217 = vmatprep.subr.mxu0 0.0
        %3218 = vmatpush1.msra.mxu0 %v3196
        %3219 = vmatprep.subr.mxu0 0.0
        %3220 = vmatpush1.msra.mxu0 %v3197
        %3221 = vmatprep.subr.mxu0 0.0
        %3222 = vmatpush1.msra.mxu0 0.0
        %3223 = vmatprep.subr.mxu0 0.0
        %3224 = vmatpush1.msra.mxu0 0.0
        %3225 = vmatprep.subr.mxu0 0.0
        %3226 = vmatpush1.msra.mxu0 0.0
        %3227 = vmatprep.subr.mxu0 0.0
        %3228 = vmatpush1.msra.mxu0 0.0
        %3229 = vmatprep.subr.mxu0 0.0
        %3230 = vmatpush1.msra.mxu0 0.0
        %3231 = vmatprep.subr.mxu0 0.0
        %3232 = vmatpush1.msra.mxu0 0.0
        %3233 = vmatprep.subr.mxu0 0.0
        %3234 = vmatpush1.msra.mxu0 0.0
        %3235 = vmatprep.subr.mxu0 0.0
        %3236 = vmatpush1.msra.mxu0 0.0
        %3237 = vmatprep.subr.mxu0 0.0
        %3238 = vmatpush1.msra.mxu0 0.0
        %3239 = vmatprep.subr.mxu0 0.0
        %3240 = vmatpush1.msra.mxu0 0.0
        %3241 = vmatprep.subr.mxu0 0.0
        %3242 = vmatpush1.msra.mxu0 0.0
        %3243 = vmatprep.subr.mxu0 0.0
        %3244 = vmatpush1.msra.mxu0 0.0
        %3245 = vmatprep.subr.mxu0 0.0
        %3246 = vmatpush1.msra.mxu0 0.0
        %3247 = vmatprep.subr.mxu0 0.0
        %3248 = vmatpush1.msra.mxu0 0.0
        %3249 = vmatprep.subr.mxu0 0.0
        %3250 = vmatpush1.msra.mxu0 0.0
        %3251 = vmatprep.subr.mxu0 0.0
        %3252 = vmatpush1.msra.mxu0 0.0
        %3253 = vmatprep.subr.mxu0 0.0
        %3254 = vmatpush1.msra.mxu0 0.0
        %3255 = vmatprep.subr.mxu0 0.0
        %3256 = vmatpush1.msra.mxu0 0.0
        %3257 = vmatprep.subr.mxu0 0.0
        %3258 = vmatpush1.msra.mxu0 0.0
        %3259 = vmatprep.subr.mxu0 0.0
        %3260 = vmatpush1.msra.mxu0 0.0
        %3261 = vmatprep.subr.mxu0 0.0
        %3262 = vmatpush1.msra.mxu0 0.0
        %3263 = vmatprep.subr.mxu0 0.0
        %3264 = vmatpush1.msra.mxu0 0.0
        %3265 = vmatprep.mubr.f32.mxu0 0.0
        %3266 = vmatmul.mubr.f32.gmra.mrb[0].mxu0 %v3199
        %v3267 = vpop.f32.mrb[0].mxu0
        %v3268 = vadd.f32 0.0, %v3267
        %v3269 = vpop.f32.mrb[0].mxu0
        %3270 = vdwg.mxu0
        %v3271 = vadd.f32 %v3187, %v3268
        %v3272 = vld [vmem:[%s5 + $0xa0] sm:$0xff]
        %v3273 = vld [vmem:[%s5 + $0xa8] sm:$0xff]
        %v3274 = vld [vmem:[%s5 + $0xb0] sm:$0xff]
        %v3275 = vld [vmem:[%s5 + $0xb8] sm:$0xff]
        %v3276 = vld [vmem:[%s5 + $0xc0] sm:$0xff]
        %v3277 = vld [vmem:[%s5 + $0xc8] sm:$0xff]
        %v3278 = vld [vmem:[%s5 + $0xd0] sm:$0xff]
        %v3279 = vld [vmem:[%s5 + $0xd8] sm:$0xff]
        %v3280 = vld [vmem:[%s5 + $0xe0] sm:$0xff]
        %v3281 = vld [vmem:[%s5 + $0xe8] sm:$0xff]
        %v3282 = vrot.slane %v3101, 2
        %v3283 = vsel %vm3113, %v3282, 0
        %3285 = vmatprep.subr.mxu0 0.0
        %3286 = vmatpush1.msra.mxu0 %v3272
        %3287 = vmatprep.subr.mxu0 0.0
        %3288 = vmatpush1.msra.mxu0 %v3273
        %3289 = vmatprep.subr.mxu0 0.0
        %3290 = vmatpush1.msra.mxu0 %v3274
        %3291 = vmatprep.subr.mxu0 0.0
        %3292 = vmatpush1.msra.mxu0 %v3275
        %3293 = vmatprep.subr.mxu0 0.0
        %3294 = vmatpush1.msra.mxu0 %v3276
        %3295 = vmatprep.subr.mxu0 0.0
        %3296 = vmatpush1.msra.mxu0 %v3277
        %3297 = vmatprep.subr.mxu0 0.0
        %3298 = vmatpush1.msra.mxu0 %v3278
        %3299 = vmatprep.subr.mxu0 0.0
        %3300 = vmatpush1.msra.mxu0 %v3279
        %3301 = vmatprep.subr.mxu0 0.0
        %3302 = vmatpush1.msra.mxu0 %v3280
        %3303 = vmatprep.subr.mxu0 0.0
        %3304 = vmatpush1.msra.mxu0 %v3281
        %3305 = vmatprep.subr.mxu0 0.0
        %3306 = vmatpush1.msra.mxu0 0.0
        %3307 = vmatprep.subr.mxu0 0.0
        %3308 = vmatpush1.msra.mxu0 0.0
        %3309 = vmatprep.subr.mxu0 0.0
        %3310 = vmatpush1.msra.mxu0 0.0
        %3311 = vmatprep.subr.mxu0 0.0
        %3312 = vmatpush1.msra.mxu0 0.0
        %3313 = vmatprep.subr.mxu0 0.0
        %3314 = vmatpush1.msra.mxu0 0.0
        %3315 = vmatprep.subr.mxu0 0.0
        %3316 = vmatpush1.msra.mxu0 0.0
        %3317 = vmatprep.subr.mxu0 0.0
        %3318 = vmatpush1.msra.mxu0 0.0
        %3319 = vmatprep.subr.mxu0 0.0
        %3320 = vmatpush1.msra.mxu0 0.0
        %3321 = vmatprep.subr.mxu0 0.0
        %3322 = vmatpush1.msra.mxu0 0.0
        %3323 = vmatprep.subr.mxu0 0.0
        %3324 = vmatpush1.msra.mxu0 0.0
        %3325 = vmatprep.subr.mxu0 0.0
        %3326 = vmatpush1.msra.mxu0 0.0
        %3327 = vmatprep.subr.mxu0 0.0
        %3328 = vmatpush1.msra.mxu0 0.0
        %3329 = vmatprep.subr.mxu0 0.0
        %3330 = vmatpush1.msra.mxu0 0.0
        %3331 = vmatprep.subr.mxu0 0.0
        %3332 = vmatpush1.msra.mxu0 0.0
        %3333 = vmatprep.subr.mxu0 0.0
        %3334 = vmatpush1.msra.mxu0 0.0
        %3335 = vmatprep.subr.mxu0 0.0
        %3336 = vmatpush1.msra.mxu0 0.0
        %3337 = vmatprep.subr.mxu0 0.0
        %3338 = vmatpush1.msra.mxu0 0.0
        %3339 = vmatprep.subr.mxu0 0.0
        %3340 = vmatpush1.msra.mxu0 0.0
        %3341 = vmatprep.subr.mxu0 0.0
        %3342 = vmatpush1.msra.mxu0 0.0
        %3343 = vmatprep.subr.mxu0 0.0
        %3344 = vmatpush1.msra.mxu0 0.0
        %3345 = vmatprep.subr.mxu0 0.0
        %3346 = vmatpush1.msra.mxu0 0.0
        %3347 = vmatprep.subr.mxu0 0.0
        %3348 = vmatpush1.msra.mxu0 0.0
        %3349 = vmatprep.mubr.f32.mxu0 0.0
        %3350 = vmatmul.mubr.f32.gmra.mrb[0].mxu0 %v3283
        %v3351 = vpop.f32.mrb[0].mxu0
        %v3352 = vadd.f32 0.0, %v3351
        %v3353 = vpop.f32.mrb[0].mxu0
        %3354 = vdwg.mxu0
        %v3355 = vadd.f32 %v3271, %v3352
        %v3356 = vld [vmem:[%s5 + $0xf0] sm:$0xff]
        %v3357 = vld [vmem:[%s5 + $0xf8] sm:$0xff]
        %v3358 = vld [vmem:[%s5 + $0x100] sm:$0xff]
        %v3359 = vld [vmem:[%s5 + $0x108] sm:$0xff]
        %v3360 = vld [vmem:[%s5 + $0x110] sm:$0xff]
        %v3361 = vld [vmem:[%s5 + $0x118] sm:$0xff]
        %v3362 = vld [vmem:[%s5 + $0x120] sm:$0xff]
        %v3363 = vld [vmem:[%s5 + $0x128] sm:$0xff]
        %v3364 = vld [vmem:[%s5 + $0x130] sm:$0xff]
        %v3365 = vld [vmem:[%s5 + $0x138] sm:$0xff]
        %v3366 = vrot.slane %v3101, 3
        %v3367 = vsel %vm3113, %v3366, 0
        %3369 = vmatprep.subr.mxu0 0.0
        %3370 = vmatpush1.msra.mxu0 %v3356
        %3371 = vmatprep.subr.mxu0 0.0
        %3372 = vmatpush1.msra.mxu0 %v3357
        %3373 = vmatprep.subr.mxu0 0.0
        %3374 = vmatpush1.msra.mxu0 %v3358
        %3375 = vmatprep.subr.mxu0 0.0
        %3376 = vmatpush1.msra.mxu0 %v3359
        %3377 = vmatprep.subr.mxu0 0.0
        %3378 = vmatpush1.msra.mxu0 %v3360
        %3379 = vmatprep.subr.mxu0 0.0
        %3380 = vmatpush1.msra.mxu0 %v3361
        %3381 = vmatprep.subr.mxu0 0.0
        %3382 = vmatpush1.msra.mxu0 %v3362
        %3383 = vmatprep.subr.mxu0 0.0
        %3384 = vmatpush1.msra.mxu0 %v3363
        %3385 = vmatprep.subr.mxu0 0.0
        %3386 = vmatpush1.msra.mxu0 %v3364
        %3387 = vmatprep.subr.mxu0 0.0
        %3388 = vmatpush1.msra.mxu0 %v3365
        %3389 = vmatprep.subr.mxu0 0.0
        %3390 = vmatpush1.msra.mxu0 0.0
        %3391 = vmatprep.subr.mxu0 0.0
        %3392 = vmatpush1.msra.mxu0 0.0
        %3393 = vmatprep.subr.mxu0 0.0
        %3394 = vmatpush1.msra.mxu0 0.0
        %3395 = vmatprep.subr.mxu0 0.0
        %3396 = vmatpush1.msra.mxu0 0.0
        %3397 = vmatprep.subr.mxu0 0.0
        %3398 = vmatpush1.msra.mxu0 0.0
        %3399 = vmatprep.subr.mxu0 0.0
        %3400 = vmatpush1.msra.mxu0 0.0
        %3401 = vmatprep.subr.mxu0 0.0
        %3402 = vmatpush1.msra.mxu0 0.0
        %3403 = vmatprep.subr.mxu0 0.0
        %3404 = vmatpush1.msra.mxu0 0.0
        %3405 = vmatprep.subr.mxu0 0.0
        %3406 = vmatpush1.msra.mxu0 0.0
        %3407 = vmatprep.subr.mxu0 0.0
        %3408 = vmatpush1.msra.mxu0 0.0
        %3409 = vmatprep.subr.mxu0 0.0
        %3410 = vmatpush1.msra.mxu0 0.0
        %3411 = vmatprep.subr.mxu0 0.0
        %3412 = vmatpush1.msra.mxu0 0.0
        %3413 = vmatprep.subr.mxu0 0.0
        %3414 = vmatpush1.msra.mxu0 0.0
        %3415 = vmatprep.subr.mxu0 0.0
        %3416 = vmatpush1.msra.mxu0 0.0
        %3417 = vmatprep.subr.mxu0 0.0
        %3418 = vmatpush1.msra.mxu0 0.0
        %3419 = vmatprep.subr.mxu0 0.0
        %3420 = vmatpush1.msra.mxu0 0.0
        %3421 = vmatprep.subr.mxu0 0.0
        %3422 = vmatpush1.msra.mxu0 0.0
        %3423 = vmatprep.subr.mxu0 0.0
        %3424 = vmatpush1.msra.mxu0 0.0
        %3425 = vmatprep.subr.mxu0 0.0
        %3426 = vmatpush1.msra.mxu0 0.0
        %3427 = vmatprep.subr.mxu0 0.0
        %3428 = vmatpush1.msra.mxu0 0.0
        %3429 = vmatprep.subr.mxu0 0.0
        %3430 = vmatpush1.msra.mxu0 0.0
        %3431 = vmatprep.subr.mxu0 0.0
        %3432 = vmatpush1.msra.mxu0 0.0
        %3433 = vmatprep.mubr.f32.mxu0 0.0
        %3434 = vmatmul.mubr.f32.gmra.mrb[0].mxu0 %v3367
        %v3435 = vpop.f32.mrb[0].mxu0
        %v3436 = vadd.f32 0.0, %v3435
        %v3437 = vpop.f32.mrb[0].mxu0
        %3438 = vdwg.mxu0
        %v3439 = vadd.f32 %v3355, %v3436
        %v3440 = vld [vmem:[%s5 + $0x140] sm:$0xff]
        %v3441 = vld [vmem:[%s5 + $0x148] sm:$0xff]
        %v3442 = vld [vmem:[%s5 + $0x150] sm:$0xff]
        %v3443 = vld [vmem:[%s5 + $0x158] sm:$0xff]
        %v3444 = vld [vmem:[%s5 + $0x160] sm:$0xff]
        %v3445 = vld [vmem:[%s5 + $0x168] sm:$0xff]
        %v3446 = vld [vmem:[%s5 + $0x170] sm:$0xff]
        %v3447 = vld [vmem:[%s5 + $0x178] sm:$0xff]
        %v3448 = vld [vmem:[%s5 + $0x180] sm:$0xff]
        %v3449 = vld [vmem:[%s5 + $0x188] sm:$0xff]
        %v3450 = vrot.slane %v3101, 4
        %v3451 = vsel %vm3113, %v3450, 0
        %3453 = vmatprep.subr.mxu0 0.0
        %3454 = vmatpush1.msra.mxu0 %v3440
        %3455 = vmatprep.subr.mxu0 0.0
        %3456 = vmatpush1.msra.mxu0 %v3441
        %3457 = vmatprep.subr.mxu0 0.0
        %3458 = vmatpush1.msra.mxu0 %v3442
        %3459 = vmatprep.subr.mxu0 0.0
        %3460 = vmatpush1.msra.mxu0 %v3443
        %3461 = vmatprep.subr.mxu0 0.0
        %3462 = vmatpush1.msra.mxu0 %v3444
        %3463 = vmatprep.subr.mxu0 0.0
        %3464 = vmatpush1.msra.mxu0 %v3445
        %3465 = vmatprep.subr.mxu0 0.0
        %3466 = vmatpush1.msra.mxu0 %v3446
        %3467 = vmatprep.subr.mxu0 0.0
        %3468 = vmatpush1.msra.mxu0 %v3447
        %3469 = vmatprep.subr.mxu0 0.0
        %3470 = vmatpush1.msra.mxu0 %v3448
        %3471 = vmatprep.subr.mxu0 0.0
        %3472 = vmatpush1.msra.mxu0 %v3449
        %3473 = vmatprep.subr.mxu0 0.0
        %3474 = vmatpush1.msra.mxu0 0.0
        %3475 = vmatprep.subr.mxu0 0.0
        %3476 = vmatpush1.msra.mxu0 0.0
        %3477 = vmatprep.subr.mxu0 0.0
        %3478 = vmatpush1.msra.mxu0 0.0
        %3479 = vmatprep.subr.mxu0 0.0
        %3480 = vmatpush1.msra.mxu0 0.0
        %3481 = vmatprep.subr.mxu0 0.0
        %3482 = vmatpush1.msra.mxu0 0.0
        %3483 = vmatprep.subr.mxu0 0.0
        %3484 = vmatpush1.msra.mxu0 0.0
        %3485 = vmatprep.subr.mxu0 0.0
        %3486 = vmatpush1.msra.mxu0 0.0
        %3487 = vmatprep.subr.mxu0 0.0
        %3488 = vmatpush1.msra.mxu0 0.0
        %3489 = vmatprep.subr.mxu0 0.0
        %3490 = vmatpush1.msra.mxu0 0.0
        %3491 = vmatprep.subr.mxu0 0.0
        %3492 = vmatpush1.msra.mxu0 0.0
        %3493 = vmatprep.subr.mxu0 0.0
        %3494 = vmatpush1.msra.mxu0 0.0
        %3495 = vmatprep.subr.mxu0 0.0
        %3496 = vmatpush1.msra.mxu0 0.0
        %3497 = vmatprep.subr.mxu0 0.0
        %3498 = vmatpush1.msra.mxu0 0.0
        %3499 = vmatprep.subr.mxu0 0.0
        %3500 = vmatpush1.msra.mxu0 0.0
        %3501 = vmatprep.subr.mxu0 0.0
        %3502 = vmatpush1.msra.mxu0 0.0
        %3503 = vmatprep.subr.mxu0 0.0
        %3504 = vmatpush1.msra.mxu0 0.0
        %3505 = vmatprep.subr.mxu0 0.0
        %3506 = vmatpush1.msra.mxu0 0.0
        %3507 = vmatprep.subr.mxu0 0.0
        %3508 = vmatpush1.msra.mxu0 0.0
        %3509 = vmatprep.subr.mxu0 0.0
        %3510 = vmatpush1.msra.mxu0 0.0
        %3511 = vmatprep.subr.mxu0 0.0
        %3512 = vmatpush1.msra.mxu0 0.0
        %3513 = vmatprep.subr.mxu0 0.0
        %3514 = vmatpush1.msra.mxu0 0.0
        %3515 = vmatprep.subr.mxu0 0.0
        %3516 = vmatpush1.msra.mxu0 0.0
        %3517 = vmatprep.mubr.f32.mxu0 0.0
        %3518 = vmatmul.mubr.f32.gmra.mrb[0].mxu0 %v3451
        %v3519 = vpop.f32.mrb[0].mxu0
        %v3520 = vadd.f32 0.0, %v3519
        %v3521 = vpop.f32.mrb[0].mxu0
        %3522 = vdwg.mxu0
        %v3523 = vadd.f32 %v3439, %v3520
        %v3524 = vmax.f32 %v3523, 0.0
        %v3525 = vld [vmem:[%s7] sm:$0xff]
        %v3526 = vld [vmem:[%s7 + $0x8] sm:$0xff]
        %v3527 = vld [vmem:[%s7 + $0x10] sm:$0xff]
        %v3528 = vld [vmem:[%s7 + $0x18] sm:$0xff]
        %v3529 = vld [vmem:[%s7 + $0x20] sm:$0xff]
        %v3530 = vld [vmem:[%s7 + $0x28] sm:$0xff]
        %v3531 = vld [vmem:[%s7 + $0x30] sm:$0xff]
        %v3532 = vld [vmem:[%s7 + $0x38] sm:$0xff]
        %v3533 = vld [vmem:[%s7 + $0x40] sm:$0xff]
        %v3534 = vld [vmem:[%s7 + $0x48] sm:$0xff]
        %v3535 = vld [vmem:[%s7 + $0x50] sm:$0xff]
        %v3536 = vld [vmem:[%s7 + $0x58] sm:$0xff]
        %v3537 = vld [vmem:[%s7 + $0x60] sm:$0xff]
        %v3538 = vld [vmem:[%s7 + $0x68] sm:$0xff]
        %v3539 = vld [vmem:[%s7 + $0x70] sm:$0xff]
        %v3540 = vld [vmem:[%s8] sm:$0x1]
        %vm3541 = vcmask 982016
        %v3543 = vsel %vm3541, %v3524, 0
        %3545 = vmatprep.subr.mxu0 0.0
        %3546 = vmatpush1.msra.mxu0 %v3525
        %3547 = vmatprep.subr.mxu0 0.0
        %3548 = vmatpush1.msra.mxu0 %v3526
        %3549 = vmatprep.subr.mxu0 0.0
        %3550 = vmatpush1.msra.mxu0 %v3527
        %3551 = vmatprep.subr.mxu0 0.0
        %3552 = vmatpush1.msra.mxu0 %v3528
        %3553 = vmatprep.subr.mxu0 0.0
        %3554 = vmatpush1.msra.mxu0 %v3529
        %3555 = vmatprep.subr.mxu0 0.0
        %3556 = vmatpush1.msra.mxu0 %v3530
        %3557 = vmatprep.subr.mxu0 0.0
        %3558 = vmatpush1.msra.mxu0 %v3531
        %3559 = vmatprep.subr.mxu0 0.0
        %3560 = vmatpush1.msra.mxu0 %v3532
        %3561 = vmatprep.subr.mxu0 0.0
        %3562 = vmatpush1.msra.mxu0 %v3533
        %3563 = vmatprep.subr.mxu0 0.0
        %3564 = vmatpush1.msra.mxu0 %v3534
        %3565 = vmatprep.subr.mxu0 0.0
        %3566 = vmatpush1.msra.mxu0 %v3535
        %3567 = vmatprep.subr.mxu0 0.0
        %3568 = vmatpush1.msra.mxu0 %v3536
        %3569 = vmatprep.subr.mxu0 0.0
        %3570 = vmatpush1.msra.mxu0 %v3537
        %3571 = vmatprep.subr.mxu0 0.0
        %3572 = vmatpush1.msra.mxu0 %v3538
        %3573 = vmatprep.subr.mxu0 0.0
        %3574 = vmatpush1.msra.mxu0 %v3539
        %3575 = vmatprep.subr.mxu0 0.0
        %3576 = vmatpush1.msra.mxu0 0.0
        %3577 = vmatprep.subr.mxu0 0.0
        %3578 = vmatpush1.msra.mxu0 0.0
        %3579 = vmatprep.subr.mxu0 0.0
        %3580 = vmatpush1.msra.mxu0 0.0
        %3581 = vmatprep.subr.mxu0 0.0
        %3582 = vmatpush1.msra.mxu0 0.0
        %3583 = vmatprep.subr.mxu0 0.0
        %3584 = vmatpush1.msra.mxu0 0.0
        %3585 = vmatprep.subr.mxu0 0.0
        %3586 = vmatpush1.msra.mxu0 0.0
        %3587 = vmatprep.subr.mxu0 0.0
        %3588 = vmatpush1.msra.mxu0 0.0
        %3589 = vmatprep.subr.mxu0 0.0
        %3590 = vmatpush1.msra.mxu0 0.0
        %3591 = vmatprep.subr.mxu0 0.0
        %3592 = vmatpush1.msra.mxu0 0.0
        %3593 = vmatprep.subr.mxu0 0.0
        %3594 = vmatpush1.msra.mxu0 0.0
        %3595 = vmatprep.subr.mxu0 0.0
        %3596 = vmatpush1.msra.mxu0 0.0
        %3597 = vmatprep.subr.mxu0 0.0
        %3598 = vmatpush1.msra.mxu0 0.0
        %3599 = vmatprep.subr.mxu0 0.0
        %3600 = vmatpush1.msra.mxu0 0.0
        %3601 = vmatprep.subr.mxu0 0.0
        %3602 = vmatpush1.msra.mxu0 0.0
        %3603 = vmatprep.subr.mxu0 0.0
        %3604 = vmatpush1.msra.mxu0 0.0
        %3605 = vmatprep.subr.mxu0 0.0
        %3606 = vmatpush1.msra.mxu0 0.0
        %3607 = vmatprep.subr.mxu0 0.0
        %3608 = vmatpush1.msra.mxu0 0.0
        %3609 = vmatprep.mubr.f32.mxu0 0.0
        %3610 = vmatmul.mubr.f32.gmra.mrb[0].mxu0 %v3543
        %v3611 = vpop.f32.mrb[0].mxu0
        %v3612 = vadd.f32 %v3540, %v3611
        %v3613 = vpop.f32.mrb[0].mxu0
        %3614 = vdwg.mxu0
        %v3615 = vmax.f32 %v3612, 0.0
        %v3616 = vld [vmem:[%s9] sm:$0xff]
        %v3617 = vld [vmem:[%s9 + $0x8] sm:$0xff]
        %v3618 = vld [vmem:[%s9 + $0x10] sm:$0xff]
        %v3619 = vld [vmem:[%s9 + $0x18] sm:$0xff]
        %v3620 = vld [vmem:[%s9 + $0x20] sm:$0xff]
        %v3621 = vld [vmem:[%s9 + $0x28] sm:$0xff]
        %v3622 = vld [vmem:[%s9 + $0x30] sm:$0xff]
        %v3623 = vld [vmem:[%s9 + $0x38] sm:$0xff]
        %v3624 = vld [vmem:[%s9 + $0x40] sm:$0xff]
        %v3625 = vld [vmem:[%s9 + $0x48] sm:$0xff]
        %v3626 = vld [vmem:[%s9 + $0x50] sm:$0xf]
        %v3627 = vld [vmem:[%s10] sm:$0x1]
        %v3629 = vsel %vm2157, %v3615, 0
        %v3632 = vsel %vm2094, %v3626, 0
        %3634 = vmatprep.subr.mxu0 0.0
        %3635 = vmatpush1.msra.mxu0 %v3616
        %3636 = vmatprep.subr.mxu0 0.0
        %3637 = vmatpush1.msra.mxu0 %v3617
        %3638 = vmatprep.subr.mxu0 0.0
        %3639 = vmatpush1.msra.mxu0 %v3618
        %3640 = vmatprep.subr.mxu0 0.0
        %3641 = vmatpush1.msra.mxu0 %v3619
        %3642 = vmatprep.subr.mxu0 0.0
        %3643 = vmatpush1.msra.mxu0 %v3620
        %3644 = vmatprep.subr.mxu0 0.0
        %3645 = vmatpush1.msra.mxu0 %v3621
        %3646 = vmatprep.subr.mxu0 0.0
        %3647 = vmatpush1.msra.mxu0 %v3622
        %3648 = vmatprep.subr.mxu0 0.0
        %3649 = vmatpush1.msra.mxu0 %v3623
        %3650 = vmatprep.subr.mxu0 0.0
        %3651 = vmatpush1.msra.mxu0 %v3624
        %3652 = vmatprep.subr.mxu0 0.0
        %3653 = vmatpush1.msra.mxu0 %v3625
        %3654 = vmatprep.subr.mxu0 0.0
        %3655 = vmatpush1.msra.mxu0 %v3632
        %3656 = vmatprep.subr.mxu0 0.0
        %3657 = vmatpush1.msra.mxu0 0.0
        %3658 = vmatprep.subr.mxu0 0.0
        %3659 = vmatpush1.msra.mxu0 0.0
        %3660 = vmatprep.subr.mxu0 0.0
        %3661 = vmatpush1.msra.mxu0 0.0
        %3662 = vmatprep.subr.mxu0 0.0
        %3663 = vmatpush1.msra.mxu0 0.0
        %3664 = vmatprep.subr.mxu0 0.0
        %3665 = vmatpush1.msra.mxu0 0.0
        %3666 = vmatprep.subr.mxu0 0.0
        %3667 = vmatpush1.msra.mxu0 0.0
        %3668 = vmatprep.subr.mxu0 0.0
        %3669 = vmatpush1.msra.mxu0 0.0
        %3670 = vmatprep.subr.mxu0 0.0
        %3671 = vmatpush1.msra.mxu0 0.0
        %3672 = vmatprep.subr.mxu0 0.0
        %3673 = vmatpush1.msra.mxu0 0.0
        %3674 = vmatprep.subr.mxu0 0.0
        %3675 = vmatpush1.msra.mxu0 0.0
        %3676 = vmatprep.subr.mxu0 0.0
        %3677 = vmatpush1.msra.mxu0 0.0
        %3678 = vmatprep.subr.mxu0 0.0
        %3679 = vmatpush1.msra.mxu0 0.0
        %3680 = vmatprep.subr.mxu0 0.0
        %3681 = vmatpush1.msra.mxu0 0.0
        %3682 = vmatprep.subr.mxu0 0.0
        %3683 = vmatpush1.msra.mxu0 0.0
        %3684 = vmatprep.subr.mxu0 0.0
        %3685 = vmatpush1.msra.mxu0 0.0
        %3686 = vmatprep.subr.mxu0 0.0
        %3687 = vmatpush1.msra.mxu0 0.0
        %3688 = vmatprep.subr.mxu0 0.0
        %3689 = vmatpush1.msra.mxu0 0.0
        %3690 = vmatprep.subr.mxu0 0.0
        %3691 = vmatpush1.msra.mxu0 0.0
        %3692 = vmatprep.subr.mxu0 0.0
        %3693 = vmatpush1.msra.mxu0 0.0
        %3694 = vmatprep.subr.mxu0 0.0
        %3695 = vmatpush1.msra.mxu0 0.0
        %3696 = vmatprep.subr.mxu0 0.0
        %3697 = vmatpush1.msra.mxu0 0.0
        %3698 = vmatprep.mubr.f32.mxu0 0.0
        %3699 = vmatmul.mubr.f32.gmra.mrb[0].mxu0 %v3629
        %v3700 = vpop.f32.mrb[0].mxu0
        %v3701 = vadd.f32 %v3627, %v3700
        %v3702 = vpop.f32.mrb[0].mxu0
        %3703 = vdwg.mxu0
        %vm3704 = vcmask 73728
        %3705 = vst.msk [vmem:[%s378] sm:$0x1] %vm3704, %v3701
        %s3706 = sand.u32 %s269, 1
        %s3707 = scalar_lea.sflag [#allocation3], %s3706
        %s3708 = sand.u32 %s269, 1
        %s3709 = scalar_lea.vmem [#allocation2], %s3708
        // Predicated region
        $region65: #{net_forward.1} parent=63 // pred_check
          %p3710 = pneg %p279
        $region66: #{net_forward.1} parent=63 // pred_check_branch
          %3712 = sbr.rel (%p3710) target = $region68
        $region67: #{net_forward.1} parent=63 // pred_region
          %s3714 = ssub.s32 16, 16
          %3715 = vsyncadd %s3707, %s3714
          %s3716 = smul.addr %s25, 16
          %s3717 = scalar_lea.hbm %s11, %s3716
          %s3719 = sshll.u32 %s3709, 4
          %s3720 = int_to_ptr.vmem [resolvable:$true] %s3719
          %3722 = dma.vmem_to_hbm [thread:$0]  %s3720, 16, %s3717, %s3707
        $region68: #{net_forward.1} parent=63 // pred_fallthru
          _
      $region64: #{net_forward.1} parent=5 // pred_fallthru
        _
      %p3723 = scmp.le.s32.totalorder 2, %s20
      // Predicated region
      $region69: #{net_forward.1} parent=5 // pred_check
        %p3724 = pneg %p3723
      $region70: #{net_forward.1} parent=5 // pred_check_branch
        %3726 = sbr.rel (%p3724) target = $region72
      $region71: #{net_forward.1} parent=5 // pred_region
        %s3727 = ssub.s32 %s20, 2
        // Predicated region
        $region73: #{net_forward.1} parent=71 // pred_check
          %p3728 = pneg %p285
        $region74: #{net_forward.1} parent=71 // pred_check_branch
          %3730 = sbr.rel (%p3728) target = $region76
        $region75: #{net_forward.1} parent=71 // pred_region
          %s3731 = sand.u32 %s270, 1
          %s3732 = scalar_lea.sflag [#allocation3], %s3731
          %s3733 = sand.u32 %s270, 1
          %s3734 = scalar_lea.vmem [#allocation2], %s3733
          %3735 = dma.done %s3732, 16
        $region76: #{net_forward.1} parent=71 // pred_fallthru
          _
      $region72: #{net_forward.1} parent=5 // pred_fallthru
        _
    $region6: #{net_forward.1} parent=1 // loop_footer
      %s24 = sadd.s32 1, %s20
    $region7: #{net_forward.1} parent=1 // loop_footer_branch
      %19 = sbr.rel target = $region3
    $region8: #{net_forward.1} parent=1 // loop_exit
      _
    %3736 = vsyncpa [#allocation3], 1
    %s3737 = scalar_lea.sflag [#allocation3], 1
    %3738 = vsyncpa %s3737, 1

</llo_original>
